<compile_context>
chip_gen: v6e
topology: v6e:2x2x1
jax: 0.10.0
libtpu: 0.0.40
codegen_flags: <defaults>
</compile_context>

<pallas_src>
import math
from functools import partial

import jax
import jax.numpy as jnp
from jax.experimental import pallas as pl
from jax.experimental.pallas import tpu as pltpu

_FF_CHUNK = 512  # lane-chunk of the FFN hidden dim (bounds live f32 vregs at dim_ff=2048)


# ----------------------------------------------------------------------------
# Fused decoder-layer kernel (one batch block of B_blk elements per grid step)
# ----------------------------------------------------------------------------
def _decoder_layer_kernel(
    # activations (row-flattened batch blocks)
    tgt_ref, mem_ref,
    # self-attention params
    sa_wqkv_ref, sa_bqkv_ref, sa_wo_ref, sa_bo_ref, ln1_g_ref, ln1_b_ref,
    # cross-attention params
    ca_wq_ref, ca_bq_ref, ca_wkv_ref, ca_bkv_ref, ca_wo_ref, ca_bo_ref,
    ln2_g_ref, ln2_b_ref,
    # feed-forward params
    w1_ref, b1_ref, w2_ref, b2_ref, ln3_g_ref, ln3_b_ref,
    # output
    out_ref,
    *, nhead, d_model, dim_ff, b_blk, lt, lm):

  D, H = d_model, nhead
  Dh = D // H
  bf16, f32 = jnp.bfloat16, jnp.float32

  def layernorm(z, g_ref, b_ref):
    # PyTorch LayerNorm over the last dim, eps=1e-5; math in f32.
    mu = jnp.mean(z, axis=-1, keepdims=True)
    zc = z - mu
    var = jnp.mean(zc * zc, axis=-1, keepdims=True)
    return zc * jax.lax.rsqrt(var + 1e-5) * g_ref[...] + b_ref[...]

  def split_heads(x2d, L):
    # (b_blk*L, H*Dh) bf16 -> (H*b_blk, L, Dh): head-major leading batch dim so the
    # attention matmuls are single batched einsums (no per-head MXU loop, no Dh-wide
    # masked scratch stores).
    x3 = x2d.reshape(b_blk, L, D)
    return jnp.concatenate([x3[:, :, h * Dh:(h + 1) * Dh] for h in range(H)], axis=0)

  def merge_heads(ctx, L):
    # (H*b_blk, L, Dh) -> (b_blk*L, H*Dh) with head-major lanes (PyTorch concat order),
    # so the out-projection is one lane-dense matmul.
    parts = [ctx[h * b_blk:(h + 1) * b_blk] for h in range(H)]
    return jnp.concatenate(parts, axis=-1).reshape(b_blk * L, D)

  def attention(q2d, k2d, v2d, lq, lk, wo_ref, bo_ref):
    # q2d/k2d/v2d are bf16; scores & softmax in f32; PV and out-proj bf16 w/ f32 accum.
    qh, kh, vh = split_heads(q2d, lq), split_heads(k2d, lk), split_heads(v2d, lk)
    s = jnp.einsum('bqd,bkd->bqk', qh, kh, preferred_element_type=f32)
    s = s - jnp.max(s, axis=-1, keepdims=True)
    p = jnp.exp(s)
    p = p * pl.reciprocal(jnp.sum(p, axis=-1, keepdims=True), approx=True)
    ctx = jnp.einsum('bqk,bkd->bqd', p.astype(bf16), vh, preferred_element_type=f32)
    ctx2d = merge_heads(ctx.astype(bf16), lq)
    return jnp.dot(ctx2d, wo_ref[...], preferred_element_type=f32) + bo_ref[...]

  x = tgt_ref[...]                                    # (b_blk*lt, D) f32
  mem = mem_ref[...]                                  # (b_blk*lm, D) f32

  # ---- self-attention block (fused QKV projection; scale pre-folded into Wq/bq;
  #      dropout1 = identity in eval mode) ----
  qkv = jnp.dot(x.astype(bf16), sa_wqkv_ref[...],
                preferred_element_type=f32) + sa_bqkv_ref[...]
  qkv = qkv.astype(bf16)
  sa = attention(qkv[:, :D], qkv[:, D:2 * D], qkv[:, 2 * D:], lt, lt,
                 sa_wo_ref, sa_bo_ref)
  t = layernorm(x + sa, ln1_g_ref, ln1_b_ref)

  # ---- cross-attention block (fused KV projection of memory; dropout2 = identity) ----
  q2 = (jnp.dot(t.astype(bf16), ca_wq_ref[...],
                preferred_element_type=f32) + ca_bq_ref[...]).astype(bf16)
  kv = (jnp.dot(mem.astype(bf16), ca_wkv_ref[...],
                preferred_element_type=f32) + ca_bkv_ref[...]).astype(bf16)
  ca = attention(q2, kv[:, :D], kv[:, D:], lt, lm, ca_wo_ref, ca_bo_ref)
  t = layernorm(t + ca, ln2_g_ref, ln2_b_ref)

  # ---- feed-forward: linear2(relu(linear1(t))), chunked over dim_ff (dropout = id) ----
  t_bf = t.astype(bf16)
  if dim_ff > _FF_CHUNK and dim_ff % _FF_CHUNK == 0:
    ff = jnp.zeros(t.shape, f32)
    for c0 in range(0, dim_ff, _FF_CHUNK):
      hk = jnp.dot(t_bf, w1_ref[:, c0:c0 + _FF_CHUNK],
                   preferred_element_type=f32) + b1_ref[:, c0:c0 + _FF_CHUNK]
      ff = ff + jnp.dot(jnp.maximum(hk, 0.0).astype(bf16),
                        w2_ref[c0:c0 + _FF_CHUNK, :], preferred_element_type=f32)
    ff = ff + b2_ref[...]
  else:
    hk = jnp.maximum(jnp.dot(t_bf, w1_ref[...],
                             preferred_element_type=f32) + b1_ref[...], 0.0)
    ff = jnp.dot(hk.astype(bf16), w2_ref[...],
                 preferred_element_type=f32) + b2_ref[...]
  out = layernorm(t + ff, ln3_g_ref, ln3_b_ref)
  out_ref[...] = out.astype(out_ref.dtype)


# ----------------------------------------------------------------------------
# Wrapper
# ----------------------------------------------------------------------------
def _full_spec(a):
  zeros = (0,) * a.ndim
  return pl.BlockSpec(a.shape, lambda g, _z=zeros: _z)


def _choose_grid_steps(B, Lt, Lm, min_rows=128, max_rows=1024):
  """Pick the number of batch blocks: prefer >=2 'parallel' steps (v7x megacore) with
  >=min_rows MXU rows per step, blocks capped near max_rows rows to bound VMEM."""
  best, best_key = 1, None
  for g in range(1, B + 1):
    if B % g:
      continue
    bb = B // g
    if g > 1 and ((bb * Lt) % 8 or (bb * Lm) % 8):
      continue  # keep the sublane dim of activation blocks 8-aligned
    rows = bb * Lt
    key = (0 if min_rows <= rows <= max_rows else 1,   # MXU / VMEM sweet spot
           0 if (g >= 2 or B == 1) else 1,             # use both TensorCores if possible
           abs(rows - max_rows))                       # otherwise: as large as allowed
    if best_key is None or key < best_key:
      best, best_key = g, key
  return best


def _vmem_limit_bytes(weights, b_blk, lt, lm, d, dim_ff, nhead):
  # Double-buffered weights + pipelined activation blocks + headroom for the live f32
  # intermediates (QKV, KV, scores, FFN chunk); never below the 32 MiB default.
  wbytes = 2 * sum(int(w.size) * w.dtype.itemsize for w in weights)
  rows_t, rows_m = b_blk * lt, b_blk * lm
  act = 2 * 4 * (2 * rows_t * d + rows_m * d)
  inter = 4 * (rows_t * (3 * d + 2 * d + min(dim_ff, _FF_CHUNK))
               + rows_m * 2 * d
               + nhead * b_blk * lt * max(lt, lm) * 2)
  return max(32 * 1024 * 1024, wbytes + act + 2 * inter)


def decoder_layer_forward(tgt, memory, packed, nhead):
  """tgt: (Lt, B, D) f32, memory: (Lm, B, D) f32 -> (Lt, B, D) f32."""
  Lt, B, D = tgt.shape
  Lm = memory.shape[0]
  dim_ff = packed["w1"].shape[1]
  assert D % nhead == 0

  G = _choose_grid_steps(B, Lt, Lm)
  B_blk = B // G

  # One layout change at entry/exit ((L,B,D) -> (B*L,D)); cheaper than strided block DMA
  # at small D (the "skip the transpose" variant only pays off for D >= 512).
  tgt2d = jnp.transpose(tgt, (1, 0, 2)).reshape(B * Lt, D)
  mem2d = jnp.transpose(memory, (1, 0, 2)).reshape(B * Lm, D)

  weights = [packed[k] for k in (
      "sa_w_qkv", "sa_b_qkv", "sa_w_o", "sa_b_o", "ln1_g", "ln1_b",
      "ca_w_q", "ca_b_q", "ca_w_kv", "ca_b_kv", "ca_w_o", "ca_b_o", "ln2_g", "ln2_b",
      "w1", "b1", "w2", "b2", "ln3_g", "ln3_b")]

  out2d = pl.pallas_call(
      partial(_decoder_layer_kernel, nhead=nhead, d_model=D, dim_ff=dim_ff,
              b_blk=B_blk, lt=Lt, lm=Lm),
      out_shape=jax.ShapeDtypeStruct((B * Lt, D), jnp.float32),
      grid=(G,),
      in_specs=[pl.BlockSpec((B_blk * Lt, D), lambda g: (g, 0)),
                pl.BlockSpec((B_blk * Lm, D), lambda g: (g, 0))]
               + [_full_spec(w) for w in weights],
      out_specs=pl.BlockSpec((B_blk * Lt, D), lambda g: (g, 0)),
      compiler_params=pltpu.CompilerParams(
          dimension_semantics=("parallel",),   # batch blocks -> megacore on v7x
          vmem_limit_bytes=_vmem_limit_bytes(weights, B_blk, Lt, Lm, D, dim_ff, nhead)),
  )(tgt2d, mem2d, *weights)

  return out2d.reshape(B, Lt, D).transpose(1, 0, 2)   # back to (Lt, B, D)


# ----------------------------------------------------------------------------
# Parameter construction / packing (bf16 fused QKV / KV weights, scale folded into Wq)
# ----------------------------------------------------------------------------
def make_params(key, d_model, nhead, dim_ff):
  keys = jax.random.split(key, 12)
  s = 0.05

  def attn_params(k0, k1, k2, k3):
    kq, kk, kv, ko = jax.random.split(k0, 4)
    return {
        "w_q": jax.random.normal(kq, (d_model, d_model), jnp.float32) * s,
        "w_k": jax.random.normal(kk, (d_model, d_model), jnp.float32) * s,
        "w_v": jax.random.normal(kv, (d_model, d_model), jnp.float32) * s,
        "w_o": jax.random.normal(ko, (d_model, d_model), jnp.float32) * s,
        "b_q": jax.random.normal(k1, (d_model,), jnp.float32) * s,
        "b_k": jax.random.normal(k2, (d_model,), jnp.float32) * s,
        "b_v": jax.random.normal(k3, (d_model,), jnp.float32) * s,
        "b_o": jnp.zeros((d_model,), jnp.float32),
    }

  return {
      "self_attn": attn_params(keys[0], keys[1], keys[2], keys[3]),
      "cross_attn": attn_params(keys[4], keys[5], keys[6], keys[7]),
      "w1": jax.random.normal(keys[8], (d_model, dim_ff), jnp.float32) * s,
      "b1": jax.random.normal(keys[9], (dim_ff,), jnp.float32) * s,
      "w2": jax.random.normal(keys[10], (dim_ff, d_model), jnp.float32) * s,
      "b2": jax.random.normal(keys[11], (d_model,), jnp.float32) * s,
      "ln1_g": jnp.ones((d_model,), jnp.float32),
      "ln1_b": jnp.zeros((d_model,), jnp.float32),
      "ln2_g": jnp.ones((d_model,), jnp.float32),
      "ln2_b": jnp.zeros((d_model,), jnp.float32),
      "ln3_g": jnp.ones((d_model,), jnp.float32),
      "ln3_b": jnp.zeros((d_model,), jnp.float32),
  }


def pack_params(params, d_model, dim_ff, nhead):
  """Fuse QKV / KV weights, fold 1/sqrt(Dh) into Wq/bq, cast matmul weights to bf16
  (kernel accumulates in f32); biases / LayerNorm params stay f32."""
  D, Fd = d_model, dim_ff
  bf = jnp.bfloat16
  scale = 1.0 / math.sqrt(D // nhead)
  sa, ca = params["self_attn"], params["cross_attn"]
  return {
      "sa_w_qkv": jnp.concatenate([sa["w_q"] * scale, sa["w_k"], sa["w_v"]],
                                  axis=1).astype(bf),
      "sa_b_qkv": jnp.concatenate([sa["b_q"] * scale, sa["b_k"], sa["b_v"]]
                                  ).reshape(1, 3 * D),
      "sa_w_o": sa["w_o"].astype(bf),
      "sa_b_o": sa["b_o"].reshape(1, D),
      "ca_w_q": (ca["w_q"] * scale).astype(bf),
      "ca_b_q": (ca["b_q"] * scale).reshape(1, D),
      "ca_w_kv": jnp.concatenate([ca["w_k"], ca["w_v"]], axis=1).astype(bf),
      "ca_b_kv": jnp.concatenate([ca["b_k"], ca["b_v"]]).reshape(1, 2 * D),
      "ca_w_o": ca["w_o"].astype(bf),
      "ca_b_o": ca["b_o"].reshape(1, D),
      "w1": params["w1"].astype(bf),
      "b1": params["b1"].reshape(1, Fd),
      "w2": params["w2"].astype(bf),
      "b2": params["b2"].reshape(1, D),
      "ln1_g": params["ln1_g"].reshape(1, D), "ln1_b": params["ln1_b"].reshape(1, D),
      "ln2_g": params["ln2_g"].reshape(1, D), "ln2_b": params["ln2_b"].reshape(1, D),
      "ln3_g": params["ln3_g"].reshape(1, D), "ln3_b": params["ln3_b"].reshape(1, D),
  }


# TODO(synk): optional attn_mask / key_padding_mask, train-mode dropout, and the
# siamese / debug branches of the PyTorch module are not implemented (the default
# eval-mode forward path uses none of them).

if __name__ == "__main__":
  d_model, nhead, dim_ff = 32, 4, 64
  Lt, Lm, B = 8, 10, 2

  key = jax.random.PRNGKey(0)
  k_tgt, k_mem, k_par = jax.random.split(key, 3)
  tgt = jax.random.normal(k_tgt, (Lt, B, d_model), jnp.float32)      # (seq, batch, d)
  memory = jax.random.normal(k_mem, (Lm, B, d_model), jnp.float32)   # (seq, batch, d)
  params = make_params(k_par, d_model, nhead, dim_ff)
  packed = pack_params(params, d_model, dim_ff, nhead)

  fwd = jax.jit(partial(decoder_layer_forward, nhead=nhead))
  out = fwd(tgt, memory, packed)
  jax.block_until_ready(out)
  assert out.shape == (Lt, B, d_model), out.shape
  assert bool(jnp.all(jnp.isfinite(out)))
  print("KERNEL_OK")
</pallas_src>

<mosaic_0001>
module attributes {stable_mosaic.version = 11 : i64} {
  func.func @_decoder_layer_kernel(%arg0: i32, %arg1: memref<16x32xf32, #tpu.memory_space<vmem>>, %arg2: memref<20x32xf32, #tpu.memory_space<vmem>>, %arg3: memref<32x96xbf16, #tpu.memory_space<vmem>>, %arg4: memref<1x96xf32, #tpu.memory_space<vmem>>, %arg5: memref<32x32xbf16, #tpu.memory_space<vmem>>, %arg6: memref<1x32xf32, #tpu.memory_space<vmem>>, %arg7: memref<1x32xf32, #tpu.memory_space<vmem>>, %arg8: memref<1x32xf32, #tpu.memory_space<vmem>>, %arg9: memref<32x32xbf16, #tpu.memory_space<vmem>>, %arg10: memref<1x32xf32, #tpu.memory_space<vmem>>, %arg11: memref<32x64xbf16, #tpu.memory_space<vmem>>, %arg12: memref<1x64xf32, #tpu.memory_space<vmem>>, %arg13: memref<32x32xbf16, #tpu.memory_space<vmem>>, %arg14: memref<1x32xf32, #tpu.memory_space<vmem>>, %arg15: memref<1x32xf32, #tpu.memory_space<vmem>>, %arg16: memref<1x32xf32, #tpu.memory_space<vmem>>, %arg17: memref<32x64xbf16, #tpu.memory_space<vmem>>, %arg18: memref<1x64xf32, #tpu.memory_space<vmem>>, %arg19: memref<64x32xbf16, #tpu.memory_space<vmem>>, %arg20: memref<1x32xf32, #tpu.memory_space<vmem>>, %arg21: memref<1x32xf32, #tpu.memory_space<vmem>>, %arg22: memref<1x32xf32, #tpu.memory_space<vmem>>, %arg23: memref<16x32xf32, #tpu.memory_space<vmem>>) attributes {dimension_semantics = [#tpu.dimension_semantics<parallel>], iteration_bounds = array<i64: 1>, scalar_prefetch = 0 : i64, scratch_operands = 0 : i64, tpu.core_type = #tpu.core_type<tc>, window_params = [{transform_indices = @transform_0, window_bounds = array<i64: 16, 32>}, {transform_indices = @transform_1, window_bounds = array<i64: 20, 32>}, {pipeline_mode = #tpu.pipeline_mode<synchronous>, transform_indices = @transform_2, window_bounds = array<i64: 32, 96>}, {pipeline_mode = #tpu.pipeline_mode<synchronous>, transform_indices = @transform_3, window_bounds = array<i64: 1, 96>}, {pipeline_mode = #tpu.pipeline_mode<synchronous>, transform_indices = @transform_4, window_bounds = array<i64: 32, 32>}, {pipeline_mode = #tpu.pipeline_mode<synchronous>, transform_indices = @transform_5, window_bounds = array<i64: 1, 32>}, {pipeline_mode = #tpu.pipeline_mode<synchronous>, transform_indices = @transform_6, window_bounds = array<i64: 1, 32>}, {pipeline_mode = #tpu.pipeline_mode<synchronous>, transform_indices = @transform_7, window_bounds = array<i64: 1, 32>}, {pipeline_mode = #tpu.pipeline_mode<synchronous>, transform_indices = @transform_8, window_bounds = array<i64: 32, 32>}, {pipeline_mode = #tpu.pipeline_mode<synchronous>, transform_indices = @transform_9, window_bounds = array<i64: 1, 32>}, {pipeline_mode = #tpu.pipeline_mode<synchronous>, transform_indices = @transform_10, window_bounds = array<i64: 32, 64>}, {pipeline_mode = #tpu.pipeline_mode<synchronous>, transform_indices = @transform_11, window_bounds = array<i64: 1, 64>}, {pipeline_mode = #tpu.pipeline_mode<synchronous>, transform_indices = @transform_12, window_bounds = array<i64: 32, 32>}, {pipeline_mode = #tpu.pipeline_mode<synchronous>, transform_indices = @transform_13, window_bounds = array<i64: 1, 32>}, {pipeline_mode = #tpu.pipeline_mode<synchronous>, transform_indices = @transform_14, window_bounds = array<i64: 1, 32>}, {pipeline_mode = #tpu.pipeline_mode<synchronous>, transform_indices = @transform_15, window_bounds = array<i64: 1, 32>}, {pipeline_mode = #tpu.pipeline_mode<synchronous>, transform_indices = @transform_16, window_bounds = array<i64: 32, 64>}, {pipeline_mode = #tpu.pipeline_mode<synchronous>, transform_indices = @transform_17, window_bounds = array<i64: 1, 64>}, {pipeline_mode = #tpu.pipeline_mode<synchronous>, transform_indices = @transform_18, window_bounds = array<i64: 64, 32>}, {pipeline_mode = #tpu.pipeline_mode<synchronous>, transform_indices = @transform_19, window_bounds = array<i64: 1, 32>}, {pipeline_mode = #tpu.pipeline_mode<synchronous>, transform_indices = @transform_20, window_bounds = array<i64: 1, 32>}, {pipeline_mode = #tpu.pipeline_mode<synchronous>, transform_indices = @transform_21, window_bounds = array<i64: 1, 32>}, {transform_indices = @transform_22, window_bounds = array<i64: 16, 32>}]} {
    %c0 = arith.constant 0 : index
    %c0_0 = arith.constant 0 : index
    %0 = vector.load %arg1[%c0, %c0_0] : memref<16x32xf32, #tpu.memory_space<vmem>>, vector<16x32xf32>
    %c0_1 = arith.constant 0 : index
    %c0_2 = arith.constant 0 : index
    %1 = vector.load %arg2[%c0_1, %c0_2] : memref<20x32xf32, #tpu.memory_space<vmem>>, vector<20x32xf32>
    %2 = arith.truncf %0 : vector<16x32xf32> to vector<16x32xbf16>
    %c0_3 = arith.constant 0 : index
    %c0_4 = arith.constant 0 : index
    %3 = vector.load %arg3[%c0_3, %c0_4] : memref<32x96xbf16, #tpu.memory_space<vmem>>, vector<32x96xbf16>
    %cst = arith.constant dense<0.000000e+00> : vector<16x96xf32>
    %4 = tpu.matmul %2, %3, %cst {dimension_numbers = #tpu.dot_dimension_numbers<[1], [0], [0], [1], [0, 0, 1, 1], [], []>} : vector<16x32xbf16>, vector<32x96xbf16>, vector<16x96xf32> -> vector<16x96xf32>
    %c0_5 = arith.constant 0 : index
    %c0_6 = arith.constant 0 : index
    %5 = vector.load %arg4[%c0_5, %c0_6] : memref<1x96xf32, #tpu.memory_space<vmem>>, vector<1x96xf32>
    %6 = vector.broadcast %5 : vector<1x96xf32> to vector<16x96xf32>
    %7 = arith.addf %4, %6 : vector<16x96xf32>
    %8 = arith.truncf %7 : vector<16x96xf32> to vector<16x96xbf16>
    %9 = vector.extract_strided_slice %8 {offsets = [0, 0], sizes = [16, 32], strides = [1, 1]} : vector<16x96xbf16> to vector<16x32xbf16>
    %10 = vector.extract_strided_slice %8 {offsets = [0, 32], sizes = [16, 32], strides = [1, 1]} : vector<16x96xbf16> to vector<16x32xbf16>
    %11 = vector.extract_strided_slice %8 {offsets = [0, 64], sizes = [16, 32], strides = [1, 1]} : vector<16x96xbf16> to vector<16x32xbf16>
    %12 = vector.shape_cast %9 : vector<16x32xbf16> to vector<2x8x32xbf16>
    %13 = vector.extract_strided_slice %12 {offsets = [0, 0, 0], sizes = [2, 8, 8], strides = [1, 1, 1]} : vector<2x8x32xbf16> to vector<2x8x8xbf16>
    %14 = vector.extract_strided_slice %12 {offsets = [0, 0, 8], sizes = [2, 8, 8], strides = [1, 1, 1]} : vector<2x8x32xbf16> to vector<2x8x8xbf16>
    %15 = vector.extract_strided_slice %12 {offsets = [0, 0, 16], sizes = [2, 8, 8], strides = [1, 1, 1]} : vector<2x8x32xbf16> to vector<2x8x8xbf16>
    %16 = vector.extract_strided_slice %12 {offsets = [0, 0, 24], sizes = [2, 8, 8], strides = [1, 1, 1]} : vector<2x8x32xbf16> to vector<2x8x8xbf16>
    %17 = tpu.concatenate %13, %14, %15, %16 in 0 : vector<2x8x8xbf16>, vector<2x8x8xbf16>, vector<2x8x8xbf16>, vector<2x8x8xbf16> -> vector<8x8x8xbf16>
    %18 = vector.shape_cast %10 : vector<16x32xbf16> to vector<2x8x32xbf16>
    %19 = vector.extract_strided_slice %18 {offsets = [0, 0, 0], sizes = [2, 8, 8], strides = [1, 1, 1]} : vector<2x8x32xbf16> to vector<2x8x8xbf16>
    %20 = vector.extract_strided_slice %18 {offsets = [0, 0, 8], sizes = [2, 8, 8], strides = [1, 1, 1]} : vector<2x8x32xbf16> to vector<2x8x8xbf16>
    %21 = vector.extract_strided_slice %18 {offsets = [0, 0, 16], sizes = [2, 8, 8], strides = [1, 1, 1]} : vector<2x8x32xbf16> to vector<2x8x8xbf16>
    %22 = vector.extract_strided_slice %18 {offsets = [0, 0, 24], sizes = [2, 8, 8], strides = [1, 1, 1]} : vector<2x8x32xbf16> to vector<2x8x8xbf16>
    %23 = tpu.concatenate %19, %20, %21, %22 in 0 : vector<2x8x8xbf16>, vector<2x8x8xbf16>, vector<2x8x8xbf16>, vector<2x8x8xbf16> -> vector<8x8x8xbf16>
    %24 = vector.shape_cast %11 : vector<16x32xbf16> to vector<2x8x32xbf16>
    %25 = vector.extract_strided_slice %24 {offsets = [0, 0, 0], sizes = [2, 8, 8], strides = [1, 1, 1]} : vector<2x8x32xbf16> to vector<2x8x8xbf16>
    %26 = vector.extract_strided_slice %24 {offsets = [0, 0, 8], sizes = [2, 8, 8], strides = [1, 1, 1]} : vector<2x8x32xbf16> to vector<2x8x8xbf16>
    %27 = vector.extract_strided_slice %24 {offsets = [0, 0, 16], sizes = [2, 8, 8], strides = [1, 1, 1]} : vector<2x8x32xbf16> to vector<2x8x8xbf16>
    %28 = vector.extract_strided_slice %24 {offsets = [0, 0, 24], sizes = [2, 8, 8], strides = [1, 1, 1]} : vector<2x8x32xbf16> to vector<2x8x8xbf16>
    %29 = tpu.concatenate %25, %26, %27, %28 in 0 : vector<2x8x8xbf16>, vector<2x8x8xbf16>, vector<2x8x8xbf16>, vector<2x8x8xbf16> -> vector<8x8x8xbf16>
    "tpu.trace_start"() <{level = 10 : i32, message = "bqd,bkd->bqk"}> : () -> ()
    %cst_7 = arith.constant dense<0.000000e+00> : vector<8x8x8xf32>
    %30 = tpu.matmul %17, %23, %cst_7 {dimension_numbers = #tpu.dot_dimension_numbers<[2], [2], [1], [1], [0, 0, 0, 1, 1, 1], [0], [0]>} : vector<8x8x8xbf16>, vector<8x8x8xbf16>, vector<8x8x8xf32> -> vector<8x8x8xf32>
    "tpu.trace_stop"() : () -> ()
    %cst_8 = arith.constant dense<0xFF800000> : vector<8x8xf32>
    %31 = vector.multi_reduction <maximumf>, %30, %cst_8 [2] : vector<8x8x8xf32> to vector<8x8xf32>
    %32 = vector.shape_cast %31 : vector<8x8xf32> to vector<8x8x1xf32>
    %33 = vector.broadcast %32 : vector<8x8x1xf32> to vector<8x8x8xf32>
    %34 = arith.subf %30, %33 : vector<8x8x8xf32>
    %35 = math.exp %34 : vector<8x8x8xf32>
    %cst_9 = arith.constant dense<0.000000e+00> : vector<8x8xf32>
    %36 = vector.multi_reduction <add>, %35, %cst_9 [2] : vector<8x8x8xf32> to vector<8x8xf32>
    %37 = vector.shape_cast %36 : vector<8x8xf32> to vector<8x8x1xf32>
    %38 = tpu.reciprocal %37 {approx = true} : vector<8x8x1xf32> -> vector<8x8x1xf32>
    %39 = vector.broadcast %38 : vector<8x8x1xf32> to vector<8x8x8xf32>
    %40 = arith.mulf %35, %39 : vector<8x8x8xf32>
    %41 = arith.truncf %40 : vector<8x8x8xf32> to vector<8x8x8xbf16>
    "tpu.trace_start"() <{level = 10 : i32, message = "bqk,bkd->bqd"}> : () -> ()
    %cst_10 = arith.constant dense<0.000000e+00> : vector<8x8x8xf32>
    %42 = tpu.matmul %41, %29, %cst_10 {dimension_numbers = #tpu.dot_dimension_numbers<[2], [1], [1], [2], [0, 0, 0, 1, 1, 2], [0], [0]>} : vector<8x8x8xbf16>, vector<8x8x8xbf16>, vector<8x8x8xf32> -> vector<8x8x8xf32>
    "tpu.trace_stop"() : () -> ()
    %43 = arith.truncf %42 : vector<8x8x8xf32> to vector<8x8x8xbf16>
    %44 = vector.extract_strided_slice %43 {offsets = [0, 0, 0], sizes = [2, 8, 8], strides = [1, 1, 1]} : vector<8x8x8xbf16> to vector<2x8x8xbf16>
    %45 = vector.extract_strided_slice %43 {offsets = [2, 0, 0], sizes = [2, 8, 8], strides = [1, 1, 1]} : vector<8x8x8xbf16> to vector<2x8x8xbf16>
    %46 = vector.extract_strided_slice %43 {offsets = [4, 0, 0], sizes = [2, 8, 8], strides = [1, 1, 1]} : vector<8x8x8xbf16> to vector<2x8x8xbf16>
    %47 = vector.extract_strided_slice %43 {offsets = [6, 0, 0], sizes = [2, 8, 8], strides = [1, 1, 1]} : vector<8x8x8xbf16> to vector<2x8x8xbf16>
    %48 = tpu.concatenate %44, %45, %46, %47 in 2 : vector<2x8x8xbf16>, vector<2x8x8xbf16>, vector<2x8x8xbf16>, vector<2x8x8xbf16> -> vector<2x8x32xbf16>
    %49 = vector.shape_cast %48 : vector<2x8x32xbf16> to vector<16x32xbf16>
    %c0_11 = arith.constant 0 : index
    %c0_12 = arith.constant 0 : index
    %50 = vector.load %arg5[%c0_11, %c0_12] : memref<32x32xbf16, #tpu.memory_space<vmem>>, vector<32x32xbf16>
    %cst_13 = arith.constant dense<0.000000e+00> : vector<16x32xf32>
    %51 = tpu.matmul %49, %50, %cst_13 {dimension_numbers = #tpu.dot_dimension_numbers<[1], [0], [0], [1], [0, 0, 1, 1], [], []>} : vector<16x32xbf16>, vector<32x32xbf16>, vector<16x32xf32> -> vector<16x32xf32>
    %c0_14 = arith.constant 0 : index
    %c0_15 = arith.constant 0 : index
    %52 = vector.load %arg6[%c0_14, %c0_15] : memref<1x32xf32, #tpu.memory_space<vmem>>, vector<1x32xf32>
    %53 = vector.broadcast %52 : vector<1x32xf32> to vector<16x32xf32>
    %54 = arith.addf %51, %53 : vector<16x32xf32>
    %55 = arith.addf %0, %54 : vector<16x32xf32>
    %cst_16 = arith.constant dense<0.000000e+00> : vector<16xf32>
    %56 = vector.multi_reduction <add>, %55, %cst_16 [1] : vector<16x32xf32> to vector<16xf32>
    %57 = vector.shape_cast %56 : vector<16xf32> to vector<16x1xf32>
    %cst_17 = arith.constant 3.200000e+01 : f32
    %58 = vector.broadcast %cst_17 : f32 to vector<16x1xf32>
    %59 = arith.divf %57, %58 : vector<16x1xf32>
    %60 = vector.broadcast %59 : vector<16x1xf32> to vector<16x32xf32>
    %61 = arith.subf %55, %60 : vector<16x32xf32>
    %62 = arith.mulf %61, %61 : vector<16x32xf32>
    %cst_18 = arith.constant dense<0.000000e+00> : vector<16xf32>
    %63 = vector.multi_reduction <add>, %62, %cst_18 [1] : vector<16x32xf32> to vector<16xf32>
    %64 = vector.shape_cast %63 : vector<16xf32> to vector<16x1xf32>
    %cst_19 = arith.constant 3.200000e+01 : f32
    %65 = vector.broadcast %cst_19 : f32 to vector<16x1xf32>
    %66 = arith.divf %64, %65 : vector<16x1xf32>
    %cst_20 = arith.constant 9.99999974E-6 : f32
    %67 = vector.broadcast %cst_20 : f32 to vector<16x1xf32>
    %68 = arith.addf %66, %67 : vector<16x1xf32>
    %69 = math.rsqrt %68 : vector<16x1xf32>
    %70 = vector.broadcast %69 : vector<16x1xf32> to vector<16x32xf32>
    %71 = arith.mulf %61, %70 : vector<16x32xf32>
    %c0_21 = arith.constant 0 : index
    %c0_22 = arith.constant 0 : index
    %72 = vector.load %arg7[%c0_21, %c0_22] : memref<1x32xf32, #tpu.memory_space<vmem>>, vector<1x32xf32>
    %73 = vector.broadcast %72 : vector<1x32xf32> to vector<16x32xf32>
    %74 = arith.mulf %71, %73 : vector<16x32xf32>
    %c0_23 = arith.constant 0 : index
    %c0_24 = arith.constant 0 : index
    %75 = vector.load %arg8[%c0_23, %c0_24] : memref<1x32xf32, #tpu.memory_space<vmem>>, vector<1x32xf32>
    %76 = vector.broadcast %75 : vector<1x32xf32> to vector<16x32xf32>
    %77 = arith.addf %74, %76 : vector<16x32xf32>
    %78 = arith.truncf %77 : vector<16x32xf32> to vector<16x32xbf16>
    %c0_25 = arith.constant 0 : index
    %c0_26 = arith.constant 0 : index
    %79 = vector.load %arg9[%c0_25, %c0_26] : memref<32x32xbf16, #tpu.memory_space<vmem>>, vector<32x32xbf16>
    %cst_27 = arith.constant dense<0.000000e+00> : vector<16x32xf32>
    %80 = tpu.matmul %78, %79, %cst_27 {dimension_numbers = #tpu.dot_dimension_numbers<[1], [0], [0], [1], [0, 0, 1, 1], [], []>} : vector<16x32xbf16>, vector<32x32xbf16>, vector<16x32xf32> -> vector<16x32xf32>
    %c0_28 = arith.constant 0 : index
    %c0_29 = arith.constant 0 : index
    %81 = vector.load %arg10[%c0_28, %c0_29] : memref<1x32xf32, #tpu.memory_space<vmem>>, vector<1x32xf32>
    %82 = vector.broadcast %81 : vector<1x32xf32> to vector<16x32xf32>
    %83 = arith.addf %80, %82 : vector<16x32xf32>
    %84 = arith.truncf %83 : vector<16x32xf32> to vector<16x32xbf16>
    %85 = arith.truncf %1 : vector<20x32xf32> to vector<20x32xbf16>
    %c0_30 = arith.constant 0 : index
    %c0_31 = arith.constant 0 : index
    %86 = vector.load %arg11[%c0_30, %c0_31] : memref<32x64xbf16, #tpu.memory_space<vmem>>, vector<32x64xbf16>
    %cst_32 = arith.constant dense<0.000000e+00> : vector<20x64xf32>
    %87 = tpu.matmul %85, %86, %cst_32 {dimension_numbers = #tpu.dot_dimension_numbers<[1], [0], [0], [1], [0, 0, 1, 1], [], []>} : vector<20x32xbf16>, vector<32x64xbf16>, vector<20x64xf32> -> vector<20x64xf32>
    %c0_33 = arith.constant 0 : index
    %c0_34 = arith.constant 0 : index
    %88 = vector.load %arg12[%c0_33, %c0_34] : memref<1x64xf32, #tpu.memory_space<vmem>>, vector<1x64xf32>
    %89 = vector.broadcast %88 : vector<1x64xf32> to vector<20x64xf32>
    %90 = arith.addf %87, %89 : vector<20x64xf32>
    %91 = arith.truncf %90 : vector<20x64xf32> to vector<20x64xbf16>
    %92 = vector.extract_strided_slice %91 {offsets = [0, 0], sizes = [20, 32], strides = [1, 1]} : vector<20x64xbf16> to vector<20x32xbf16>
    %93 = vector.extract_strided_slice %91 {offsets = [0, 32], sizes = [20, 32], strides = [1, 1]} : vector<20x64xbf16> to vector<20x32xbf16>
    %94 = vector.shape_cast %84 : vector<16x32xbf16> to vector<2x8x32xbf16>
    %95 = vector.extract_strided_slice %94 {offsets = [0, 0, 0], sizes = [2, 8, 8], strides = [1, 1, 1]} : vector<2x8x32xbf16> to vector<2x8x8xbf16>
    %96 = vector.extract_strided_slice %94 {offsets = [0, 0, 8], sizes = [2, 8, 8], strides = [1, 1, 1]} : vector<2x8x32xbf16> to vector<2x8x8xbf16>
    %97 = vector.extract_strided_slice %94 {offsets = [0, 0, 16], sizes = [2, 8, 8], strides = [1, 1, 1]} : vector<2x8x32xbf16> to vector<2x8x8xbf16>
    %98 = vector.extract_strided_slice %94 {offsets = [0, 0, 24], sizes = [2, 8, 8], strides = [1, 1, 1]} : vector<2x8x32xbf16> to vector<2x8x8xbf16>
    %99 = tpu.concatenate %95, %96, %97, %98 in 0 : vector<2x8x8xbf16>, vector<2x8x8xbf16>, vector<2x8x8xbf16>, vector<2x8x8xbf16> -> vector<8x8x8xbf16>
    %100 = vector.shape_cast %92 : vector<20x32xbf16> to vector<2x10x32xbf16>
    %101 = vector.extract_strided_slice %100 {offsets = [0, 0, 0], sizes = [2, 10, 8], strides = [1, 1, 1]} : vector<2x10x32xbf16> to vector<2x10x8xbf16>
    %102 = vector.extract_strided_slice %100 {offsets = [0, 0, 8], sizes = [2, 10, 8], strides = [1, 1, 1]} : vector<2x10x32xbf16> to vector<2x10x8xbf16>
    %103 = vector.extract_strided_slice %100 {offsets = [0, 0, 16], sizes = [2, 10, 8], strides = [1, 1, 1]} : vector<2x10x32xbf16> to vector<2x10x8xbf16>
    %104 = vector.extract_strided_slice %100 {offsets = [0, 0, 24], sizes = [2, 10, 8], strides = [1, 1, 1]} : vector<2x10x32xbf16> to vector<2x10x8xbf16>
    %105 = tpu.concatenate %101, %102, %103, %104 in 0 : vector<2x10x8xbf16>, vector<2x10x8xbf16>, vector<2x10x8xbf16>, vector<2x10x8xbf16> -> vector<8x10x8xbf16>
    %106 = vector.shape_cast %93 : vector<20x32xbf16> to vector<2x10x32xbf16>
    %107 = vector.extract_strided_slice %106 {offsets = [0, 0, 0], sizes = [2, 10, 8], strides = [1, 1, 1]} : vector<2x10x32xbf16> to vector<2x10x8xbf16>
    %108 = vector.extract_strided_slice %106 {offsets = [0, 0, 8], sizes = [2, 10, 8], strides = [1, 1, 1]} : vector<2x10x32xbf16> to vector<2x10x8xbf16>
    %109 = vector.extract_strided_slice %106 {offsets = [0, 0, 16], sizes = [2, 10, 8], strides = [1, 1, 1]} : vector<2x10x32xbf16> to vector<2x10x8xbf16>
    %110 = vector.extract_strided_slice %106 {offsets = [0, 0, 24], sizes = [2, 10, 8], strides = [1, 1, 1]} : vector<2x10x32xbf16> to vector<2x10x8xbf16>
    %111 = tpu.concatenate %107, %108, %109, %110 in 0 : vector<2x10x8xbf16>, vector<2x10x8xbf16>, vector<2x10x8xbf16>, vector<2x10x8xbf16> -> vector<8x10x8xbf16>
    "tpu.trace_start"() <{level = 10 : i32, message = "bqd,bkd->bqk"}> : () -> ()
    %cst_35 = arith.constant dense<0.000000e+00> : vector<8x8x10xf32>
    %112 = tpu.matmul %99, %105, %cst_35 {dimension_numbers = #tpu.dot_dimension_numbers<[2], [2], [1], [1], [0, 0, 0, 1, 1, 1], [0], [0]>} : vector<8x8x8xbf16>, vector<8x10x8xbf16>, vector<8x8x10xf32> -> vector<8x8x10xf32>
    "tpu.trace_stop"() : () -> ()
    %cst_36 = arith.constant dense<0xFF800000> : vector<8x8xf32>
    %113 = vector.multi_reduction <maximumf>, %112, %cst_36 [2] : vector<8x8x10xf32> to vector<8x8xf32>
    %114 = vector.shape_cast %113 : vector<8x8xf32> to vector<8x8x1xf32>
    %115 = vector.broadcast %114 : vector<8x8x1xf32> to vector<8x8x10xf32>
    %116 = arith.subf %112, %115 : vector<8x8x10xf32>
    %117 = math.exp %116 : vector<8x8x10xf32>
    %cst_37 = arith.constant dense<0.000000e+00> : vector<8x8xf32>
    %118 = vector.multi_reduction <add>, %117, %cst_37 [2] : vector<8x8x10xf32> to vector<8x8xf32>
    %119 = vector.shape_cast %118 : vector<8x8xf32> to vector<8x8x1xf32>
    %120 = tpu.reciprocal %119 {approx = true} : vector<8x8x1xf32> -> vector<8x8x1xf32>
    %121 = vector.broadcast %120 : vector<8x8x1xf32> to vector<8x8x10xf32>
    %122 = arith.mulf %117, %121 : vector<8x8x10xf32>
    %123 = arith.truncf %122 : vector<8x8x10xf32> to vector<8x8x10xbf16>
    "tpu.trace_start"() <{level = 10 : i32, message = "bqk,bkd->bqd"}> : () -> ()
    %cst_38 = arith.constant dense<0.000000e+00> : vector<8x8x8xf32>
    %124 = tpu.matmul %123, %111, %cst_38 {dimension_numbers = #tpu.dot_dimension_numbers<[2], [1], [1], [2], [0, 0, 0, 1, 1, 2], [0], [0]>} : vector<8x8x10xbf16>, vector<8x10x8xbf16>, vector<8x8x8xf32> -> vector<8x8x8xf32>
    "tpu.trace_stop"() : () -> ()
    %125 = arith.truncf %124 : vector<8x8x8xf32> to vector<8x8x8xbf16>
    %126 = vector.extract_strided_slice %125 {offsets = [0, 0, 0], sizes = [2, 8, 8], strides = [1, 1, 1]} : vector<8x8x8xbf16> to vector<2x8x8xbf16>
    %127 = vector.extract_strided_slice %125 {offsets = [2, 0, 0], sizes = [2, 8, 8], strides = [1, 1, 1]} : vector<8x8x8xbf16> to vector<2x8x8xbf16>
    %128 = vector.extract_strided_slice %125 {offsets = [4, 0, 0], sizes = [2, 8, 8], strides = [1, 1, 1]} : vector<8x8x8xbf16> to vector<2x8x8xbf16>
    %129 = vector.extract_strided_slice %125 {offsets = [6, 0, 0], sizes = [2, 8, 8], strides = [1, 1, 1]} : vector<8x8x8xbf16> to vector<2x8x8xbf16>
    %130 = tpu.concatenate %126, %127, %128, %129 in 2 : vector<2x8x8xbf16>, vector<2x8x8xbf16>, vector<2x8x8xbf16>, vector<2x8x8xbf16> -> vector<2x8x32xbf16>
    %131 = vector.shape_cast %130 : vector<2x8x32xbf16> to vector<16x32xbf16>
    %c0_39 = arith.constant 0 : index
    %c0_40 = arith.constant 0 : index
    %132 = vector.load %arg13[%c0_39, %c0_40] : memref<32x32xbf16, #tpu.memory_space<vmem>>, vector<32x32xbf16>
    %cst_41 = arith.constant dense<0.000000e+00> : vector<16x32xf32>
    %133 = tpu.matmul %131, %132, %cst_41 {dimension_numbers = #tpu.dot_dimension_numbers<[1], [0], [0], [1], [0, 0, 1, 1], [], []>} : vector<16x32xbf16>, vector<32x32xbf16>, vector<16x32xf32> -> vector<16x32xf32>
    %c0_42 = arith.constant 0 : index
    %c0_43 = arith.constant 0 : index
    %134 = vector.load %arg14[%c0_42, %c0_43] : memref<1x32xf32, #tpu.memory_space<vmem>>, vector<1x32xf32>
    %135 = vector.broadcast %134 : vector<1x32xf32> to vector<16x32xf32>
    %136 = arith.addf %133, %135 : vector<16x32xf32>
    %137 = arith.addf %77, %136 : vector<16x32xf32>
    %cst_44 = arith.constant dense<0.000000e+00> : vector<16xf32>
    %138 = vector.multi_reduction <add>, %137, %cst_44 [1] : vector<16x32xf32> to vector<16xf32>
    %139 = vector.shape_cast %138 : vector<16xf32> to vector<16x1xf32>
    %cst_45 = arith.constant 3.200000e+01 : f32
    %140 = vector.broadcast %cst_45 : f32 to vector<16x1xf32>
    %141 = arith.divf %139, %140 : vector<16x1xf32>
    %142 = vector.broadcast %141 : vector<16x1xf32> to vector<16x32xf32>
    %143 = arith.subf %137, %142 : vector<16x32xf32>
    %144 = arith.mulf %143, %143 : vector<16x32xf32>
    %cst_46 = arith.constant dense<0.000000e+00> : vector<16xf32>
    %145 = vector.multi_reduction <add>, %144, %cst_46 [1] : vector<16x32xf32> to vector<16xf32>
    %146 = vector.shape_cast %145 : vector<16xf32> to vector<16x1xf32>
    %cst_47 = arith.constant 3.200000e+01 : f32
    %147 = vector.broadcast %cst_47 : f32 to vector<16x1xf32>
    %148 = arith.divf %146, %147 : vector<16x1xf32>
    %cst_48 = arith.constant 9.99999974E-6 : f32
    %149 = vector.broadcast %cst_48 : f32 to vector<16x1xf32>
    %150 = arith.addf %148, %149 : vector<16x1xf32>
    %151 = math.rsqrt %150 : vector<16x1xf32>
    %152 = vector.broadcast %151 : vector<16x1xf32> to vector<16x32xf32>
    %153 = arith.mulf %143, %152 : vector<16x32xf32>
    %c0_49 = arith.constant 0 : index
    %c0_50 = arith.constant 0 : index
    %154 = vector.load %arg15[%c0_49, %c0_50] : memref<1x32xf32, #tpu.memory_space<vmem>>, vector<1x32xf32>
    %155 = vector.broadcast %154 : vector<1x32xf32> to vector<16x32xf32>
    %156 = arith.mulf %153, %155 : vector<16x32xf32>
    %c0_51 = arith.constant 0 : index
    %c0_52 = arith.constant 0 : index
    %157 = vector.load %arg16[%c0_51, %c0_52] : memref<1x32xf32, #tpu.memory_space<vmem>>, vector<1x32xf32>
    %158 = vector.broadcast %157 : vector<1x32xf32> to vector<16x32xf32>
    %159 = arith.addf %156, %158 : vector<16x32xf32>
    %160 = arith.truncf %159 : vector<16x32xf32> to vector<16x32xbf16>
    %c0_53 = arith.constant 0 : index
    %c0_54 = arith.constant 0 : index
    %161 = vector.load %arg17[%c0_53, %c0_54] : memref<32x64xbf16, #tpu.memory_space<vmem>>, vector<32x64xbf16>
    %cst_55 = arith.constant dense<0.000000e+00> : vector<16x64xf32>
    %162 = tpu.matmul %160, %161, %cst_55 {dimension_numbers = #tpu.dot_dimension_numbers<[1], [0], [0], [1], [0, 0, 1, 1], [], []>} : vector<16x32xbf16>, vector<32x64xbf16>, vector<16x64xf32> -> vector<16x64xf32>
    %c0_56 = arith.constant 0 : index
    %c0_57 = arith.constant 0 : index
    %163 = vector.load %arg18[%c0_56, %c0_57] : memref<1x64xf32, #tpu.memory_space<vmem>>, vector<1x64xf32>
    %164 = vector.broadcast %163 : vector<1x64xf32> to vector<16x64xf32>
    %165 = arith.addf %162, %164 : vector<16x64xf32>
    %cst_58 = arith.constant 0.000000e+00 : f32
    %166 = vector.broadcast %cst_58 : f32 to vector<16x64xf32>
    %167 = arith.maximumf %165, %166 : vector<16x64xf32>
    %168 = arith.truncf %167 : vector<16x64xf32> to vector<16x64xbf16>
    %c0_59 = arith.constant 0 : index
    %c0_60 = arith.constant 0 : index
    %169 = vector.load %arg19[%c0_59, %c0_60] : memref<64x32xbf16, #tpu.memory_space<vmem>>, vector<64x32xbf16>
    %cst_61 = arith.constant dense<0.000000e+00> : vector<16x32xf32>
    %170 = tpu.matmul %168, %169, %cst_61 {dimension_numbers = #tpu.dot_dimension_numbers<[1], [0], [0], [1], [0, 0, 1, 1], [], []>} : vector<16x64xbf16>, vector<64x32xbf16>, vector<16x32xf32> -> vector<16x32xf32>
    %c0_62 = arith.constant 0 : index
    %c0_63 = arith.constant 0 : index
    %171 = vector.load %arg20[%c0_62, %c0_63] : memref<1x32xf32, #tpu.memory_space<vmem>>, vector<1x32xf32>
    %172 = vector.broadcast %171 : vector<1x32xf32> to vector<16x32xf32>
    %173 = arith.addf %170, %172 : vector<16x32xf32>
    %174 = arith.addf %159, %173 : vector<16x32xf32>
    %cst_64 = arith.constant dense<0.000000e+00> : vector<16xf32>
    %175 = vector.multi_reduction <add>, %174, %cst_64 [1] : vector<16x32xf32> to vector<16xf32>
    %176 = vector.shape_cast %175 : vector<16xf32> to vector<16x1xf32>
    %cst_65 = arith.constant 3.200000e+01 : f32
    %177 = vector.broadcast %cst_65 : f32 to vector<16x1xf32>
    %178 = arith.divf %176, %177 : vector<16x1xf32>
    %179 = vector.broadcast %178 : vector<16x1xf32> to vector<16x32xf32>
    %180 = arith.subf %174, %179 : vector<16x32xf32>
    %181 = arith.mulf %180, %180 : vector<16x32xf32>
    %cst_66 = arith.constant dense<0.000000e+00> : vector<16xf32>
    %182 = vector.multi_reduction <add>, %181, %cst_66 [1] : vector<16x32xf32> to vector<16xf32>
    %183 = vector.shape_cast %182 : vector<16xf32> to vector<16x1xf32>
    %cst_67 = arith.constant 3.200000e+01 : f32
    %184 = vector.broadcast %cst_67 : f32 to vector<16x1xf32>
    %185 = arith.divf %183, %184 : vector<16x1xf32>
    %cst_68 = arith.constant 9.99999974E-6 : f32
    %186 = vector.broadcast %cst_68 : f32 to vector<16x1xf32>
    %187 = arith.addf %185, %186 : vector<16x1xf32>
    %188 = math.rsqrt %187 : vector<16x1xf32>
    %189 = vector.broadcast %188 : vector<16x1xf32> to vector<16x32xf32>
    %190 = arith.mulf %180, %189 : vector<16x32xf32>
    %c0_69 = arith.constant 0 : index
    %c0_70 = arith.constant 0 : index
    %191 = vector.load %arg21[%c0_69, %c0_70] : memref<1x32xf32, #tpu.memory_space<vmem>>, vector<1x32xf32>
    %192 = vector.broadcast %191 : vector<1x32xf32> to vector<16x32xf32>
    %193 = arith.mulf %190, %192 : vector<16x32xf32>
    %c0_71 = arith.constant 0 : index
    %c0_72 = arith.constant 0 : index
    %194 = vector.load %arg22[%c0_71, %c0_72] : memref<1x32xf32, #tpu.memory_space<vmem>>, vector<1x32xf32>
    %195 = vector.broadcast %194 : vector<1x32xf32> to vector<16x32xf32>
    %196 = arith.addf %193, %195 : vector<16x32xf32>
    %c0_73 = arith.constant 0 : index
    %c0_74 = arith.constant 0 : index
    %197 = vector.load %arg23[%c0_73, %c0_74] : memref<16x32xf32, #tpu.memory_space<vmem>>, vector<16x32xf32>
    tpu.vector_store %arg23[%c0_73, %c0_74], %196 {strides = array<i32>} : memref<16x32xf32, #tpu.memory_space<vmem>>, vector<16x32xf32>,
    return
  }
  func.func @transform_0(%arg0: i32) -> (i32, i32) {
    %c0_i32 = arith.constant 0 : i32
    %c0_i32_0 = arith.constant 0 : i32
    return %arg0, %c0_i32 : i32, i32
  }
  func.func @transform_1(%arg0: i32) -> (i32, i32) {
    %c0_i32 = arith.constant 0 : i32
    %c0_i32_0 = arith.constant 0 : i32
    return %arg0, %c0_i32 : i32, i32
  }
  func.func @transform_2(%arg0: i32) -> (i32, i32) {
    %c0_i32 = arith.constant 0 : i32
    %c0_i32_0 = arith.constant 0 : i32
    %c0_i32_1 = arith.constant 0 : i32
    return %c0_i32, %c0_i32_0 : i32, i32
  }
  func.func @transform_3(%arg0: i32) -> (i32, i32) {
    %c0_i32 = arith.constant 0 : i32
    %c0_i32_0 = arith.constant 0 : i32
    %c0_i32_1 = arith.constant 0 : i32
    return %c0_i32, %c0_i32_0 : i32, i32
  }
  func.func @transform_4(%arg0: i32) -> (i32, i32) {
    %c0_i32 = arith.constant 0 : i32
    %c0_i32_0 = arith.constant 0 : i32
    %c0_i32_1 = arith.constant 0 : i32
    return %c0_i32, %c0_i32_0 : i32, i32
  }
  func.func @transform_5(%arg0: i32) -> (i32, i32) {
    %c0_i32 = arith.constant 0 : i32
    %c0_i32_0 = arith.constant 0 : i32
    %c0_i32_1 = arith.constant 0 : i32
    return %c0_i32, %c0_i32_0 : i32, i32
  }
  func.func @transform_6(%arg0: i32) -> (i32, i32) {
    %c0_i32 = arith.constant 0 : i32
    %c0_i32_0 = arith.constant 0 : i32
    %c0_i32_1 = arith.constant 0 : i32
    return %c0_i32, %c0_i32_0 : i32, i32
  }
  func.func @transform_7(%arg0: i32) -> (i32, i32) {
    %c0_i32 = arith.constant 0 : i32
    %c0_i32_0 = arith.constant 0 : i32
    %c0_i32_1 = arith.constant 0 : i32
    return %c0_i32, %c0_i32_0 : i32, i32
  }
  func.func @transform_8(%arg0: i32) -> (i32, i32) {
    %c0_i32 = arith.constant 0 : i32
    %c0_i32_0 = arith.constant 0 : i32
    %c0_i32_1 = arith.constant 0 : i32
    return %c0_i32, %c0_i32_0 : i32, i32
  }
  func.func @transform_9(%arg0: i32) -> (i32, i32) {
    %c0_i32 = arith.constant 0 : i32
    %c0_i32_0 = arith.constant 0 : i32
    %c0_i32_1 = arith.constant 0 : i32
    return %c0_i32, %c0_i32_0 : i32, i32
  }
  func.func @transform_10(%arg0: i32) -> (i32, i32) {
    %c0_i32 = arith.constant 0 : i32
    %c0_i32_0 = arith.constant 0 : i32
    %c0_i32_1 = arith.constant 0 : i32
    return %c0_i32, %c0_i32_0 : i32, i32
  }
  func.func @transform_11(%arg0: i32) -> (i32, i32) {
    %c0_i32 = arith.constant 0 : i32
    %c0_i32_0 = arith.constant 0 : i32
    %c0_i32_1 = arith.constant 0 : i32
    return %c0_i32, %c0_i32_0 : i32, i32
  }
  func.func @transform_12(%arg0: i32) -> (i32, i32) {
    %c0_i32 = arith.constant 0 : i32
    %c0_i32_0 = arith.constant 0 : i32
    %c0_i32_1 = arith.constant 0 : i32
    return %c0_i32, %c0_i32_0 : i32, i32
  }
  func.func @transform_13(%arg0: i32) -> (i32, i32) {
    %c0_i32 = arith.constant 0 : i32
    %c0_i32_0 = arith.constant 0 : i32
    %c0_i32_1 = arith.constant 0 : i32
    return %c0_i32, %c0_i32_0 : i32, i32
  }
  func.func @transform_14(%arg0: i32) -> (i32, i32) {
    %c0_i32 = arith.constant 0 : i32
    %c0_i32_0 = arith.constant 0 : i32
    %c0_i32_1 = arith.constant 0 : i32
    return %c0_i32, %c0_i32_0 : i32, i32
  }
  func.func @transform_15(%arg0: i32) -> (i32, i32) {
    %c0_i32 = arith.constant 0 : i32
    %c0_i32_0 = arith.constant 0 : i32
    %c0_i32_1 = arith.constant 0 : i32
    return %c0_i32, %c0_i32_0 : i32, i32
  }
  func.func @transform_16(%arg0: i32) -> (i32, i32) {
    %c0_i32 = arith.constant 0 : i32
    %c0_i32_0 = arith.constant 0 : i32
    %c0_i32_1 = arith.constant 0 : i32
    return %c0_i32, %c0_i32_0 : i32, i32
  }
  func.func @transform_17(%arg0: i32) -> (i32, i32) {
    %c0_i32 = arith.constant 0 : i32
    %c0_i32_0 = arith.constant 0 : i32
    %c0_i32_1 = arith.constant 0 : i32
    return %c0_i32, %c0_i32_0 : i32, i32
  }
  func.func @transform_18(%arg0: i32) -> (i32, i32) {
    %c0_i32 = arith.constant 0 : i32
    %c0_i32_0 = arith.constant 0 : i32
    %c0_i32_1 = arith.constant 0 : i32
    return %c0_i32, %c0_i32_0 : i32, i32
  }
  func.func @transform_19(%arg0: i32) -> (i32, i32) {
    %c0_i32 = arith.constant 0 : i32
    %c0_i32_0 = arith.constant 0 : i32
    %c0_i32_1 = arith.constant 0 : i32
    return %c0_i32, %c0_i32_0 : i32, i32
  }
  func.func @transform_20(%arg0: i32) -> (i32, i32) {
    %c0_i32 = arith.constant 0 : i32
    %c0_i32_0 = arith.constant 0 : i32
    %c0_i32_1 = arith.constant 0 : i32
    return %c0_i32, %c0_i32_0 : i32, i32
  }
  func.func @transform_21(%arg0: i32) -> (i32, i32) {
    %c0_i32 = arith.constant 0 : i32
    %c0_i32_0 = arith.constant 0 : i32
    %c0_i32_1 = arith.constant 0 : i32
    return %c0_i32, %c0_i32_0 : i32, i32
  }
  func.func @transform_22(%arg0: i32) -> (i32, i32) {
    %c0_i32 = arith.constant 0 : i32
    %c0_i32_0 = arith.constant 0 : i32
    return %arg0, %c0_i32 : i32, i32
  }
}

</mosaic_0001>

<llo_original>
// kernel: decoder_layer_forward.1
$region0: #{decoder_layer_forward.1}
  #allocation0 [shape = 'u32[]', space=smem, size = 0x4, offset = 0x4, fixed_abs, tag = 'smem constant byte address 0x4 - core index']
  #allocation1 [shape = 'u32[144,128]{1,0:T(1,128)}', space=vmem, size = 0x12000, scoped, tag = 'internal scratch']
  %s0 = inlined_call_operand.vmem [shape: f32[16,32], index: 0, kind: input, shape index: {}]
  %s1 = inlined_call_operand.vmem [shape: f32[20,32], index: 1, kind: input, shape index: {}]
  %s2 = inlined_call_operand.vmem [shape: bf16[32,96], index: 2, kind: input, shape index: {}]
  %s3 = inlined_call_operand.vmem [shape: f32[1,96], index: 3, kind: input, shape index: {}]
  %s4 = inlined_call_operand.vmem [shape: bf16[32,32], index: 4, kind: input, shape index: {}]
  %s5 = inlined_call_operand.vmem [shape: f32[1,32], index: 5, kind: input, shape index: {}]
  %s6 = inlined_call_operand.vmem [shape: f32[1,32], index: 6, kind: input, shape index: {}]
  %s7 = inlined_call_operand.vmem [shape: f32[1,32], index: 7, kind: input, shape index: {}]
  %s8 = inlined_call_operand.vmem [shape: bf16[32,32], index: 8, kind: input, shape index: {}]
  %s9 = inlined_call_operand.vmem [shape: f32[1,32], index: 9, kind: input, shape index: {}]
  %s10 = inlined_call_operand.vmem [shape: bf16[32,64], index: 10, kind: input, shape index: {}]
  %s11 = inlined_call_operand.vmem [shape: f32[1,64], index: 11, kind: input, shape index: {}]
  %s12 = inlined_call_operand.vmem [shape: bf16[32,32], index: 12, kind: input, shape index: {}]
  %s13 = inlined_call_operand.vmem [shape: f32[1,32], index: 13, kind: input, shape index: {}]
  %s14 = inlined_call_operand.vmem [shape: f32[1,32], index: 14, kind: input, shape index: {}]
  %s15 = inlined_call_operand.vmem [shape: f32[1,32], index: 15, kind: input, shape index: {}]
  %s16 = inlined_call_operand.vmem [shape: bf16[32,64], index: 16, kind: input, shape index: {}]
  %s17 = inlined_call_operand.vmem [shape: f32[1,64], index: 17, kind: input, shape index: {}]
  %s18 = inlined_call_operand.vmem [shape: bf16[64,32], index: 18, kind: input, shape index: {}]
  %s19 = inlined_call_operand.vmem [shape: f32[1,32], index: 19, kind: input, shape index: {}]
  %s20 = inlined_call_operand.vmem [shape: f32[1,32], index: 20, kind: input, shape index: {}]
  %s21 = inlined_call_operand.vmem [shape: f32[1,32], index: 21, kind: input, shape index: {}]
  %s22 = inlined_call_operand.vmem [shape: f32[16,32], index: 22, kind: output, shape index: {}]
  %s23 = sld [smem:[#allocation0]]
  $region98: #{decoder_layer_forward.1} parent=0
    _
  %s25 = ssub.s32 1, %s23
  %s26 = scalar_select 0, %s25, %s23
  // Predicated region
  $region2: #{decoder_layer_forward.1} parent=0 // pred_check
    _
  $region3: #{decoder_layer_forward.1} parent=0 // pred_check_branch
    %28 = sbr.rel (0) target = $region5
  $region4: #{decoder_layer_forward.1} parent=0 // pred_region
    _
  $region5: #{decoder_layer_forward.1} parent=0 // pred_fallthru
    _
  // Predicated region
  $region6: #{decoder_layer_forward.1} parent=0 // pred_check
    _
  $region7: #{decoder_layer_forward.1} parent=0 // pred_check_branch
    %30 = sbr.rel (0) target = $region9
  $region8: #{decoder_layer_forward.1} parent=0 // pred_region
    _
  $region9: #{decoder_layer_forward.1} parent=0 // pred_fallthru
    _
  // Predicated region
  $region10: #{decoder_layer_forward.1} parent=0 // pred_check
    _
  $region11: #{decoder_layer_forward.1} parent=0 // pred_check_branch
    %32 = sbr.rel (0) target = $region13
  $region12: #{decoder_layer_forward.1} parent=0 // pred_region
    _
  $region13: #{decoder_layer_forward.1} parent=0 // pred_fallthru
    _
  // Predicated region
  $region14: #{decoder_layer_forward.1} parent=0 // pred_check
    _
  $region15: #{decoder_layer_forward.1} parent=0 // pred_check_branch
    %34 = sbr.rel (0) target = $region17
  $region16: #{decoder_layer_forward.1} parent=0 // pred_region
    _
  $region17: #{decoder_layer_forward.1} parent=0 // pred_fallthru
    _
  // Predicated region
  $region18: #{decoder_layer_forward.1} parent=0 // pred_check
    _
  $region19: #{decoder_layer_forward.1} parent=0 // pred_check_branch
    %36 = sbr.rel (0) target = $region21
  $region20: #{decoder_layer_forward.1} parent=0 // pred_region
    _
  $region21: #{decoder_layer_forward.1} parent=0 // pred_fallthru
    _
  // Predicated region
  $region22: #{decoder_layer_forward.1} parent=0 // pred_check
    _
  $region23: #{decoder_layer_forward.1} parent=0 // pred_check_branch
    %38 = sbr.rel (0) target = $region25
  $region24: #{decoder_layer_forward.1} parent=0 // pred_region
    _
  $region25: #{decoder_layer_forward.1} parent=0 // pred_fallthru
    _
  // Predicated region
  $region26: #{decoder_layer_forward.1} parent=0 // pred_check
    _
  $region27: #{decoder_layer_forward.1} parent=0 // pred_check_branch
    %40 = sbr.rel (0) target = $region29
  $region28: #{decoder_layer_forward.1} parent=0 // pred_region
    _
  $region29: #{decoder_layer_forward.1} parent=0 // pred_fallthru
    _
  // Predicated region
  $region30: #{decoder_layer_forward.1} parent=0 // pred_check
    _
  $region31: #{decoder_layer_forward.1} parent=0 // pred_check_branch
    %42 = sbr.rel (0) target = $region33
  $region32: #{decoder_layer_forward.1} parent=0 // pred_region
    _
  $region33: #{decoder_layer_forward.1} parent=0 // pred_fallthru
    _
  // Predicated region
  $region34: #{decoder_layer_forward.1} parent=0 // pred_check
    _
  $region35: #{decoder_layer_forward.1} parent=0 // pred_check_branch
    %44 = sbr.rel (0) target = $region37
  $region36: #{decoder_layer_forward.1} parent=0 // pred_region
    _
  $region37: #{decoder_layer_forward.1} parent=0 // pred_fallthru
    _
  // Predicated region
  $region38: #{decoder_layer_forward.1} parent=0 // pred_check
    _
  $region39: #{decoder_layer_forward.1} parent=0 // pred_check_branch
    %46 = sbr.rel (0) target = $region41
  $region40: #{decoder_layer_forward.1} parent=0 // pred_region
    _
  $region41: #{decoder_layer_forward.1} parent=0 // pred_fallthru
    _
  // Predicated region
  $region42: #{decoder_layer_forward.1} parent=0 // pred_check
    _
  $region43: #{decoder_layer_forward.1} parent=0 // pred_check_branch
    %48 = sbr.rel (0) target = $region45
  $region44: #{decoder_layer_forward.1} parent=0 // pred_region
    _
  $region45: #{decoder_layer_forward.1} parent=0 // pred_fallthru
    _
  // Predicated region
  $region46: #{decoder_layer_forward.1} parent=0 // pred_check
    _
  $region47: #{decoder_layer_forward.1} parent=0 // pred_check_branch
    %50 = sbr.rel (0) target = $region49
  $region48: #{decoder_layer_forward.1} parent=0 // pred_region
    _
  $region49: #{decoder_layer_forward.1} parent=0 // pred_fallthru
    _
  // Predicated region
  $region50: #{decoder_layer_forward.1} parent=0 // pred_check
    _
  $region51: #{decoder_layer_forward.1} parent=0 // pred_check_branch
    %52 = sbr.rel (0) target = $region53
  $region52: #{decoder_layer_forward.1} parent=0 // pred_region
    _
  $region53: #{decoder_layer_forward.1} parent=0 // pred_fallthru
    _
  // Predicated region
  $region54: #{decoder_layer_forward.1} parent=0 // pred_check
    _
  $region55: #{decoder_layer_forward.1} parent=0 // pred_check_branch
    %54 = sbr.rel (0) target = $region57
  $region56: #{decoder_layer_forward.1} parent=0 // pred_region
    _
  $region57: #{decoder_layer_forward.1} parent=0 // pred_fallthru
    _
  // Predicated region
  $region58: #{decoder_layer_forward.1} parent=0 // pred_check
    _
  $region59: #{decoder_layer_forward.1} parent=0 // pred_check_branch
    %56 = sbr.rel (0) target = $region61
  $region60: #{decoder_layer_forward.1} parent=0 // pred_region
    _
  $region61: #{decoder_layer_forward.1} parent=0 // pred_fallthru
    _
  // Predicated region
  $region62: #{decoder_layer_forward.1} parent=0 // pred_check
    _
  $region63: #{decoder_layer_forward.1} parent=0 // pred_check_branch
    %58 = sbr.rel (0) target = $region65
  $region64: #{decoder_layer_forward.1} parent=0 // pred_region
    _
  $region65: #{decoder_layer_forward.1} parent=0 // pred_fallthru
    _
  // Predicated region
  $region66: #{decoder_layer_forward.1} parent=0 // pred_check
    _
  $region67: #{decoder_layer_forward.1} parent=0 // pred_check_branch
    %60 = sbr.rel (0) target = $region69
  $region68: #{decoder_layer_forward.1} parent=0 // pred_region
    _
  $region69: #{decoder_layer_forward.1} parent=0 // pred_fallthru
    _
  // Predicated region
  $region70: #{decoder_layer_forward.1} parent=0 // pred_check
    _
  $region71: #{decoder_layer_forward.1} parent=0 // pred_check_branch
    %62 = sbr.rel (0) target = $region73
  $region72: #{decoder_layer_forward.1} parent=0 // pred_region
    _
  $region73: #{decoder_layer_forward.1} parent=0 // pred_fallthru
    _
  // Predicated region
  $region74: #{decoder_layer_forward.1} parent=0 // pred_check
    _
  $region75: #{decoder_layer_forward.1} parent=0 // pred_check_branch
    %64 = sbr.rel (0) target = $region77
  $region76: #{decoder_layer_forward.1} parent=0 // pred_region
    _
  $region77: #{decoder_layer_forward.1} parent=0 // pred_fallthru
    _
  // Predicated region
  $region78: #{decoder_layer_forward.1} parent=0 // pred_check
    _
  $region79: #{decoder_layer_forward.1} parent=0 // pred_check_branch
    %66 = sbr.rel (0) target = $region81
  $region80: #{decoder_layer_forward.1} parent=0 // pred_region
    _
  $region81: #{decoder_layer_forward.1} parent=0 // pred_fallthru
    _
  // Predicated region
  $region82: #{decoder_layer_forward.1} parent=0 // pred_check
    _
  $region83: #{decoder_layer_forward.1} parent=0 // pred_check_branch
    %68 = sbr.rel (0) target = $region85
  $region84: #{decoder_layer_forward.1} parent=0 // pred_region
    _
  $region85: #{decoder_layer_forward.1} parent=0 // pred_fallthru
    _
  // Predicated region
  $region86: #{decoder_layer_forward.1} parent=0 // pred_check
    _
  $region87: #{decoder_layer_forward.1} parent=0 // pred_check_branch
    %70 = sbr.rel (0) target = $region89
  $region88: #{decoder_layer_forward.1} parent=0 // pred_region
    _
  $region89: #{decoder_layer_forward.1} parent=0 // pred_fallthru
    _
  %v72 = vld [vmem:[%s0] sm:$0xff]
  %v73 = vld [vmem:[%s0 + $0x8] sm:$0xff]
  %v74 = vld [vmem:[%s1] sm:$0xff]
  %v75 = vld [vmem:[%s1 + $0x8] sm:$0xff]
  %v76 = vld [vmem:[%s1 + $0x10] sm:$0xf]
  %v77 = vpack.c.bf16 %v73, %v72
  %v78 = vld [vmem:[%s2] sm:$0xf]
  %v79 = vld [vmem:[%s2 + $0x4] sm:$0xf]
  %v80 = vld [vmem:[%s2 + $0x8] sm:$0xf]
  %v81 = vld [vmem:[%s2 + $0xc] sm:$0xf]
  %v82 = vld [vmem:[%s3] sm:$0x1]
  %v84 = vlaneseq
  %v85 = vshrl.u32 %v84, 7
  %v86 = vsub.s32 0, %v85
  %v87 = vrot.slane %v82, %v86
  %v93 = vunpack.c.l.b16 %v78
  %v94 = vunpack.c.l.b16 %v79
  %v95 = vunpack.c.l.b16 %v80
  %v96 = vunpack.c.l.b16 %v81
  %v97 = vpack.c.b16 %v94, %v93
  %v98 = vpack.c.b16 %v96, %v95
  %vm101 = vcmask 261120
  %v103 = vsel %vm101, %v77, 0
  %105 = vmatprep.subr.bf16.mxu0 0
  %106 = vmatpush1.bf16.msra.mxu0 0
  %107 = vmatprep.subr.bf16.mxu0 0
  %108 = vmatpush1.bf16.msra.mxu0 0
  %109 = vmatprep.subr.bf16.mxu0 0
  %110 = vmatpush1.bf16.msra.mxu0 0
  %111 = vmatprep.subr.bf16.mxu0 0
  %112 = vmatpush1.bf16.msra.mxu0 0
  %113 = vmatprep.subr.bf16.mxu0 0
  %114 = vmatpush1.bf16.msra.mxu0 0
  %115 = vmatprep.subr.bf16.mxu0 0
  %116 = vmatpush1.bf16.msra.mxu0 0
  %117 = vmatprep.subr.bf16.mxu0 0
  %118 = vmatpush1.bf16.msra.mxu0 %v98
  %119 = vmatprep.subr.bf16.mxu0 0
  %120 = vmatpush1.bf16.msra.mxu0 %v97
  %121 = vmatprep.subr.bf16.mxu0 0
  %122 = vmatpush2.bf16.msra.mxu0 0
  %123 = vmatprep.subr.bf16.mxu0 0
  %124 = vmatpush2.bf16.msra.mxu0 0
  %125 = vmatprep.subr.bf16.mxu0 0
  %126 = vmatpush2.bf16.msra.mxu0 0
  %127 = vmatprep.subr.bf16.mxu0 0
  %128 = vmatpush2.bf16.msra.mxu0 0
  %129 = vmatprep.subr.bf16.mxu0 0
  %130 = vmatpush2.bf16.msra.mxu0 0
  %131 = vmatprep.subr.bf16.mxu0 0
  %132 = vmatpush2.bf16.msra.mxu0 0
  %133 = vmatprep.subr.bf16.mxu0 0
  %134 = vmatpush2.bf16.msra.mxu0 0
  %135 = vmatprep.subr.bf16.mxu0 0
  %136 = vmatpush2.bf16.msra.mxu0 0
  %137 = vmatprep.mubr.bf16.mxu0 0
  %138 = vmatmul.mubr.bf16.gmra.mxu0 %v103
  %v139 = vpop.f32.mrf.mxu0
  %v140 = vadd.f32 %v87, %v139
  %v141 = vpop.f32.mrf.mxu0
  %v142 = vpop.f32.mrf.mxu0
  %v143 = vadd.f32 %v87, %v142
  %v144 = vpop.f32.mrf.mxu0
  %145 = vdwg.mxu0
  %v146 = vpack.c.bf16 %v143, %v140
  %v148 = vunpack.c.l.b16 %v146
  %v149 = vunpack.c.h.b16 %v146
  %v150 = vpack.c.b16 %v148, %v148
  %v151 = vpack.c.b16 %v149, %v149
  %152 = vrot.lane.b32.xlu0 %v150, 120
  %v153 = vpop.permute.xlu0 %152
  %154 = vrot.lane.b32.xlu0 %v151, 120
  %v155 = vpop.permute.xlu0 %154
  %156 = vrot.lane.b32.xlu0 %v150, 112
  %v157 = vpop.permute.xlu0 %156
  %158 = vrot.lane.b32.xlu0 %v151, 112
  %v159 = vpop.permute.xlu0 %158
  %160 = vrot.lane.b32.xlu0 %v150, 104
  %v161 = vpop.permute.xlu0 %160
  %162 = vrot.lane.b32.xlu0 %v151, 104
  %v163 = vpop.permute.xlu0 %162
  %164 = vrot.lane.b32.xlu0 %v150, 96
  %v165 = vpop.permute.xlu0 %164
  %vm166 = vcmask 64512
  %v168 = vsel %vm166, %v150, 0
  %v171 = vsel %vm166, %v165, 0
  %173 = vmatprep.subr.bf16.mxu0 0
  %174 = vmatpush1.bf16.xpose.msra.mxu0 0
  %175 = vmatprep.subr.bf16.mxu0 0
  %176 = vmatpush1.bf16.xpose.msra.mxu0 0
  %177 = vmatprep.subr.bf16.mxu0 0
  %178 = vmatpush1.bf16.xpose.msra.mxu0 0
  %179 = vmatprep.subr.bf16.mxu0 0
  %180 = vmatpush1.bf16.xpose.msra.mxu0 0
  %181 = vmatprep.subr.bf16.mxu0 0
  %182 = vmatpush1.bf16.xpose.msra.mxu0 0
  %183 = vmatprep.subr.bf16.mxu0 0
  %184 = vmatpush1.bf16.xpose.msra.mxu0 0
  %185 = vmatprep.subr.bf16.mxu0 0
  %186 = vmatpush1.bf16.xpose.msra.mxu0 0
  %187 = vmatprep.subr.bf16.mxu0 0
  %188 = vmatpush1.bf16.xpose.msra.mxu0 %v171
  %189 = vmatprep.subr.bf16.mxu0 0
  %190 = vmatpush2.bf16.xpose.msra.mxu0 0
  %191 = vmatprep.subr.bf16.mxu0 0
  %192 = vmatpush2.bf16.xpose.msra.mxu0 0
  %193 = vmatprep.subr.bf16.mxu0 0
  %194 = vmatpush2.bf16.xpose.msra.mxu0 0
  %195 = vmatprep.subr.bf16.mxu0 0
  %196 = vmatpush2.bf16.xpose.msra.mxu0 0
  %197 = vmatprep.subr.bf16.mxu0 0
  %198 = vmatpush2.bf16.xpose.msra.mxu0 0
  %199 = vmatprep.subr.bf16.mxu0 0
  %200 = vmatpush2.bf16.xpose.msra.mxu0 0
  %201 = vmatprep.subr.bf16.mxu0 0
  %202 = vmatpush2.bf16.xpose.msra.mxu0 0
  %203 = vmatprep.subr.bf16.mxu0 0
  %204 = vmatpush2.bf16.xpose.msra.mxu0 0
  %205 = vmatprep.mubr.bf16.mxu0 0
  %206 = vmatmul.mubr.bf16.gmra.mxu0 %v168
  %v207 = vpop.f32.mrf.mxu0
  %v208 = vadd.f32 0.0, %v207
  %v209 = vpop.f32.mrf.mxu0
  %v210 = vpop.f32.mrf.mxu0
  %v211 = vpop.f32.mrf.mxu0
  %212 = vdwg.mxu0
  %213 = vrot.lane.b32.xlu0 %v151, 96
  %v214 = vpop.permute.xlu0 %213
  %v216 = vsel %vm166, %v151, 0
  %v219 = vsel %vm166, %v214, 0
  %221 = vmatprep.subr.bf16.mxu0 0
  %222 = vmatpush1.bf16.xpose.msra.mxu0 0
  %223 = vmatprep.subr.bf16.mxu0 0
  %224 = vmatpush1.bf16.xpose.msra.mxu0 0
  %225 = vmatprep.subr.bf16.mxu0 0
  %226 = vmatpush1.bf16.xpose.msra.mxu0 0
  %227 = vmatprep.subr.bf16.mxu0 0
  %228 = vmatpush1.bf16.xpose.msra.mxu0 0
  %229 = vmatprep.subr.bf16.mxu0 0
  %230 = vmatpush1.bf16.xpose.msra.mxu0 0
  %231 = vmatprep.subr.bf16.mxu0 0
  %232 = vmatpush1.bf16.xpose.msra.mxu0 0
  %233 = vmatprep.subr.bf16.mxu0 0
  %234 = vmatpush1.bf16.xpose.msra.mxu0 0
  %235 = vmatprep.subr.bf16.mxu0 0
  %236 = vmatpush1.bf16.xpose.msra.mxu0 %v219
  %237 = vmatprep.subr.bf16.mxu0 0
  %238 = vmatpush2.bf16.xpose.msra.mxu0 0
  %239 = vmatprep.subr.bf16.mxu0 0
  %240 = vmatpush2.bf16.xpose.msra.mxu0 0
  %241 = vmatprep.subr.bf16.mxu0 0
  %242 = vmatpush2.bf16.xpose.msra.mxu0 0
  %243 = vmatprep.subr.bf16.mxu0 0
  %244 = vmatpush2.bf16.xpose.msra.mxu0 0
  %245 = vmatprep.subr.bf16.mxu0 0
  %246 = vmatpush2.bf16.xpose.msra.mxu0 0
  %247 = vmatprep.subr.bf16.mxu0 0
  %248 = vmatpush2.bf16.xpose.msra.mxu0 0
  %249 = vmatprep.subr.bf16.mxu0 0
  %250 = vmatpush2.bf16.xpose.msra.mxu0 0
  %251 = vmatprep.subr.bf16.mxu0 0
  %252 = vmatpush2.bf16.xpose.msra.mxu0 0
  %253 = vmatprep.mubr.bf16.mxu0 0
  %254 = vmatmul.mubr.bf16.gmra.mxu0 %v216
  %v255 = vpop.f32.mrf.mxu0
  %v256 = vadd.f32 0.0, %v255
  %v257 = vpop.f32.mrf.mxu0
  %v258 = vpop.f32.mrf.mxu0
  %v259 = vpop.f32.mrf.mxu0
  %260 = vdwg.mxu0
  %v261 = vunpack.c.l.b16 %v153
  %v262 = vpack.c.b16 %v261, %v261
  %263 = vrot.lane.b32.xlu0 %v262, 96
  %v264 = vpop.permute.xlu0 %263
  %v266 = vsel %vm166, %v153, 0
  %v269 = vsel %vm166, %v264, 0
  %271 = vmatprep.subr.bf16.mxu0 0
  %272 = vmatpush1.bf16.xpose.msra.mxu0 0
  %273 = vmatprep.subr.bf16.mxu0 0
  %274 = vmatpush1.bf16.xpose.msra.mxu0 0
  %275 = vmatprep.subr.bf16.mxu0 0
  %276 = vmatpush1.bf16.xpose.msra.mxu0 0
  %277 = vmatprep.subr.bf16.mxu0 0
  %278 = vmatpush1.bf16.xpose.msra.mxu0 0
  %279 = vmatprep.subr.bf16.mxu0 0
  %280 = vmatpush1.bf16.xpose.msra.mxu0 0
  %281 = vmatprep.subr.bf16.mxu0 0
  %282 = vmatpush1.bf16.xpose.msra.mxu0 0
  %283 = vmatprep.subr.bf16.mxu0 0
  %284 = vmatpush1.bf16.xpose.msra.mxu0 0
  %285 = vmatprep.subr.bf16.mxu0 0
  %286 = vmatpush1.bf16.xpose.msra.mxu0 %v269
  %287 = vmatprep.subr.bf16.mxu0 0
  %288 = vmatpush2.bf16.xpose.msra.mxu0 0
  %289 = vmatprep.subr.bf16.mxu0 0
  %290 = vmatpush2.bf16.xpose.msra.mxu0 0
  %291 = vmatprep.subr.bf16.mxu0 0
  %292 = vmatpush2.bf16.xpose.msra.mxu0 0
  %293 = vmatprep.subr.bf16.mxu0 0
  %294 = vmatpush2.bf16.xpose.msra.mxu0 0
  %295 = vmatprep.subr.bf16.mxu0 0
  %296 = vmatpush2.bf16.xpose.msra.mxu0 0
  %297 = vmatprep.subr.bf16.mxu0 0
  %298 = vmatpush2.bf16.xpose.msra.mxu0 0
  %299 = vmatprep.subr.bf16.mxu0 0
  %300 = vmatpush2.bf16.xpose.msra.mxu0 0
  %301 = vmatprep.subr.bf16.mxu0 0
  %302 = vmatpush2.bf16.xpose.msra.mxu0 0
  %303 = vmatprep.mubr.bf16.mxu0 0
  %304 = vmatmul.mubr.bf16.gmra.mxu0 %v266
  %v305 = vpop.f32.mrf.mxu0
  %v306 = vadd.f32 0.0, %v305
  %v307 = vpop.f32.mrf.mxu0
  %v308 = vpop.f32.mrf.mxu0
  %v309 = vpop.f32.mrf.mxu0
  %310 = vdwg.mxu0
  %v311 = vunpack.c.l.b16 %v155
  %v312 = vpack.c.b16 %v311, %v311
  %313 = vrot.lane.b32.xlu0 %v312, 96
  %v314 = vpop.permute.xlu0 %313
  %v316 = vsel %vm166, %v155, 0
  %v319 = vsel %vm166, %v314, 0
  %321 = vmatprep.subr.bf16.mxu0 0
  %322 = vmatpush1.bf16.xpose.msra.mxu0 0
  %323 = vmatprep.subr.bf16.mxu0 0
  %324 = vmatpush1.bf16.xpose.msra.mxu0 0
  %325 = vmatprep.subr.bf16.mxu0 0
  %326 = vmatpush1.bf16.xpose.msra.mxu0 0
  %327 = vmatprep.subr.bf16.mxu0 0
  %328 = vmatpush1.bf16.xpose.msra.mxu0 0
  %329 = vmatprep.subr.bf16.mxu0 0
  %330 = vmatpush1.bf16.xpose.msra.mxu0 0
  %331 = vmatprep.subr.bf16.mxu0 0
  %332 = vmatpush1.bf16.xpose.msra.mxu0 0
  %333 = vmatprep.subr.bf16.mxu0 0
  %334 = vmatpush1.bf16.xpose.msra.mxu0 0
  %335 = vmatprep.subr.bf16.mxu0 0
  %336 = vmatpush1.bf16.xpose.msra.mxu0 %v319
  %337 = vmatprep.subr.bf16.mxu0 0
  %338 = vmatpush2.bf16.xpose.msra.mxu0 0
  %339 = vmatprep.subr.bf16.mxu0 0
  %340 = vmatpush2.bf16.xpose.msra.mxu0 0
  %341 = vmatprep.subr.bf16.mxu0 0
  %342 = vmatpush2.bf16.xpose.msra.mxu0 0
  %343 = vmatprep.subr.bf16.mxu0 0
  %344 = vmatpush2.bf16.xpose.msra.mxu0 0
  %345 = vmatprep.subr.bf16.mxu0 0
  %346 = vmatpush2.bf16.xpose.msra.mxu0 0
  %347 = vmatprep.subr.bf16.mxu0 0
  %348 = vmatpush2.bf16.xpose.msra.mxu0 0
  %349 = vmatprep.subr.bf16.mxu0 0
  %350 = vmatpush2.bf16.xpose.msra.mxu0 0
  %351 = vmatprep.subr.bf16.mxu0 0
  %352 = vmatpush2.bf16.xpose.msra.mxu0 0
  %353 = vmatprep.mubr.bf16.mxu0 0
  %354 = vmatmul.mubr.bf16.gmra.mxu0 %v316
  %v355 = vpop.f32.mrf.mxu0
  %v356 = vadd.f32 0.0, %v355
  %v357 = vpop.f32.mrf.mxu0
  %v358 = vpop.f32.mrf.mxu0
  %v359 = vpop.f32.mrf.mxu0
  %360 = vdwg.mxu0
  %v361 = vunpack.c.l.b16 %v157
  %v362 = vpack.c.b16 %v361, %v361
  %363 = vrot.lane.b32.xlu0 %v362, 96
  %v364 = vpop.permute.xlu0 %363
  %v366 = vsel %vm166, %v157, 0
  %v369 = vsel %vm166, %v364, 0
  %371 = vmatprep.subr.bf16.mxu0 0
  %372 = vmatpush1.bf16.xpose.msra.mxu0 0
  %373 = vmatprep.subr.bf16.mxu0 0
  %374 = vmatpush1.bf16.xpose.msra.mxu0 0
  %375 = vmatprep.subr.bf16.mxu0 0
  %376 = vmatpush1.bf16.xpose.msra.mxu0 0
  %377 = vmatprep.subr.bf16.mxu0 0
  %378 = vmatpush1.bf16.xpose.msra.mxu0 0
  %379 = vmatprep.subr.bf16.mxu0 0
  %380 = vmatpush1.bf16.xpose.msra.mxu0 0
  %381 = vmatprep.subr.bf16.mxu0 0
  %382 = vmatpush1.bf16.xpose.msra.mxu0 0
  %383 = vmatprep.subr.bf16.mxu0 0
  %384 = vmatpush1.bf16.xpose.msra.mxu0 0
  %385 = vmatprep.subr.bf16.mxu0 0
  %386 = vmatpush1.bf16.xpose.msra.mxu0 %v369
  %387 = vmatprep.subr.bf16.mxu0 0
  %388 = vmatpush2.bf16.xpose.msra.mxu0 0
  %389 = vmatprep.subr.bf16.mxu0 0
  %390 = vmatpush2.bf16.xpose.msra.mxu0 0
  %391 = vmatprep.subr.bf16.mxu0 0
  %392 = vmatpush2.bf16.xpose.msra.mxu0 0
  %393 = vmatprep.subr.bf16.mxu0 0
  %394 = vmatpush2.bf16.xpose.msra.mxu0 0
  %395 = vmatprep.subr.bf16.mxu0 0
  %396 = vmatpush2.bf16.xpose.msra.mxu0 0
  %397 = vmatprep.subr.bf16.mxu0 0
  %398 = vmatpush2.bf16.xpose.msra.mxu0 0
  %399 = vmatprep.subr.bf16.mxu0 0
  %400 = vmatpush2.bf16.xpose.msra.mxu0 0
  %401 = vmatprep.subr.bf16.mxu0 0
  %402 = vmatpush2.bf16.xpose.msra.mxu0 0
  %403 = vmatprep.mubr.bf16.mxu0 0
  %404 = vmatmul.mubr.bf16.gmra.mxu0 %v366
  %v405 = vpop.f32.mrf.mxu0
  %v406 = vadd.f32 0.0, %v405
  %v407 = vpop.f32.mrf.mxu0
  %v408 = vpop.f32.mrf.mxu0
  %v409 = vpop.f32.mrf.mxu0
  %410 = vdwg.mxu0
  %v411 = vunpack.c.l.b16 %v159
  %v412 = vpack.c.b16 %v411, %v411
  %413 = vrot.lane.b32.xlu0 %v412, 96
  %v414 = vpop.permute.xlu0 %413
  %v416 = vsel %vm166, %v159, 0
  %v419 = vsel %vm166, %v414, 0
  %421 = vmatprep.subr.bf16.mxu0 0
  %422 = vmatpush1.bf16.xpose.msra.mxu0 0
  %423 = vmatprep.subr.bf16.mxu0 0
  %424 = vmatpush1.bf16.xpose.msra.mxu0 0
  %425 = vmatprep.subr.bf16.mxu0 0
  %426 = vmatpush1.bf16.xpose.msra.mxu0 0
  %427 = vmatprep.subr.bf16.mxu0 0
  %428 = vmatpush1.bf16.xpose.msra.mxu0 0
  %429 = vmatprep.subr.bf16.mxu0 0
  %430 = vmatpush1.bf16.xpose.msra.mxu0 0
  %431 = vmatprep.subr.bf16.mxu0 0
  %432 = vmatpush1.bf16.xpose.msra.mxu0 0
  %433 = vmatprep.subr.bf16.mxu0 0
  %434 = vmatpush1.bf16.xpose.msra.mxu0 0
  %435 = vmatprep.subr.bf16.mxu0 0
  %436 = vmatpush1.bf16.xpose.msra.mxu0 %v419
  %437 = vmatprep.subr.bf16.mxu0 0
  %438 = vmatpush2.bf16.xpose.msra.mxu0 0
  %439 = vmatprep.subr.bf16.mxu0 0
  %440 = vmatpush2.bf16.xpose.msra.mxu0 0
  %441 = vmatprep.subr.bf16.mxu0 0
  %442 = vmatpush2.bf16.xpose.msra.mxu0 0
  %443 = vmatprep.subr.bf16.mxu0 0
  %444 = vmatpush2.bf16.xpose.msra.mxu0 0
  %445 = vmatprep.subr.bf16.mxu0 0
  %446 = vmatpush2.bf16.xpose.msra.mxu0 0
  %447 = vmatprep.subr.bf16.mxu0 0
  %448 = vmatpush2.bf16.xpose.msra.mxu0 0
  %449 = vmatprep.subr.bf16.mxu0 0
  %450 = vmatpush2.bf16.xpose.msra.mxu0 0
  %451 = vmatprep.subr.bf16.mxu0 0
  %452 = vmatpush2.bf16.xpose.msra.mxu0 0
  %453 = vmatprep.mubr.bf16.mxu0 0
  %454 = vmatmul.mubr.bf16.gmra.mxu0 %v416
  %v455 = vpop.f32.mrf.mxu0
  %v456 = vadd.f32 0.0, %v455
  %v457 = vpop.f32.mrf.mxu0
  %v458 = vpop.f32.mrf.mxu0
  %v459 = vpop.f32.mrf.mxu0
  %460 = vdwg.mxu0
  %v461 = vunpack.c.l.b16 %v161
  %v462 = vpack.c.b16 %v461, %v461
  %463 = vrot.lane.b32.xlu0 %v462, 96
  %v464 = vpop.permute.xlu0 %463
  %v466 = vsel %vm166, %v161, 0
  %v469 = vsel %vm166, %v464, 0
  %471 = vmatprep.subr.bf16.mxu0 0
  %472 = vmatpush1.bf16.xpose.msra.mxu0 0
  %473 = vmatprep.subr.bf16.mxu0 0
  %474 = vmatpush1.bf16.xpose.msra.mxu0 0
  %475 = vmatprep.subr.bf16.mxu0 0
  %476 = vmatpush1.bf16.xpose.msra.mxu0 0
  %477 = vmatprep.subr.bf16.mxu0 0
  %478 = vmatpush1.bf16.xpose.msra.mxu0 0
  %479 = vmatprep.subr.bf16.mxu0 0
  %480 = vmatpush1.bf16.xpose.msra.mxu0 0
  %481 = vmatprep.subr.bf16.mxu0 0
  %482 = vmatpush1.bf16.xpose.msra.mxu0 0
  %483 = vmatprep.subr.bf16.mxu0 0
  %484 = vmatpush1.bf16.xpose.msra.mxu0 0
  %485 = vmatprep.subr.bf16.mxu0 0
  %486 = vmatpush1.bf16.xpose.msra.mxu0 %v469
  %487 = vmatprep.subr.bf16.mxu0 0
  %488 = vmatpush2.bf16.xpose.msra.mxu0 0
  %489 = vmatprep.subr.bf16.mxu0 0
  %490 = vmatpush2.bf16.xpose.msra.mxu0 0
  %491 = vmatprep.subr.bf16.mxu0 0
  %492 = vmatpush2.bf16.xpose.msra.mxu0 0
  %493 = vmatprep.subr.bf16.mxu0 0
  %494 = vmatpush2.bf16.xpose.msra.mxu0 0
  %495 = vmatprep.subr.bf16.mxu0 0
  %496 = vmatpush2.bf16.xpose.msra.mxu0 0
  %497 = vmatprep.subr.bf16.mxu0 0
  %498 = vmatpush2.bf16.xpose.msra.mxu0 0
  %499 = vmatprep.subr.bf16.mxu0 0
  %500 = vmatpush2.bf16.xpose.msra.mxu0 0
  %501 = vmatprep.subr.bf16.mxu0 0
  %502 = vmatpush2.bf16.xpose.msra.mxu0 0
  %503 = vmatprep.mubr.bf16.mxu0 0
  %504 = vmatmul.mubr.bf16.gmra.mxu0 %v466
  %v505 = vpop.f32.mrf.mxu0
  %v506 = vadd.f32 0.0, %v505
  %v507 = vpop.f32.mrf.mxu0
  %v508 = vpop.f32.mrf.mxu0
  %v509 = vpop.f32.mrf.mxu0
  %510 = vdwg.mxu0
  %v511 = vunpack.c.l.b16 %v163
  %v512 = vpack.c.b16 %v511, %v511
  %513 = vrot.lane.b32.xlu0 %v512, 96
  %v514 = vpop.permute.xlu0 %513
  %v516 = vsel %vm166, %v163, 0
  %v519 = vsel %vm166, %v514, 0
  %521 = vmatprep.subr.bf16.mxu0 0
  %522 = vmatpush1.bf16.xpose.msra.mxu0 0
  %523 = vmatprep.subr.bf16.mxu0 0
  %524 = vmatpush1.bf16.xpose.msra.mxu0 0
  %525 = vmatprep.subr.bf16.mxu0 0
  %526 = vmatpush1.bf16.xpose.msra.mxu0 0
  %527 = vmatprep.subr.bf16.mxu0 0
  %528 = vmatpush1.bf16.xpose.msra.mxu0 0
  %529 = vmatprep.subr.bf16.mxu0 0
  %530 = vmatpush1.bf16.xpose.msra.mxu0 0
  %531 = vmatprep.subr.bf16.mxu0 0
  %532 = vmatpush1.bf16.xpose.msra.mxu0 0
  %533 = vmatprep.subr.bf16.mxu0 0
  %534 = vmatpush1.bf16.xpose.msra.mxu0 0
  %535 = vmatprep.subr.bf16.mxu0 0
  %536 = vmatpush1.bf16.xpose.msra.mxu0 %v519
  %537 = vmatprep.subr.bf16.mxu0 0
  %538 = vmatpush2.bf16.xpose.msra.mxu0 0
  %539 = vmatprep.subr.bf16.mxu0 0
  %540 = vmatpush2.bf16.xpose.msra.mxu0 0
  %541 = vmatprep.subr.bf16.mxu0 0
  %542 = vmatpush2.bf16.xpose.msra.mxu0 0
  %543 = vmatprep.subr.bf16.mxu0 0
  %544 = vmatpush2.bf16.xpose.msra.mxu0 0
  %545 = vmatprep.subr.bf16.mxu0 0
  %546 = vmatpush2.bf16.xpose.msra.mxu0 0
  %547 = vmatprep.subr.bf16.mxu0 0
  %548 = vmatpush2.bf16.xpose.msra.mxu0 0
  %549 = vmatprep.subr.bf16.mxu0 0
  %550 = vmatpush2.bf16.xpose.msra.mxu0 0
  %551 = vmatprep.subr.bf16.mxu0 0
  %552 = vmatpush2.bf16.xpose.msra.mxu0 0
  %553 = vmatprep.mubr.bf16.mxu0 0
  %554 = vmatmul.mubr.bf16.gmra.mxu0 %v516
  %v555 = vpop.f32.mrf.mxu0
  %v556 = vadd.f32 0.0, %v555
  %v557 = vpop.f32.mrf.mxu0
  %v558 = vpop.f32.mrf.mxu0
  %v559 = vpop.f32.mrf.mxu0
  %560 = vdwg.mxu0
  %v561 = vsel %vm166, %v208, -inf
  %562 = vmax.xlane.f32.xlu0 %v561
  %v563 = vpop.xlane.xlu0 %562
  %v564 = vsel %vm166, %v256, -inf
  %565 = vmax.xlane.f32.xlu0 %v564
  %v566 = vpop.xlane.xlu0 %565
  %v567 = vsel %vm166, %v306, -inf
  %568 = vmax.xlane.f32.xlu0 %v567
  %v569 = vpop.xlane.xlu0 %568
  %v570 = vsel %vm166, %v356, -inf
  %571 = vmax.xlane.f32.xlu0 %v570
  %v572 = vpop.xlane.xlu0 %571
  %v573 = vsel %vm166, %v406, -inf
  %574 = vmax.xlane.f32.xlu0 %v573
  %v575 = vpop.xlane.xlu0 %574
  %v576 = vsel %vm166, %v456, -inf
  %577 = vmax.xlane.f32.xlu0 %v576
  %v578 = vpop.xlane.xlu0 %577
  %v579 = vsel %vm166, %v506, -inf
  %580 = vmax.xlane.f32.xlu0 %v579
  %v581 = vpop.xlane.xlu0 %580
  %v582 = vsel %vm166, %v556, -inf
  %583 = vmax.xlane.f32.xlu0 %v582
  %v584 = vpop.xlane.xlu0 %583
  %v585 = vsub.f32 %v208, %v563
  %v586 = vsub.f32 %v256, %v566
  %v587 = vsub.f32 %v306, %v569
  %v588 = vsub.f32 %v356, %v572
  %v589 = vsub.f32 %v406, %v575
  %v590 = vsub.f32 %v456, %v578
  %v591 = vsub.f32 %v506, %v581
  %v592 = vsub.f32 %v556, %v584
  %v593 = vmul.f32 %v585, 1.442695
  %v594 = vpow.pop %v593
  %v595 = vmul.f32 %v586, 1.442695
  %v596 = vpow.pop %v595
  %v597 = vmul.f32 %v587, 1.442695
  %v598 = vpow.pop %v597
  %v599 = vmul.f32 %v588, 1.442695
  %v600 = vpow.pop %v599
  %v601 = vmul.f32 %v589, 1.442695
  %v602 = vpow.pop %v601
  %v603 = vmul.f32 %v590, 1.442695
  %v604 = vpow.pop %v603
  %v605 = vmul.f32 %v591, 1.442695
  %v606 = vpow.pop %v605
  %v607 = vmul.f32 %v592, 1.442695
  %v608 = vpow.pop %v607
  %v609 = vsel %vm166, %v594, 0.0
  %610 = vadd.xlane.f32.xlu0 %v609
  %v611 = vpop.xlane.xlu0 %610
  %v612 = vsel %vm166, %v596, 0.0
  %613 = vadd.xlane.f32.xlu0 %v612
  %v614 = vpop.xlane.xlu0 %613
  %v615 = vsel %vm166, %v598, 0.0
  %616 = vadd.xlane.f32.xlu0 %v615
  %v617 = vpop.xlane.xlu0 %616
  %v618 = vsel %vm166, %v600, 0.0
  %619 = vadd.xlane.f32.xlu0 %v618
  %v620 = vpop.xlane.xlu0 %619
  %v621 = vsel %vm166, %v602, 0.0
  %622 = vadd.xlane.f32.xlu0 %v621
  %v623 = vpop.xlane.xlu0 %622
  %v624 = vsel %vm166, %v604, 0.0
  %625 = vadd.xlane.f32.xlu0 %v624
  %v626 = vpop.xlane.xlu0 %625
  %v627 = vsel %vm166, %v606, 0.0
  %628 = vadd.xlane.f32.xlu0 %v627
  %v629 = vpop.xlane.xlu0 %628
  %v630 = vsel %vm166, %v608, 0.0
  %631 = vadd.xlane.f32.xlu0 %v630
  %v632 = vpop.xlane.xlu0 %631
  %v633 = vrcp.pop %v611
  %v634 = vrcp.pop %v614
  %v635 = vrcp.pop %v617
  %v636 = vrcp.pop %v620
  %v637 = vrcp.pop %v623
  %v638 = vrcp.pop %v626
  %v639 = vrcp.pop %v629
  %v640 = vrcp.pop %v632
  %v641 = vmul.f32 %v594, %v633
  %v642 = vmul.f32 %v596, %v634
  %v643 = vmul.f32 %v598, %v635
  %v644 = vmul.f32 %v600, %v636
  %v645 = vmul.f32 %v602, %v637
  %v646 = vmul.f32 %v604, %v638
  %v647 = vmul.f32 %v606, %v639
  %v648 = vmul.f32 %v608, %v640
  %v649 = vpack.c.bf16 %v641, %v641
  %v650 = vpack.c.bf16 %v642, %v642
  %v651 = vpack.c.bf16 %v643, %v643
  %v652 = vpack.c.bf16 %v644, %v644
  %v653 = vpack.c.bf16 %v645, %v645
  %v654 = vpack.c.bf16 %v646, %v646
  %v655 = vpack.c.bf16 %v647, %v647
  %v656 = vpack.c.bf16 %v648, %v648
  %657 = vrot.lane.b32.xlu0 %v150, 64
  %v658 = vpop.permute.xlu0 %657
  %v660 = vsel %vm166, %v649, 0
  %vm662 = vcmask 1043456
  %v664 = vsel %vm662, %v658, 0
  %666 = vmatprep.subr.bf16.mxu0 0
  %667 = vmatpush1.bf16.msra.mxu0 0
  %668 = vmatprep.subr.bf16.mxu0 0
  %669 = vmatpush1.bf16.msra.mxu0 0
  %670 = vmatprep.subr.bf16.mxu0 0
  %671 = vmatpush1.bf16.msra.mxu0 0
  %672 = vmatprep.subr.bf16.mxu0 0
  %673 = vmatpush1.bf16.msra.mxu0 0
  %674 = vmatprep.subr.bf16.mxu0 0
  %675 = vmatpush1.bf16.msra.mxu0 0
  %676 = vmatprep.subr.bf16.mxu0 0
  %677 = vmatpush1.bf16.msra.mxu0 0
  %678 = vmatprep.subr.bf16.mxu0 0
  %679 = vmatpush1.bf16.msra.mxu0 0
  %680 = vmatprep.subr.bf16.mxu0 0
  %681 = vmatpush1.bf16.msra.mxu0 %v664
  %682 = vmatprep.subr.bf16.mxu0 0
  %683 = vmatpush2.bf16.msra.mxu0 0
  %684 = vmatprep.subr.bf16.mxu0 0
  %685 = vmatpush2.bf16.msra.mxu0 0
  %686 = vmatprep.subr.bf16.mxu0 0
  %687 = vmatpush2.bf16.msra.mxu0 0
  %688 = vmatprep.subr.bf16.mxu0 0
  %689 = vmatpush2.bf16.msra.mxu0 0
  %690 = vmatprep.subr.bf16.mxu0 0
  %691 = vmatpush2.bf16.msra.mxu0 0
  %692 = vmatprep.subr.bf16.mxu0 0
  %693 = vmatpush2.bf16.msra.mxu0 0
  %694 = vmatprep.subr.bf16.mxu0 0
  %695 = vmatpush2.bf16.msra.mxu0 0
  %696 = vmatprep.subr.bf16.mxu0 0
  %697 = vmatpush2.bf16.msra.mxu0 0
  %698 = vmatprep.mubr.bf16.mxu0 0
  %699 = vmatmul.mubr.bf16.gmra.mxu0 %v660
  %v700 = vpop.f32.mrf.mxu0
  %v701 = vadd.f32 0.0, %v700
  %v702 = vpop.f32.mrf.mxu0
  %v703 = vpop.f32.mrf.mxu0
  %v704 = vpop.f32.mrf.mxu0
  %705 = vdwg.mxu0
  %706 = vrot.lane.b32.xlu0 %v151, 64
  %v707 = vpop.permute.xlu0 %706
  %v709 = vsel %vm166, %v650, 0
  %v712 = vsel %vm662, %v707, 0
  %714 = vmatprep.subr.bf16.mxu0 0
  %715 = vmatpush1.bf16.msra.mxu0 0
  %716 = vmatprep.subr.bf16.mxu0 0
  %717 = vmatpush1.bf16.msra.mxu0 0
  %718 = vmatprep.subr.bf16.mxu0 0
  %719 = vmatpush1.bf16.msra.mxu0 0
  %720 = vmatprep.subr.bf16.mxu0 0
  %721 = vmatpush1.bf16.msra.mxu0 0
  %722 = vmatprep.subr.bf16.mxu0 0
  %723 = vmatpush1.bf16.msra.mxu0 0
  %724 = vmatprep.subr.bf16.mxu0 0
  %725 = vmatpush1.bf16.msra.mxu0 0
  %726 = vmatprep.subr.bf16.mxu0 0
  %727 = vmatpush1.bf16.msra.mxu0 0
  %728 = vmatprep.subr.bf16.mxu0 0
  %729 = vmatpush1.bf16.msra.mxu0 %v712
  %730 = vmatprep.subr.bf16.mxu0 0
  %731 = vmatpush2.bf16.msra.mxu0 0
  %732 = vmatprep.subr.bf16.mxu0 0
  %733 = vmatpush2.bf16.msra.mxu0 0
  %734 = vmatprep.subr.bf16.mxu0 0
  %735 = vmatpush2.bf16.msra.mxu0 0
  %736 = vmatprep.subr.bf16.mxu0 0
  %737 = vmatpush2.bf16.msra.mxu0 0
  %738 = vmatprep.subr.bf16.mxu0 0
  %739 = vmatpush2.bf16.msra.mxu0 0
  %740 = vmatprep.subr.bf16.mxu0 0
  %741 = vmatpush2.bf16.msra.mxu0 0
  %742 = vmatprep.subr.bf16.mxu0 0
  %743 = vmatpush2.bf16.msra.mxu0 0
  %744 = vmatprep.subr.bf16.mxu0 0
  %745 = vmatpush2.bf16.msra.mxu0 0
  %746 = vmatprep.mubr.bf16.mxu0 0
  %747 = vmatmul.mubr.bf16.gmra.mxu0 %v709
  %v748 = vpop.f32.mrf.mxu0
  %v749 = vadd.f32 0.0, %v748
  %v750 = vpop.f32.mrf.mxu0
  %v751 = vpop.f32.mrf.mxu0
  %v752 = vpop.f32.mrf.mxu0
  %753 = vdwg.mxu0
  %754 = vrot.lane.b32.xlu0 %v262, 64
  %v755 = vpop.permute.xlu0 %754
  %v757 = vsel %vm166, %v651, 0
  %v760 = vsel %vm662, %v755, 0
  %762 = vmatprep.subr.bf16.mxu0 0
  %763 = vmatpush1.bf16.msra.mxu0 0
  %764 = vmatprep.subr.bf16.mxu0 0
  %765 = vmatpush1.bf16.msra.mxu0 0
  %766 = vmatprep.subr.bf16.mxu0 0
  %767 = vmatpush1.bf16.msra.mxu0 0
  %768 = vmatprep.subr.bf16.mxu0 0
  %769 = vmatpush1.bf16.msra.mxu0 0
  %770 = vmatprep.subr.bf16.mxu0 0
  %771 = vmatpush1.bf16.msra.mxu0 0
  %772 = vmatprep.subr.bf16.mxu0 0
  %773 = vmatpush1.bf16.msra.mxu0 0
  %774 = vmatprep.subr.bf16.mxu0 0
  %775 = vmatpush1.bf16.msra.mxu0 0
  %776 = vmatprep.subr.bf16.mxu0 0
  %777 = vmatpush1.bf16.msra.mxu0 %v760
  %778 = vmatprep.subr.bf16.mxu0 0
  %779 = vmatpush2.bf16.msra.mxu0 0
  %780 = vmatprep.subr.bf16.mxu0 0
  %781 = vmatpush2.bf16.msra.mxu0 0
  %782 = vmatprep.subr.bf16.mxu0 0
  %783 = vmatpush2.bf16.msra.mxu0 0
  %784 = vmatprep.subr.bf16.mxu0 0
  %785 = vmatpush2.bf16.msra.mxu0 0
  %786 = vmatprep.subr.bf16.mxu0 0
  %787 = vmatpush2.bf16.msra.mxu0 0
  %788 = vmatprep.subr.bf16.mxu0 0
  %789 = vmatpush2.bf16.msra.mxu0 0
  %790 = vmatprep.subr.bf16.mxu0 0
  %791 = vmatpush2.bf16.msra.mxu0 0
  %792 = vmatprep.subr.bf16.mxu0 0
  %793 = vmatpush2.bf16.msra.mxu0 0
  %794 = vmatprep.mubr.bf16.mxu0 0
  %795 = vmatmul.mubr.bf16.gmra.mxu0 %v757
  %v796 = vpop.f32.mrf.mxu0
  %v797 = vadd.f32 0.0, %v796
  %v798 = vpop.f32.mrf.mxu0
  %v799 = vpop.f32.mrf.mxu0
  %v800 = vpop.f32.mrf.mxu0
  %801 = vdwg.mxu0
  %802 = vrot.lane.b32.xlu0 %v312, 64
  %v803 = vpop.permute.xlu0 %802
  %v805 = vsel %vm166, %v652, 0
  %v808 = vsel %vm662, %v803, 0
  %810 = vmatprep.subr.bf16.mxu0 0
  %811 = vmatpush1.bf16.msra.mxu0 0
  %812 = vmatprep.subr.bf16.mxu0 0
  %813 = vmatpush1.bf16.msra.mxu0 0
  %814 = vmatprep.subr.bf16.mxu0 0
  %815 = vmatpush1.bf16.msra.mxu0 0
  %816 = vmatprep.subr.bf16.mxu0 0
  %817 = vmatpush1.bf16.msra.mxu0 0
  %818 = vmatprep.subr.bf16.mxu0 0
  %819 = vmatpush1.bf16.msra.mxu0 0
  %820 = vmatprep.subr.bf16.mxu0 0
  %821 = vmatpush1.bf16.msra.mxu0 0
  %822 = vmatprep.subr.bf16.mxu0 0
  %823 = vmatpush1.bf16.msra.mxu0 0
  %824 = vmatprep.subr.bf16.mxu0 0
  %825 = vmatpush1.bf16.msra.mxu0 %v808
  %826 = vmatprep.subr.bf16.mxu0 0
  %827 = vmatpush2.bf16.msra.mxu0 0
  %828 = vmatprep.subr.bf16.mxu0 0
  %829 = vmatpush2.bf16.msra.mxu0 0
  %830 = vmatprep.subr.bf16.mxu0 0
  %831 = vmatpush2.bf16.msra.mxu0 0
  %832 = vmatprep.subr.bf16.mxu0 0
  %833 = vmatpush2.bf16.msra.mxu0 0
  %834 = vmatprep.subr.bf16.mxu0 0
  %835 = vmatpush2.bf16.msra.mxu0 0
  %836 = vmatprep.subr.bf16.mxu0 0
  %837 = vmatpush2.bf16.msra.mxu0 0
  %838 = vmatprep.subr.bf16.mxu0 0
  %839 = vmatpush2.bf16.msra.mxu0 0
  %840 = vmatprep.subr.bf16.mxu0 0
  %841 = vmatpush2.bf16.msra.mxu0 0
  %842 = vmatprep.mubr.bf16.mxu0 0
  %843 = vmatmul.mubr.bf16.gmra.mxu0 %v805
  %v844 = vpop.f32.mrf.mxu0
  %v845 = vadd.f32 0.0, %v844
  %v846 = vpop.f32.mrf.mxu0
  %v847 = vpop.f32.mrf.mxu0
  %v848 = vpop.f32.mrf.mxu0
  %849 = vdwg.mxu0
  %850 = vrot.lane.b32.xlu0 %v362, 64
  %v851 = vpop.permute.xlu0 %850
  %v853 = vsel %vm166, %v653, 0
  %v856 = vsel %vm662, %v851, 0
  %858 = vmatprep.subr.bf16.mxu0 0
  %859 = vmatpush1.bf16.msra.mxu0 0
  %860 = vmatprep.subr.bf16.mxu0 0
  %861 = vmatpush1.bf16.msra.mxu0 0
  %862 = vmatprep.subr.bf16.mxu0 0
  %863 = vmatpush1.bf16.msra.mxu0 0
  %864 = vmatprep.subr.bf16.mxu0 0
  %865 = vmatpush1.bf16.msra.mxu0 0
  %866 = vmatprep.subr.bf16.mxu0 0
  %867 = vmatpush1.bf16.msra.mxu0 0
  %868 = vmatprep.subr.bf16.mxu0 0
  %869 = vmatpush1.bf16.msra.mxu0 0
  %870 = vmatprep.subr.bf16.mxu0 0
  %871 = vmatpush1.bf16.msra.mxu0 0
  %872 = vmatprep.subr.bf16.mxu0 0
  %873 = vmatpush1.bf16.msra.mxu0 %v856
  %874 = vmatprep.subr.bf16.mxu0 0
  %875 = vmatpush2.bf16.msra.mxu0 0
  %876 = vmatprep.subr.bf16.mxu0 0
  %877 = vmatpush2.bf16.msra.mxu0 0
  %878 = vmatprep.subr.bf16.mxu0 0
  %879 = vmatpush2.bf16.msra.mxu0 0
  %880 = vmatprep.subr.bf16.mxu0 0
  %881 = vmatpush2.bf16.msra.mxu0 0
  %882 = vmatprep.subr.bf16.mxu0 0
  %883 = vmatpush2.bf16.msra.mxu0 0
  %884 = vmatprep.subr.bf16.mxu0 0
  %885 = vmatpush2.bf16.msra.mxu0 0
  %886 = vmatprep.subr.bf16.mxu0 0
  %887 = vmatpush2.bf16.msra.mxu0 0
  %888 = vmatprep.subr.bf16.mxu0 0
  %889 = vmatpush2.bf16.msra.mxu0 0
  %890 = vmatprep.mubr.bf16.mxu0 0
  %891 = vmatmul.mubr.bf16.gmra.mxu0 %v853
  %v892 = vpop.f32.mrf.mxu0
  %v893 = vadd.f32 0.0, %v892
  %v894 = vpop.f32.mrf.mxu0
  %v895 = vpop.f32.mrf.mxu0
  %v896 = vpop.f32.mrf.mxu0
  %897 = vdwg.mxu0
  %898 = vrot.lane.b32.xlu0 %v412, 64
  %v899 = vpop.permute.xlu0 %898
  %v901 = vsel %vm166, %v654, 0
  %v904 = vsel %vm662, %v899, 0
  %906 = vmatprep.subr.bf16.mxu0 0
  %907 = vmatpush1.bf16.msra.mxu0 0
  %908 = vmatprep.subr.bf16.mxu0 0
  %909 = vmatpush1.bf16.msra.mxu0 0
  %910 = vmatprep.subr.bf16.mxu0 0
  %911 = vmatpush1.bf16.msra.mxu0 0
  %912 = vmatprep.subr.bf16.mxu0 0
  %913 = vmatpush1.bf16.msra.mxu0 0
  %914 = vmatprep.subr.bf16.mxu0 0
  %915 = vmatpush1.bf16.msra.mxu0 0
  %916 = vmatprep.subr.bf16.mxu0 0
  %917 = vmatpush1.bf16.msra.mxu0 0
  %918 = vmatprep.subr.bf16.mxu0 0
  %919 = vmatpush1.bf16.msra.mxu0 0
  %920 = vmatprep.subr.bf16.mxu0 0
  %921 = vmatpush1.bf16.msra.mxu0 %v904
  %922 = vmatprep.subr.bf16.mxu0 0
  %923 = vmatpush2.bf16.msra.mxu0 0
  %924 = vmatprep.subr.bf16.mxu0 0
  %925 = vmatpush2.bf16.msra.mxu0 0
  %926 = vmatprep.subr.bf16.mxu0 0
  %927 = vmatpush2.bf16.msra.mxu0 0
  %928 = vmatprep.subr.bf16.mxu0 0
  %929 = vmatpush2.bf16.msra.mxu0 0
  %930 = vmatprep.subr.bf16.mxu0 0
  %931 = vmatpush2.bf16.msra.mxu0 0
  %932 = vmatprep.subr.bf16.mxu0 0
  %933 = vmatpush2.bf16.msra.mxu0 0
  %934 = vmatprep.subr.bf16.mxu0 0
  %935 = vmatpush2.bf16.msra.mxu0 0
  %936 = vmatprep.subr.bf16.mxu0 0
  %937 = vmatpush2.bf16.msra.mxu0 0
  %938 = vmatprep.mubr.bf16.mxu0 0
  %939 = vmatmul.mubr.bf16.gmra.mxu0 %v901
  %v940 = vpop.f32.mrf.mxu0
  %v941 = vadd.f32 0.0, %v940
  %v942 = vpop.f32.mrf.mxu0
  %v943 = vpop.f32.mrf.mxu0
  %v944 = vpop.f32.mrf.mxu0
  %945 = vdwg.mxu0
  %946 = vrot.lane.b32.xlu0 %v462, 64
  %v947 = vpop.permute.xlu0 %946
  %v949 = vsel %vm166, %v655, 0
  %v952 = vsel %vm662, %v947, 0
  %954 = vmatprep.subr.bf16.mxu0 0
  %955 = vmatpush1.bf16.msra.mxu0 0
  %956 = vmatprep.subr.bf16.mxu0 0
  %957 = vmatpush1.bf16.msra.mxu0 0
  %958 = vmatprep.subr.bf16.mxu0 0
  %959 = vmatpush1.bf16.msra.mxu0 0
  %960 = vmatprep.subr.bf16.mxu0 0
  %961 = vmatpush1.bf16.msra.mxu0 0
  %962 = vmatprep.subr.bf16.mxu0 0
  %963 = vmatpush1.bf16.msra.mxu0 0
  %964 = vmatprep.subr.bf16.mxu0 0
  %965 = vmatpush1.bf16.msra.mxu0 0
  %966 = vmatprep.subr.bf16.mxu0 0
  %967 = vmatpush1.bf16.msra.mxu0 0
  %968 = vmatprep.subr.bf16.mxu0 0
  %969 = vmatpush1.bf16.msra.mxu0 %v952
  %970 = vmatprep.subr.bf16.mxu0 0
  %971 = vmatpush2.bf16.msra.mxu0 0
  %972 = vmatprep.subr.bf16.mxu0 0
  %973 = vmatpush2.bf16.msra.mxu0 0
  %974 = vmatprep.subr.bf16.mxu0 0
  %975 = vmatpush2.bf16.msra.mxu0 0
  %976 = vmatprep.subr.bf16.mxu0 0
  %977 = vmatpush2.bf16.msra.mxu0 0
  %978 = vmatprep.subr.bf16.mxu0 0
  %979 = vmatpush2.bf16.msra.mxu0 0
  %980 = vmatprep.subr.bf16.mxu0 0
  %981 = vmatpush2.bf16.msra.mxu0 0
  %982 = vmatprep.subr.bf16.mxu0 0
  %983 = vmatpush2.bf16.msra.mxu0 0
  %984 = vmatprep.subr.bf16.mxu0 0
  %985 = vmatpush2.bf16.msra.mxu0 0
  %986 = vmatprep.mubr.bf16.mxu0 0
  %987 = vmatmul.mubr.bf16.gmra.mxu0 %v949
  %v988 = vpop.f32.mrf.mxu0
  %v989 = vadd.f32 0.0, %v988
  %v990 = vpop.f32.mrf.mxu0
  %v991 = vpop.f32.mrf.mxu0
  %v992 = vpop.f32.mrf.mxu0
  %993 = vdwg.mxu0
  %994 = vrot.lane.b32.xlu0 %v512, 64
  %v995 = vpop.permute.xlu0 %994
  %v997 = vsel %vm166, %v656, 0
  %v1000 = vsel %vm662, %v995, 0
  %1002 = vmatprep.subr.bf16.mxu0 0
  %1003 = vmatpush1.bf16.msra.mxu0 0
  %1004 = vmatprep.subr.bf16.mxu0 0
  %1005 = vmatpush1.bf16.msra.mxu0 0
  %1006 = vmatprep.subr.bf16.mxu0 0
  %1007 = vmatpush1.bf16.msra.mxu0 0
  %1008 = vmatprep.subr.bf16.mxu0 0
  %1009 = vmatpush1.bf16.msra.mxu0 0
  %1010 = vmatprep.subr.bf16.mxu0 0
  %1011 = vmatpush1.bf16.msra.mxu0 0
  %1012 = vmatprep.subr.bf16.mxu0 0
  %1013 = vmatpush1.bf16.msra.mxu0 0
  %1014 = vmatprep.subr.bf16.mxu0 0
  %1015 = vmatpush1.bf16.msra.mxu0 0
  %1016 = vmatprep.subr.bf16.mxu0 0
  %1017 = vmatpush1.bf16.msra.mxu0 %v1000
  %1018 = vmatprep.subr.bf16.mxu0 0
  %1019 = vmatpush2.bf16.msra.mxu0 0
  %1020 = vmatprep.subr.bf16.mxu0 0
  %1021 = vmatpush2.bf16.msra.mxu0 0
  %1022 = vmatprep.subr.bf16.mxu0 0
  %1023 = vmatpush2.bf16.msra.mxu0 0
  %1024 = vmatprep.subr.bf16.mxu0 0
  %1025 = vmatpush2.bf16.msra.mxu0 0
  %1026 = vmatprep.subr.bf16.mxu0 0
  %1027 = vmatpush2.bf16.msra.mxu0 0
  %1028 = vmatprep.subr.bf16.mxu0 0
  %1029 = vmatpush2.bf16.msra.mxu0 0
  %1030 = vmatprep.subr.bf16.mxu0 0
  %1031 = vmatpush2.bf16.msra.mxu0 0
  %1032 = vmatprep.subr.bf16.mxu0 0
  %1033 = vmatpush2.bf16.msra.mxu0 0
  %1034 = vmatprep.mubr.bf16.mxu0 0
  %1035 = vmatmul.mubr.bf16.gmra.mxu0 %v997
  %v1036 = vpop.f32.mrf.mxu0
  %v1037 = vadd.f32 0.0, %v1036
  %v1038 = vpop.f32.mrf.mxu0
  %v1039 = vpop.f32.mrf.mxu0
  %v1040 = vpop.f32.mrf.mxu0
  %1041 = vdwg.mxu0
  %v1042 = vpack.c.bf16 %v701, %v701
  %v1043 = vpack.c.bf16 %v749, %v749
  %v1044 = vpack.c.bf16 %v797, %v797
  %v1045 = vpack.c.bf16 %v845, %v845
  %v1046 = vpack.c.bf16 %v893, %v893
  %v1047 = vpack.c.bf16 %v941, %v941
  %v1048 = vpack.c.bf16 %v989, %v989
  %v1049 = vpack.c.bf16 %v1037, %v1037
  %1052 = vrot.lane.b32.xlu0 %v1044, 8
  %v1053 = vpop.permute.xlu0 %1052
  %1054 = vrot.lane.b32.xlu0 %v1045, 8
  %v1055 = vpop.permute.xlu0 %1054
  %1058 = vrot.lane.b32.xlu0 %v1046, 16
  %v1059 = vpop.permute.xlu0 %1058
  %1060 = vrot.lane.b32.xlu0 %v1047, 16
  %v1061 = vpop.permute.xlu0 %1060
  %1064 = vrot.lane.b32.xlu0 %v1048, 24
  %v1065 = vpop.permute.xlu0 %1064
  %1066 = vrot.lane.b32.xlu0 %v1049, 24
  %v1067 = vpop.permute.xlu0 %1066
  %v1070 = vsel %vm166, %v1042, %v1053
  %v1073 = vsel %vm166, %v1043, %v1055
  %vm1074 = vcmask 130048
  %v1076 = vsel %vm1074, %v1070, %v1059
  %v1078 = vsel %vm1074, %v1073, %v1061
  %vm1079 = vcmask 195584
  %v1081 = vsel %vm1079, %v1076, %v1065
  %v1083 = vsel %vm1079, %v1078, %v1067
  %v1084 = vld [vmem:[%s4] sm:$0xf]
  %v1085 = vld [vmem:[%s4 + $0x4] sm:$0xf]
  %v1086 = vld [vmem:[%s4 + $0x8] sm:$0xf]
  %v1087 = vld [vmem:[%s4 + $0xc] sm:$0xf]
  %v1088 = vld [vmem:[%s5] sm:$0x1]
  %v1090 = vlaneseq
  %v1091 = vshrl.u32 %v1090, 7
  %v1092 = vsub.s32 0, %v1091
  %v1093 = vrot.slane %v1088, %v1092
  %v1097 = vunpack.c.l.b16 %v1081
  %v1098 = vunpack.c.l.b16 %v1083
  %v1099 = vpack.c.b16 %v1098, %v1097
  %v1104 = vunpack.c.l.b16 %v1084
  %v1105 = vunpack.c.l.b16 %v1085
  %v1106 = vunpack.c.l.b16 %v1086
  %v1107 = vunpack.c.l.b16 %v1087
  %v1108 = vpack.c.b16 %v1105, %v1104
  %v1109 = vpack.c.b16 %v1107, %v1106
  %v1113 = vsel %vm101, %v1099, 0
  %1115 = vmatprep.subr.bf16.mxu0 0
  %1116 = vmatpush1.bf16.msra.mxu0 0
  %1117 = vmatprep.subr.bf16.mxu0 0
  %1118 = vmatpush1.bf16.msra.mxu0 0
  %1119 = vmatprep.subr.bf16.mxu0 0
  %1120 = vmatpush1.bf16.msra.mxu0 0
  %1121 = vmatprep.subr.bf16.mxu0 0
  %1122 = vmatpush1.bf16.msra.mxu0 0
  %1123 = vmatprep.subr.bf16.mxu0 0
  %1124 = vmatpush1.bf16.msra.mxu0 0
  %1125 = vmatprep.subr.bf16.mxu0 0
  %1126 = vmatpush1.bf16.msra.mxu0 0
  %1127 = vmatprep.subr.bf16.mxu0 0
  %1128 = vmatpush1.bf16.msra.mxu0 %v1109
  %1129 = vmatprep.subr.bf16.mxu0 0
  %1130 = vmatpush1.bf16.msra.mxu0 %v1108
  %1131 = vmatprep.subr.bf16.mxu0 0
  %1132 = vmatpush2.bf16.msra.mxu0 0
  %1133 = vmatprep.subr.bf16.mxu0 0
  %1134 = vmatpush2.bf16.msra.mxu0 0
  %1135 = vmatprep.subr.bf16.mxu0 0
  %1136 = vmatpush2.bf16.msra.mxu0 0
  %1137 = vmatprep.subr.bf16.mxu0 0
  %1138 = vmatpush2.bf16.msra.mxu0 0
  %1139 = vmatprep.subr.bf16.mxu0 0
  %1140 = vmatpush2.bf16.msra.mxu0 0
  %1141 = vmatprep.subr.bf16.mxu0 0
  %1142 = vmatpush2.bf16.msra.mxu0 0
  %1143 = vmatprep.subr.bf16.mxu0 0
  %1144 = vmatpush2.bf16.msra.mxu0 0
  %1145 = vmatprep.subr.bf16.mxu0 0
  %1146 = vmatpush2.bf16.msra.mxu0 0
  %1147 = vmatprep.mubr.bf16.mxu0 0
  %1148 = vmatmul.mubr.bf16.gmra.mxu0 %v1113
  %v1149 = vpop.f32.mrf.mxu0
  %v1150 = vadd.f32 %v1093, %v1149
  %v1151 = vpop.f32.mrf.mxu0
  %v1152 = vpop.f32.mrf.mxu0
  %v1153 = vadd.f32 %v1093, %v1152
  %v1154 = vpop.f32.mrf.mxu0
  %1155 = vdwg.mxu0
  %v1156 = vadd.f32 %v72, %v1150
  %v1157 = vadd.f32 %v73, %v1153
  %v1158 = vsel %vm101, %v1156, 0.0
  %1159 = vadd.xlane.f32.xlu0 %v1158
  %v1160 = vpop.xlane.xlu0 %1159
  %v1161 = vsel %vm101, %v1157, 0.0
  %1162 = vadd.xlane.f32.xlu0 %v1161
  %v1163 = vpop.xlane.xlu0 %1162
  %v1164 = vrcp.pop 32.0
  %v1165 = vmul.f32 %v1160, %v1164
  %v1166 = vmul.f32 %v1163, %v1164
  %v1167 = vsub.f32 %v1156, %v1165
  %v1168 = vsub.f32 %v1157, %v1166
  %v1169 = vmul.f32 %v1167, %v1167
  %v1170 = vmul.f32 %v1168, %v1168
  %v1171 = vsel %vm101, %v1169, 0.0
  %1172 = vadd.xlane.f32.xlu0 %v1171
  %v1173 = vpop.xlane.xlu0 %1172
  %v1174 = vsel %vm101, %v1170, 0.0
  %1175 = vadd.xlane.f32.xlu0 %v1174
  %v1176 = vpop.xlane.xlu0 %1175
  %v1177 = vmul.f32 %v1173, %v1164
  %v1178 = vmul.f32 %v1176, %v1164
  %v1179 = vadd.f32 %v1177, 1e-05
  %v1180 = vadd.f32 %v1178, 1e-05
  %v1181 = vrsqrt.pop %v1179
  %v1182 = vrsqrt.pop %v1180
  %v1183 = vmul.f32 %v1167, %v1181
  %v1184 = vmul.f32 %v1168, %v1182
  %v1185 = vld [vmem:[%s6] sm:$0x1]
  %v1187 = vlaneseq
  %v1188 = vshrl.u32 %v1187, 7
  %v1189 = vsub.s32 0, %v1188
  %v1190 = vrot.slane %v1185, %v1189
  %v1192 = vmul.f32 %v1183, %v1190
  %v1193 = vmul.f32 %v1184, %v1190
  %v1194 = vld [vmem:[%s7] sm:$0x1]
  %v1196 = vlaneseq
  %v1197 = vshrl.u32 %v1196, 7
  %v1198 = vsub.s32 0, %v1197
  %v1199 = vrot.slane %v1194, %v1198
  %v1201 = vadd.f32 %v1192, %v1199
  %v1202 = vadd.f32 %v1193, %v1199
  %v1203 = vpack.c.bf16 %v1202, %v1201
  %v1204 = vld [vmem:[%s8] sm:$0xf]
  %v1205 = vld [vmem:[%s8 + $0x4] sm:$0xf]
  %v1206 = vld [vmem:[%s8 + $0x8] sm:$0xf]
  %v1207 = vld [vmem:[%s8 + $0xc] sm:$0xf]
  %v1208 = vld [vmem:[%s9] sm:$0x1]
  %v1210 = vlaneseq
  %v1211 = vshrl.u32 %v1210, 7
  %v1212 = vsub.s32 0, %v1211
  %v1213 = vrot.slane %v1208, %v1212
  %v1219 = vunpack.c.l.b16 %v1204
  %v1220 = vunpack.c.l.b16 %v1205
  %v1221 = vunpack.c.l.b16 %v1206
  %v1222 = vunpack.c.l.b16 %v1207
  %v1223 = vpack.c.b16 %v1220, %v1219
  %v1224 = vpack.c.b16 %v1222, %v1221
  %v1228 = vsel %vm101, %v1203, 0
  %1230 = vmatprep.subr.bf16.mxu0 0
  %1231 = vmatpush1.bf16.msra.mxu0 0
  %1232 = vmatprep.subr.bf16.mxu0 0
  %1233 = vmatpush1.bf16.msra.mxu0 0
  %1234 = vmatprep.subr.bf16.mxu0 0
  %1235 = vmatpush1.bf16.msra.mxu0 0
  %1236 = vmatprep.subr.bf16.mxu0 0
  %1237 = vmatpush1.bf16.msra.mxu0 0
  %1238 = vmatprep.subr.bf16.mxu0 0
  %1239 = vmatpush1.bf16.msra.mxu0 0
  %1240 = vmatprep.subr.bf16.mxu0 0
  %1241 = vmatpush1.bf16.msra.mxu0 0
  %1242 = vmatprep.subr.bf16.mxu0 0
  %1243 = vmatpush1.bf16.msra.mxu0 %v1224
  %1244 = vmatprep.subr.bf16.mxu0 0
  %1245 = vmatpush1.bf16.msra.mxu0 %v1223
  %1246 = vmatprep.subr.bf16.mxu0 0
  %1247 = vmatpush2.bf16.msra.mxu0 0
  %1248 = vmatprep.subr.bf16.mxu0 0
  %1249 = vmatpush2.bf16.msra.mxu0 0
  %1250 = vmatprep.subr.bf16.mxu0 0
  %1251 = vmatpush2.bf16.msra.mxu0 0
  %1252 = vmatprep.subr.bf16.mxu0 0
  %1253 = vmatpush2.bf16.msra.mxu0 0
  %1254 = vmatprep.subr.bf16.mxu0 0
  %1255 = vmatpush2.bf16.msra.mxu0 0
  %1256 = vmatprep.subr.bf16.mxu0 0
  %1257 = vmatpush2.bf16.msra.mxu0 0
  %1258 = vmatprep.subr.bf16.mxu0 0
  %1259 = vmatpush2.bf16.msra.mxu0 0
  %1260 = vmatprep.subr.bf16.mxu0 0
  %1261 = vmatpush2.bf16.msra.mxu0 0
  %1262 = vmatprep.mubr.bf16.mxu0 0
  %1263 = vmatmul.mubr.bf16.gmra.mxu0 %v1228
  %v1264 = vpop.f32.mrf.mxu0
  %v1265 = vadd.f32 %v1213, %v1264
  %v1266 = vpop.f32.mrf.mxu0
  %v1267 = vpop.f32.mrf.mxu0
  %v1268 = vadd.f32 %v1213, %v1267
  %v1269 = vpop.f32.mrf.mxu0
  %1270 = vdwg.mxu0
  %v1271 = vpack.c.bf16 %v1268, %v1265
  %v1272 = vpack.c.bf16 %v75, %v74
  %v1273 = vpack.c.bf16 %v76, %v76
  %v1274 = vld [vmem:[%s10] sm:$0xf]
  %v1275 = vld [vmem:[%s10 + $0x4] sm:$0xf]
  %v1276 = vld [vmem:[%s10 + $0x8] sm:$0xf]
  %v1277 = vld [vmem:[%s10 + $0xc] sm:$0xf]
  %v1278 = vld [vmem:[%s11] sm:$0x1]
  %v1280 = vlaneseq
  %v1281 = vshrl.u32 %v1280, 7
  %v1282 = vsub.s32 0, %v1281
  %v1283 = vrot.slane %v1278, %v1282
  %v1289 = vunpack.c.l.b16 %v1274
  %v1290 = vunpack.c.l.b16 %v1275
  %v1291 = vunpack.c.l.b16 %v1276
  %v1292 = vunpack.c.l.b16 %v1277
  %v1293 = vpack.c.b16 %v1290, %v1289
  %v1294 = vpack.c.b16 %v1292, %v1291
  %v1298 = vsel %vm101, %v1272, 0
  %v1301 = vsel %vm101, %v1273, 0
  %1303 = vmatprep.subr.bf16.mxu0 0
  %1304 = vmatpush1.bf16.msra.mxu0 0
  %1305 = vmatprep.subr.bf16.mxu0 0
  %1306 = vmatpush1.bf16.msra.mxu0 0
  %1307 = vmatprep.subr.bf16.mxu0 0
  %1308 = vmatpush1.bf16.msra.mxu0 0
  %1309 = vmatprep.subr.bf16.mxu0 0
  %1310 = vmatpush1.bf16.msra.mxu0 0
  %1311 = vmatprep.subr.bf16.mxu0 0
  %1312 = vmatpush1.bf16.msra.mxu0 0
  %1313 = vmatprep.subr.bf16.mxu0 0
  %1314 = vmatpush1.bf16.msra.mxu0 0
  %1315 = vmatprep.subr.bf16.mxu0 0
  %1316 = vmatpush1.bf16.msra.mxu0 %v1294
  %1317 = vmatprep.subr.bf16.mxu0 0
  %1318 = vmatpush1.bf16.msra.mxu0 %v1293
  %1319 = vmatprep.subr.bf16.mxu0 0
  %1320 = vmatpush2.bf16.msra.mxu0 0
  %1321 = vmatprep.subr.bf16.mxu0 0
  %1322 = vmatpush2.bf16.msra.mxu0 0
  %1323 = vmatprep.subr.bf16.mxu0 0
  %1324 = vmatpush2.bf16.msra.mxu0 0
  %1325 = vmatprep.subr.bf16.mxu0 0
  %1326 = vmatpush2.bf16.msra.mxu0 0
  %1327 = vmatprep.subr.bf16.mxu0 0
  %1328 = vmatpush2.bf16.msra.mxu0 0
  %1329 = vmatprep.subr.bf16.mxu0 0
  %1330 = vmatpush2.bf16.msra.mxu0 0
  %1331 = vmatprep.subr.bf16.mxu0 0
  %1332 = vmatpush2.bf16.msra.mxu0 0
  %1333 = vmatprep.subr.bf16.mxu0 0
  %1334 = vmatpush2.bf16.msra.mxu0 0
  %1335 = vmatprep.mubr.bf16.mxu0 0
  %1336 = vmatmul.mubr.bf16.gmra.mxu0 %v1298
  %v1337 = vpop.f32.mrf.mxu0
  %v1338 = vadd.f32 %v1283, %v1337
  %v1339 = vpop.f32.mrf.mxu0
  %v1340 = vpop.f32.mrf.mxu0
  %v1341 = vadd.f32 %v1283, %v1340
  %v1342 = vpop.f32.mrf.mxu0
  %1343 = vmatprep.mubr.bf16.mxu0 0
  %1344 = vmatmul.mubr.bf16.gmra.mxu0 %v1301
  %v1345 = vpop.f32.mrf.mxu0
  %v1346 = vadd.f32 %v1283, %v1345
  %v1347 = vpop.f32.mrf.mxu0
  %v1348 = vpop.f32.mrf.mxu0
  %v1349 = vpop.f32.mrf.mxu0
  %1350 = vdwg.mxu0
  %v1351 = vpack.c.bf16 %v1341, %v1338
  %v1352 = vpack.c.bf16 %v1346, %v1346
  %v1354 = vunpack.c.l.b16 %v1271
  %v1355 = vunpack.c.h.b16 %v1271
  %v1356 = vpack.c.b16 %v1354, %v1354
  %v1357 = vpack.c.b16 %v1355, %v1355
  %1358 = vrot.lane.b32.xlu0 %v1356, 120
  %v1359 = vpop.permute.xlu0 %1358
  %1360 = vrot.lane.b32.xlu0 %v1357, 120
  %v1361 = vpop.permute.xlu0 %1360
  %1362 = vrot.lane.b32.xlu0 %v1356, 112
  %v1363 = vpop.permute.xlu0 %1362
  %1364 = vrot.lane.b32.xlu0 %v1357, 112
  %v1365 = vpop.permute.xlu0 %1364
  %1366 = vrot.lane.b32.xlu0 %v1356, 104
  %v1367 = vpop.permute.xlu0 %1366
  %1368 = vrot.lane.b32.xlu0 %v1357, 104
  %v1369 = vpop.permute.xlu0 %1368
  %v1372 = vcombine.high %v1351, %v1351
  %v1374 = vunpack.c.l.s4 1966171168
  %v1375 = vunpack.c.0.s8 %v1374
  %v1376 = vlaneseq
  %v1377 = vshrl.u32 %v1376, 7
  %v1378 = vsub.s32 %v1375, %v1377
  %v1379 = vrot.slane %v1351, %v1378
  %v1381 = vunpack.c.l.s4 1966171168
  %v1382 = vunpack.c.0.s8 %v1381
  %v1383 = vlaneseq
  %v1384 = vshrl.u32 %v1383, 7
  %v1385 = vsub.s32 %v1382, %v1384
  %v1386 = vrot.slane %v1372, %v1385
  %v1387 = vcombine.high %v1379, %v1379
  %v1388 = vcombine.high %v1386, %v1386
  %v1390 = vunpack.c.l.s4 1966171168
  %v1391 = vunpack.c.0.s8 %v1390
  %v1392 = vlaneseq
  %v1393 = vshrl.u32 %v1392, 7
  %v1394 = vsub.s32 %v1391, %v1393
  %v1395 = vrot.slane %v1379, %v1394
  %v1397 = vunpack.c.l.s4 1966171168
  %v1398 = vunpack.c.0.s8 %v1397
  %v1399 = vlaneseq
  %v1400 = vshrl.u32 %v1399, 7
  %v1401 = vsub.s32 %v1398, %v1400
  %v1402 = vrot.slane %v1386, %v1401
  %v1404 = vunpack.c.l.s4 1966171168
  %v1405 = vunpack.c.0.s8 %v1404
  %v1406 = vlaneseq
  %v1407 = vshrl.u32 %v1406, 7
  %v1408 = vsub.s32 %v1405, %v1407
  %v1409 = vrot.slane %v1387, %v1408
  %v1411 = vunpack.c.l.s4 1966171168
  %v1412 = vunpack.c.0.s8 %v1411
  %v1413 = vlaneseq
  %v1414 = vshrl.u32 %v1413, 7
  %v1415 = vsub.s32 %v1412, %v1414
  %v1416 = vrot.slane %v1388, %v1415
  %v1417 = vcombine.high %v1395, %v1395
  %v1418 = vcombine.high %v1402, %v1402
  %v1419 = vcombine.high %v1409, %v1409
  %v1420 = vcombine.high %v1416, %v1416
  %v1422 = vunpack.c.l.s4 1966171168
  %v1423 = vunpack.c.0.s8 %v1422
  %v1424 = vlaneseq
  %v1425 = vshrl.u32 %v1424, 7
  %v1426 = vsub.s32 %v1423, %v1425
  %v1427 = vrot.slane %v1352, %v1426
  %v1428 = vcombine.high %v1427, %v1427
  %v1430 = vunpack.c.l.s4 1966171168
  %v1431 = vunpack.c.0.s8 %v1430
  %v1432 = vlaneseq
  %v1433 = vshrl.u32 %v1432, 7
  %v1434 = vsub.s32 %v1431, %v1433
  %v1435 = vrot.slane %v1427, %v1434
  %v1437 = vunpack.c.l.s4 1966171168
  %v1438 = vunpack.c.0.s8 %v1437
  %v1439 = vlaneseq
  %v1440 = vshrl.u32 %v1439, 7
  %v1441 = vsub.s32 %v1438, %v1440
  %v1442 = vrot.slane %v1428, %v1441
  %1443 = vrot.lane.b32.xlu0 %v1395, 120
  %v1444 = vpop.permute.xlu0 %1443
  %1445 = vrot.lane.b32.xlu0 %v1409, 120
  %v1446 = vpop.permute.xlu0 %1445
  %1447 = vrot.lane.b32.xlu0 %v1417, 120
  %v1448 = vpop.permute.xlu0 %1447
  %1449 = vrot.lane.b32.xlu0 %v1419, 120
  %v1450 = vpop.permute.xlu0 %1449
  %1451 = vrot.lane.b32.xlu0 %v1402, 120
  %v1452 = vpop.permute.xlu0 %1451
  %1453 = vrot.lane.b32.xlu0 %v1416, 120
  %v1454 = vpop.permute.xlu0 %1453
  %1455 = vrot.lane.b32.xlu0 %v1418, 120
  %v1456 = vpop.permute.xlu0 %1455
  %1457 = vrot.lane.b32.xlu0 %v1420, 120
  %v1458 = vpop.permute.xlu0 %1457
  %1459 = vrot.lane.b32.xlu0 %v1435, 120
  %v1460 = vpop.permute.xlu0 %1459
  %1461 = vrot.lane.b32.xlu0 %v1442, 120
  %v1462 = vpop.permute.xlu0 %1461
  %1463 = vrot.lane.b32.xlu0 %v1395, 112
  %v1464 = vpop.permute.xlu0 %1463
  %1465 = vrot.lane.b32.xlu0 %v1409, 112
  %v1466 = vpop.permute.xlu0 %1465
  %1467 = vrot.lane.b32.xlu0 %v1417, 112
  %v1468 = vpop.permute.xlu0 %1467
  %1469 = vrot.lane.b32.xlu0 %v1419, 112
  %v1470 = vpop.permute.xlu0 %1469
  %1471 = vrot.lane.b32.xlu0 %v1402, 112
  %v1472 = vpop.permute.xlu0 %1471
  %1473 = vrot.lane.b32.xlu0 %v1416, 112
  %v1474 = vpop.permute.xlu0 %1473
  %1475 = vrot.lane.b32.xlu0 %v1418, 112
  %v1476 = vpop.permute.xlu0 %1475
  %1477 = vrot.lane.b32.xlu0 %v1420, 112
  %v1478 = vpop.permute.xlu0 %1477
  %1479 = vrot.lane.b32.xlu0 %v1435, 112
  %v1480 = vpop.permute.xlu0 %1479
  %1481 = vrot.lane.b32.xlu0 %v1442, 112
  %v1482 = vpop.permute.xlu0 %1481
  %1483 = vrot.lane.b32.xlu0 %v1395, 104
  %v1484 = vpop.permute.xlu0 %1483
  %1485 = vrot.lane.b32.xlu0 %v1409, 104
  %v1486 = vpop.permute.xlu0 %1485
  %1487 = vrot.lane.b32.xlu0 %v1417, 104
  %v1488 = vpop.permute.xlu0 %1487
  %1489 = vrot.lane.b32.xlu0 %v1419, 104
  %v1490 = vpop.permute.xlu0 %1489
  %1491 = vrot.lane.b32.xlu0 %v1402, 104
  %v1492 = vpop.permute.xlu0 %1491
  %1493 = vrot.lane.b32.xlu0 %v1416, 104
  %v1494 = vpop.permute.xlu0 %1493
  %1495 = vrot.lane.b32.xlu0 %v1418, 104
  %v1496 = vpop.permute.xlu0 %1495
  %1497 = vrot.lane.b32.xlu0 %v1420, 104
  %v1498 = vpop.permute.xlu0 %1497
  %1499 = vrot.lane.b32.xlu0 %v1435, 104
  %v1500 = vpop.permute.xlu0 %1499
  %1501 = vrot.lane.b32.xlu0 %v1442, 104
  %v1502 = vpop.permute.xlu0 %1501
  %v1503 = vcombine.low %v1395, %v1409
  %v1504 = vcombine.low %v1417, %v1419
  %v1506 = vunpack.c.l.s4 1966171168
  %v1507 = vunpack.c.0.s8 %v1506
  %v1508 = vlaneseq
  %v1509 = vshrl.u32 %v1508, 7
  %v1510 = vsub.s32 %v1507, %v1509
  %v1511 = vrot.slane %v1503, %v1510
  %v1513 = vunpack.c.l.s4 1966171168
  %v1514 = vunpack.c.0.s8 %v1513
  %v1515 = vlaneseq
  %v1516 = vshrl.u32 %v1515, 7
  %v1517 = vsub.s32 %v1514, %v1516
  %v1518 = vrot.slane %v1504, %v1517
  %v1520 = vunpack.c.l.s4 1966171168
  %v1521 = vunpack.c.0.s8 %v1520
  %v1522 = vlaneseq
  %v1523 = vshrl.u32 %v1522, 7
  %v1524 = vsub.s32 %v1521, %v1523
  %v1525 = vrot.slane %v1402, %v1524
  %v1526 = vcombine.low %v1511, %v1518
  %v1528 = vunpack.c.l.s4 1966171168
  %v1529 = vunpack.c.0.s8 %v1528
  %v1530 = vlaneseq
  %v1531 = vshrl.u32 %v1530, 7
  %v1532 = vsub.s32 %v1529, %v1531
  %v1533 = vrot.slane %v1526, %v1532
  %v1535 = vunpack.c.l.s4 1966171168
  %v1536 = vunpack.c.0.s8 %v1535
  %v1537 = vlaneseq
  %v1538 = vshrl.u32 %v1537, 7
  %v1539 = vsub.s32 %v1536, %v1538
  %v1540 = vrot.slane %v1525, %v1539
  %v1541 = vcombine.low %v1533, %v1540
  %v1543 = vsel %vm166, %v1356, 0
  %v1546 = vsel %vm166, %v1541, 0
  %1548 = vmatprep.subr.bf16.mxu0 0
  %1549 = vmatpush1.bf16.xpose.msra.mxu0 0
  %1550 = vmatprep.subr.bf16.mxu0 0
  %1551 = vmatpush1.bf16.xpose.msra.mxu0 0
  %1552 = vmatprep.subr.bf16.mxu0 0
  %1553 = vmatpush1.bf16.xpose.msra.mxu0 0
  %1554 = vmatprep.subr.bf16.mxu0 0
  %1555 = vmatpush1.bf16.xpose.msra.mxu0 0
  %1556 = vmatprep.subr.bf16.mxu0 0
  %1557 = vmatpush1.bf16.xpose.msra.mxu0 0
  %1558 = vmatprep.subr.bf16.mxu0 0
  %1559 = vmatpush1.bf16.xpose.msra.mxu0 0
  %1560 = vmatprep.subr.bf16.mxu0 0
  %1561 = vmatpush1.bf16.xpose.msra.mxu0 0
  %1562 = vmatprep.subr.bf16.mxu0 0
  %1563 = vmatpush1.bf16.xpose.msra.mxu0 %v1546
  %1564 = vmatprep.subr.bf16.mxu0 0
  %1565 = vmatpush2.bf16.xpose.msra.mxu0 0
  %1566 = vmatprep.subr.bf16.mxu0 0
  %1567 = vmatpush2.bf16.xpose.msra.mxu0 0
  %1568 = vmatprep.subr.bf16.mxu0 0
  %1569 = vmatpush2.bf16.xpose.msra.mxu0 0
  %1570 = vmatprep.subr.bf16.mxu0 0
  %1571 = vmatpush2.bf16.xpose.msra.mxu0 0
  %1572 = vmatprep.subr.bf16.mxu0 0
  %1573 = vmatpush2.bf16.xpose.msra.mxu0 0
  %1574 = vmatprep.subr.bf16.mxu0 0
  %1575 = vmatpush2.bf16.xpose.msra.mxu0 0
  %1576 = vmatprep.subr.bf16.mxu0 0
  %1577 = vmatpush2.bf16.xpose.msra.mxu0 0
  %1578 = vmatprep.subr.bf16.mxu0 0
  %1579 = vmatpush2.bf16.xpose.msra.mxu0 0
  %1580 = vmatprep.mubr.bf16.mxu0 0
  %1581 = vmatmul.mubr.bf16.gmra.mxu0 %v1543
  %v1582 = vpop.f32.mrf.mxu0
  %v1583 = vadd.f32 0.0, %v1582
  %v1584 = vpop.f32.mrf.mxu0
  %v1585 = vpop.f32.mrf.mxu0
  %v1586 = vpop.f32.mrf.mxu0
  %1587 = vdwg.mxu0
  %v1588 = vcombine.low %v1416, %v1418
  %v1589 = vcombine.low %v1420, %v1435
  %v1591 = vunpack.c.l.s4 1966171168
  %v1592 = vunpack.c.0.s8 %v1591
  %v1593 = vlaneseq
  %v1594 = vshrl.u32 %v1593, 7
  %v1595 = vsub.s32 %v1592, %v1594
  %v1596 = vrot.slane %v1588, %v1595
  %v1598 = vunpack.c.l.s4 1966171168
  %v1599 = vunpack.c.0.s8 %v1598
  %v1600 = vlaneseq
  %v1601 = vshrl.u32 %v1600, 7
  %v1602 = vsub.s32 %v1599, %v1601
  %v1603 = vrot.slane %v1589, %v1602
  %v1605 = vunpack.c.l.s4 1966171168
  %v1606 = vunpack.c.0.s8 %v1605
  %v1607 = vlaneseq
  %v1608 = vshrl.u32 %v1607, 7
  %v1609 = vsub.s32 %v1606, %v1608
  %v1610 = vrot.slane %v1442, %v1609
  %v1611 = vcombine.low %v1596, %v1603
  %v1613 = vunpack.c.l.s4 1966171168
  %v1614 = vunpack.c.0.s8 %v1613
  %v1615 = vlaneseq
  %v1616 = vshrl.u32 %v1615, 7
  %v1617 = vsub.s32 %v1614, %v1616
  %v1618 = vrot.slane %v1611, %v1617
  %v1620 = vunpack.c.l.s4 1966171168
  %v1621 = vunpack.c.0.s8 %v1620
  %v1622 = vlaneseq
  %v1623 = vshrl.u32 %v1622, 7
  %v1624 = vsub.s32 %v1621, %v1623
  %v1625 = vrot.slane %v1610, %v1624
  %v1626 = vcombine.low %v1618, %v1625
  %v1628 = vsel %vm166, %v1357, 0
  %v1631 = vsel %vm166, %v1626, 0
  %1633 = vmatprep.subr.bf16.mxu0 0
  %1634 = vmatpush1.bf16.xpose.msra.mxu0 0
  %1635 = vmatprep.subr.bf16.mxu0 0
  %1636 = vmatpush1.bf16.xpose.msra.mxu0 0
  %1637 = vmatprep.subr.bf16.mxu0 0
  %1638 = vmatpush1.bf16.xpose.msra.mxu0 0
  %1639 = vmatprep.subr.bf16.mxu0 0
  %1640 = vmatpush1.bf16.xpose.msra.mxu0 0
  %1641 = vmatprep.subr.bf16.mxu0 0
  %1642 = vmatpush1.bf16.xpose.msra.mxu0 0
  %1643 = vmatprep.subr.bf16.mxu0 0
  %1644 = vmatpush1.bf16.xpose.msra.mxu0 0
  %1645 = vmatprep.subr.bf16.mxu0 0
  %1646 = vmatpush1.bf16.xpose.msra.mxu0 0
  %1647 = vmatprep.subr.bf16.mxu0 0
  %1648 = vmatpush1.bf16.xpose.msra.mxu0 %v1631
  %1649 = vmatprep.subr.bf16.mxu0 0
  %1650 = vmatpush2.bf16.xpose.msra.mxu0 0
  %1651 = vmatprep.subr.bf16.mxu0 0
  %1652 = vmatpush2.bf16.xpose.msra.mxu0 0
  %1653 = vmatprep.subr.bf16.mxu0 0
  %1654 = vmatpush2.bf16.xpose.msra.mxu0 0
  %1655 = vmatprep.subr.bf16.mxu0 0
  %1656 = vmatpush2.bf16.xpose.msra.mxu0 0
  %1657 = vmatprep.subr.bf16.mxu0 0
  %1658 = vmatpush2.bf16.xpose.msra.mxu0 0
  %1659 = vmatprep.subr.bf16.mxu0 0
  %1660 = vmatpush2.bf16.xpose.msra.mxu0 0
  %1661 = vmatprep.subr.bf16.mxu0 0
  %1662 = vmatpush2.bf16.xpose.msra.mxu0 0
  %1663 = vmatprep.subr.bf16.mxu0 0
  %1664 = vmatpush2.bf16.xpose.msra.mxu0 0
  %1665 = vmatprep.mubr.bf16.mxu0 0
  %1666 = vmatmul.mubr.bf16.gmra.mxu0 %v1628
  %v1667 = vpop.f32.mrf.mxu0
  %v1668 = vadd.f32 0.0, %v1667
  %v1669 = vpop.f32.mrf.mxu0
  %v1670 = vpop.f32.mrf.mxu0
  %v1671 = vpop.f32.mrf.mxu0
  %1672 = vdwg.mxu0
  %v1673 = vcombine.low %v1444, %v1446
  %v1674 = vcombine.low %v1448, %v1450
  %v1676 = vunpack.c.l.s4 1966171168
  %v1677 = vunpack.c.0.s8 %v1676
  %v1678 = vlaneseq
  %v1679 = vshrl.u32 %v1678, 7
  %v1680 = vsub.s32 %v1677, %v1679
  %v1681 = vrot.slane %v1673, %v1680
  %v1683 = vunpack.c.l.s4 1966171168
  %v1684 = vunpack.c.0.s8 %v1683
  %v1685 = vlaneseq
  %v1686 = vshrl.u32 %v1685, 7
  %v1687 = vsub.s32 %v1684, %v1686
  %v1688 = vrot.slane %v1674, %v1687
  %v1690 = vunpack.c.l.s4 1966171168
  %v1691 = vunpack.c.0.s8 %v1690
  %v1692 = vlaneseq
  %v1693 = vshrl.u32 %v1692, 7
  %v1694 = vsub.s32 %v1691, %v1693
  %v1695 = vrot.slane %v1452, %v1694
  %v1696 = vcombine.low %v1681, %v1688
  %v1698 = vunpack.c.l.s4 1966171168
  %v1699 = vunpack.c.0.s8 %v1698
  %v1700 = vlaneseq
  %v1701 = vshrl.u32 %v1700, 7
  %v1702 = vsub.s32 %v1699, %v1701
  %v1703 = vrot.slane %v1696, %v1702
  %v1705 = vunpack.c.l.s4 1966171168
  %v1706 = vunpack.c.0.s8 %v1705
  %v1707 = vlaneseq
  %v1708 = vshrl.u32 %v1707, 7
  %v1709 = vsub.s32 %v1706, %v1708
  %v1710 = vrot.slane %v1695, %v1709
  %v1711 = vcombine.low %v1703, %v1710
  %v1713 = vsel %vm166, %v1359, 0
  %v1716 = vsel %vm166, %v1711, 0
  %1718 = vmatprep.subr.bf16.mxu0 0
  %1719 = vmatpush1.bf16.xpose.msra.mxu0 0
  %1720 = vmatprep.subr.bf16.mxu0 0
  %1721 = vmatpush1.bf16.xpose.msra.mxu0 0
  %1722 = vmatprep.subr.bf16.mxu0 0
  %1723 = vmatpush1.bf16.xpose.msra.mxu0 0
  %1724 = vmatprep.subr.bf16.mxu0 0
  %1725 = vmatpush1.bf16.xpose.msra.mxu0 0
  %1726 = vmatprep.subr.bf16.mxu0 0
  %1727 = vmatpush1.bf16.xpose.msra.mxu0 0
  %1728 = vmatprep.subr.bf16.mxu0 0
  %1729 = vmatpush1.bf16.xpose.msra.mxu0 0
  %1730 = vmatprep.subr.bf16.mxu0 0
  %1731 = vmatpush1.bf16.xpose.msra.mxu0 0
  %1732 = vmatprep.subr.bf16.mxu0 0
  %1733 = vmatpush1.bf16.xpose.msra.mxu0 %v1716
  %1734 = vmatprep.subr.bf16.mxu0 0
  %1735 = vmatpush2.bf16.xpose.msra.mxu0 0
  %1736 = vmatprep.subr.bf16.mxu0 0
  %1737 = vmatpush2.bf16.xpose.msra.mxu0 0
  %1738 = vmatprep.subr.bf16.mxu0 0
  %1739 = vmatpush2.bf16.xpose.msra.mxu0 0
  %1740 = vmatprep.subr.bf16.mxu0 0
  %1741 = vmatpush2.bf16.xpose.msra.mxu0 0
  %1742 = vmatprep.subr.bf16.mxu0 0
  %1743 = vmatpush2.bf16.xpose.msra.mxu0 0
  %1744 = vmatprep.subr.bf16.mxu0 0
  %1745 = vmatpush2.bf16.xpose.msra.mxu0 0
  %1746 = vmatprep.subr.bf16.mxu0 0
  %1747 = vmatpush2.bf16.xpose.msra.mxu0 0
  %1748 = vmatprep.subr.bf16.mxu0 0
  %1749 = vmatpush2.bf16.xpose.msra.mxu0 0
  %1750 = vmatprep.mubr.bf16.mxu0 0
  %1751 = vmatmul.mubr.bf16.gmra.mxu0 %v1713
  %v1752 = vpop.f32.mrf.mxu0
  %v1753 = vadd.f32 0.0, %v1752
  %v1754 = vpop.f32.mrf.mxu0
  %v1755 = vpop.f32.mrf.mxu0
  %v1756 = vpop.f32.mrf.mxu0
  %1757 = vdwg.mxu0
  %v1758 = vcombine.low %v1454, %v1456
  %v1759 = vcombine.low %v1458, %v1460
  %v1761 = vunpack.c.l.s4 1966171168
  %v1762 = vunpack.c.0.s8 %v1761
  %v1763 = vlaneseq
  %v1764 = vshrl.u32 %v1763, 7
  %v1765 = vsub.s32 %v1762, %v1764
  %v1766 = vrot.slane %v1758, %v1765
  %v1768 = vunpack.c.l.s4 1966171168
  %v1769 = vunpack.c.0.s8 %v1768
  %v1770 = vlaneseq
  %v1771 = vshrl.u32 %v1770, 7
  %v1772 = vsub.s32 %v1769, %v1771
  %v1773 = vrot.slane %v1759, %v1772
  %v1775 = vunpack.c.l.s4 1966171168
  %v1776 = vunpack.c.0.s8 %v1775
  %v1777 = vlaneseq
  %v1778 = vshrl.u32 %v1777, 7
  %v1779 = vsub.s32 %v1776, %v1778
  %v1780 = vrot.slane %v1462, %v1779
  %v1781 = vcombine.low %v1766, %v1773
  %v1783 = vunpack.c.l.s4 1966171168
  %v1784 = vunpack.c.0.s8 %v1783
  %v1785 = vlaneseq
  %v1786 = vshrl.u32 %v1785, 7
  %v1787 = vsub.s32 %v1784, %v1786
  %v1788 = vrot.slane %v1781, %v1787
  %v1790 = vunpack.c.l.s4 1966171168
  %v1791 = vunpack.c.0.s8 %v1790
  %v1792 = vlaneseq
  %v1793 = vshrl.u32 %v1792, 7
  %v1794 = vsub.s32 %v1791, %v1793
  %v1795 = vrot.slane %v1780, %v1794
  %v1796 = vcombine.low %v1788, %v1795
  %v1798 = vsel %vm166, %v1361, 0
  %v1801 = vsel %vm166, %v1796, 0
  %1803 = vmatprep.subr.bf16.mxu0 0
  %1804 = vmatpush1.bf16.xpose.msra.mxu0 0
  %1805 = vmatprep.subr.bf16.mxu0 0
  %1806 = vmatpush1.bf16.xpose.msra.mxu0 0
  %1807 = vmatprep.subr.bf16.mxu0 0
  %1808 = vmatpush1.bf16.xpose.msra.mxu0 0
  %1809 = vmatprep.subr.bf16.mxu0 0
  %1810 = vmatpush1.bf16.xpose.msra.mxu0 0
  %1811 = vmatprep.subr.bf16.mxu0 0
  %1812 = vmatpush1.bf16.xpose.msra.mxu0 0
  %1813 = vmatprep.subr.bf16.mxu0 0
  %1814 = vmatpush1.bf16.xpose.msra.mxu0 0
  %1815 = vmatprep.subr.bf16.mxu0 0
  %1816 = vmatpush1.bf16.xpose.msra.mxu0 0
  %1817 = vmatprep.subr.bf16.mxu0 0
  %1818 = vmatpush1.bf16.xpose.msra.mxu0 %v1801
  %1819 = vmatprep.subr.bf16.mxu0 0
  %1820 = vmatpush2.bf16.xpose.msra.mxu0 0
  %1821 = vmatprep.subr.bf16.mxu0 0
  %1822 = vmatpush2.bf16.xpose.msra.mxu0 0
  %1823 = vmatprep.subr.bf16.mxu0 0
  %1824 = vmatpush2.bf16.xpose.msra.mxu0 0
  %1825 = vmatprep.subr.bf16.mxu0 0
  %1826 = vmatpush2.bf16.xpose.msra.mxu0 0
  %1827 = vmatprep.subr.bf16.mxu0 0
  %1828 = vmatpush2.bf16.xpose.msra.mxu0 0
  %1829 = vmatprep.subr.bf16.mxu0 0
  %1830 = vmatpush2.bf16.xpose.msra.mxu0 0
  %1831 = vmatprep.subr.bf16.mxu0 0
  %1832 = vmatpush2.bf16.xpose.msra.mxu0 0
  %1833 = vmatprep.subr.bf16.mxu0 0
  %1834 = vmatpush2.bf16.xpose.msra.mxu0 0
  %1835 = vmatprep.mubr.bf16.mxu0 0
  %1836 = vmatmul.mubr.bf16.gmra.mxu0 %v1798
  %v1837 = vpop.f32.mrf.mxu0
  %v1838 = vadd.f32 0.0, %v1837
  %v1839 = vpop.f32.mrf.mxu0
  %v1840 = vpop.f32.mrf.mxu0
  %v1841 = vpop.f32.mrf.mxu0
  %1842 = vdwg.mxu0
  %v1843 = vcombine.low %v1464, %v1466
  %v1844 = vcombine.low %v1468, %v1470
  %v1846 = vunpack.c.l.s4 1966171168
  %v1847 = vunpack.c.0.s8 %v1846
  %v1848 = vlaneseq
  %v1849 = vshrl.u32 %v1848, 7
  %v1850 = vsub.s32 %v1847, %v1849
  %v1851 = vrot.slane %v1843, %v1850
  %v1853 = vunpack.c.l.s4 1966171168
  %v1854 = vunpack.c.0.s8 %v1853
  %v1855 = vlaneseq
  %v1856 = vshrl.u32 %v1855, 7
  %v1857 = vsub.s32 %v1854, %v1856
  %v1858 = vrot.slane %v1844, %v1857
  %v1860 = vunpack.c.l.s4 1966171168
  %v1861 = vunpack.c.0.s8 %v1860
  %v1862 = vlaneseq
  %v1863 = vshrl.u32 %v1862, 7
  %v1864 = vsub.s32 %v1861, %v1863
  %v1865 = vrot.slane %v1472, %v1864
  %v1866 = vcombine.low %v1851, %v1858
  %v1868 = vunpack.c.l.s4 1966171168
  %v1869 = vunpack.c.0.s8 %v1868
  %v1870 = vlaneseq
  %v1871 = vshrl.u32 %v1870, 7
  %v1872 = vsub.s32 %v1869, %v1871
  %v1873 = vrot.slane %v1866, %v1872
  %v1875 = vunpack.c.l.s4 1966171168
  %v1876 = vunpack.c.0.s8 %v1875
  %v1877 = vlaneseq
  %v1878 = vshrl.u32 %v1877, 7
  %v1879 = vsub.s32 %v1876, %v1878
  %v1880 = vrot.slane %v1865, %v1879
  %v1881 = vcombine.low %v1873, %v1880
  %v1883 = vsel %vm166, %v1363, 0
  %v1886 = vsel %vm166, %v1881, 0
  %1888 = vmatprep.subr.bf16.mxu0 0
  %1889 = vmatpush1.bf16.xpose.msra.mxu0 0
  %1890 = vmatprep.subr.bf16.mxu0 0
  %1891 = vmatpush1.bf16.xpose.msra.mxu0 0
  %1892 = vmatprep.subr.bf16.mxu0 0
  %1893 = vmatpush1.bf16.xpose.msra.mxu0 0
  %1894 = vmatprep.subr.bf16.mxu0 0
  %1895 = vmatpush1.bf16.xpose.msra.mxu0 0
  %1896 = vmatprep.subr.bf16.mxu0 0
  %1897 = vmatpush1.bf16.xpose.msra.mxu0 0
  %1898 = vmatprep.subr.bf16.mxu0 0
  %1899 = vmatpush1.bf16.xpose.msra.mxu0 0
  %1900 = vmatprep.subr.bf16.mxu0 0
  %1901 = vmatpush1.bf16.xpose.msra.mxu0 0
  %1902 = vmatprep.subr.bf16.mxu0 0
  %1903 = vmatpush1.bf16.xpose.msra.mxu0 %v1886
  %1904 = vmatprep.subr.bf16.mxu0 0
  %1905 = vmatpush2.bf16.xpose.msra.mxu0 0
  %1906 = vmatprep.subr.bf16.mxu0 0
  %1907 = vmatpush2.bf16.xpose.msra.mxu0 0
  %1908 = vmatprep.subr.bf16.mxu0 0
  %1909 = vmatpush2.bf16.xpose.msra.mxu0 0
  %1910 = vmatprep.subr.bf16.mxu0 0
  %1911 = vmatpush2.bf16.xpose.msra.mxu0 0
  %1912 = vmatprep.subr.bf16.mxu0 0
  %1913 = vmatpush2.bf16.xpose.msra.mxu0 0
  %1914 = vmatprep.subr.bf16.mxu0 0
  %1915 = vmatpush2.bf16.xpose.msra.mxu0 0
  %1916 = vmatprep.subr.bf16.mxu0 0
  %1917 = vmatpush2.bf16.xpose.msra.mxu0 0
  %1918 = vmatprep.subr.bf16.mxu0 0
  %1919 = vmatpush2.bf16.xpose.msra.mxu0 0
  %1920 = vmatprep.mubr.bf16.mxu0 0
  %1921 = vmatmul.mubr.bf16.gmra.mxu0 %v1883
  %v1922 = vpop.f32.mrf.mxu0
  %v1923 = vadd.f32 0.0, %v1922
  %v1924 = vpop.f32.mrf.mxu0
  %v1925 = vpop.f32.mrf.mxu0
  %v1926 = vpop.f32.mrf.mxu0
  %1927 = vdwg.mxu0
  %v1928 = vcombine.low %v1474, %v1476
  %v1929 = vcombine.low %v1478, %v1480
  %v1931 = vunpack.c.l.s4 1966171168
  %v1932 = vunpack.c.0.s8 %v1931
  %v1933 = vlaneseq
  %v1934 = vshrl.u32 %v1933, 7
  %v1935 = vsub.s32 %v1932, %v1934
  %v1936 = vrot.slane %v1928, %v1935
  %v1938 = vunpack.c.l.s4 1966171168
  %v1939 = vunpack.c.0.s8 %v1938
  %v1940 = vlaneseq
  %v1941 = vshrl.u32 %v1940, 7
  %v1942 = vsub.s32 %v1939, %v1941
  %v1943 = vrot.slane %v1929, %v1942
  %v1945 = vunpack.c.l.s4 1966171168
  %v1946 = vunpack.c.0.s8 %v1945
  %v1947 = vlaneseq
  %v1948 = vshrl.u32 %v1947, 7
  %v1949 = vsub.s32 %v1946, %v1948
  %v1950 = vrot.slane %v1482, %v1949
  %v1951 = vcombine.low %v1936, %v1943
  %v1953 = vunpack.c.l.s4 1966171168
  %v1954 = vunpack.c.0.s8 %v1953
  %v1955 = vlaneseq
  %v1956 = vshrl.u32 %v1955, 7
  %v1957 = vsub.s32 %v1954, %v1956
  %v1958 = vrot.slane %v1951, %v1957
  %v1960 = vunpack.c.l.s4 1966171168
  %v1961 = vunpack.c.0.s8 %v1960
  %v1962 = vlaneseq
  %v1963 = vshrl.u32 %v1962, 7
  %v1964 = vsub.s32 %v1961, %v1963
  %v1965 = vrot.slane %v1950, %v1964
  %v1966 = vcombine.low %v1958, %v1965
  %v1968 = vsel %vm166, %v1365, 0
  %v1971 = vsel %vm166, %v1966, 0
  %1973 = vmatprep.subr.bf16.mxu0 0
  %1974 = vmatpush1.bf16.xpose.msra.mxu0 0
  %1975 = vmatprep.subr.bf16.mxu0 0
  %1976 = vmatpush1.bf16.xpose.msra.mxu0 0
  %1977 = vmatprep.subr.bf16.mxu0 0
  %1978 = vmatpush1.bf16.xpose.msra.mxu0 0
  %1979 = vmatprep.subr.bf16.mxu0 0
  %1980 = vmatpush1.bf16.xpose.msra.mxu0 0
  %1981 = vmatprep.subr.bf16.mxu0 0
  %1982 = vmatpush1.bf16.xpose.msra.mxu0 0
  %1983 = vmatprep.subr.bf16.mxu0 0
  %1984 = vmatpush1.bf16.xpose.msra.mxu0 0
  %1985 = vmatprep.subr.bf16.mxu0 0
  %1986 = vmatpush1.bf16.xpose.msra.mxu0 0
  %1987 = vmatprep.subr.bf16.mxu0 0
  %1988 = vmatpush1.bf16.xpose.msra.mxu0 %v1971
  %1989 = vmatprep.subr.bf16.mxu0 0
  %1990 = vmatpush2.bf16.xpose.msra.mxu0 0
  %1991 = vmatprep.subr.bf16.mxu0 0
  %1992 = vmatpush2.bf16.xpose.msra.mxu0 0
  %1993 = vmatprep.subr.bf16.mxu0 0
  %1994 = vmatpush2.bf16.xpose.msra.mxu0 0
  %1995 = vmatprep.subr.bf16.mxu0 0
  %1996 = vmatpush2.bf16.xpose.msra.mxu0 0
  %1997 = vmatprep.subr.bf16.mxu0 0
  %1998 = vmatpush2.bf16.xpose.msra.mxu0 0
  %1999 = vmatprep.subr.bf16.mxu0 0
  %2000 = vmatpush2.bf16.xpose.msra.mxu0 0
  %2001 = vmatprep.subr.bf16.mxu0 0
  %2002 = vmatpush2.bf16.xpose.msra.mxu0 0
  %2003 = vmatprep.subr.bf16.mxu0 0
  %2004 = vmatpush2.bf16.xpose.msra.mxu0 0
  %2005 = vmatprep.mubr.bf16.mxu0 0
  %2006 = vmatmul.mubr.bf16.gmra.mxu0 %v1968
  %v2007 = vpop.f32.mrf.mxu0
  %v2008 = vadd.f32 0.0, %v2007
  %v2009 = vpop.f32.mrf.mxu0
  %v2010 = vpop.f32.mrf.mxu0
  %v2011 = vpop.f32.mrf.mxu0
  %2012 = vdwg.mxu0
  %v2013 = vcombine.low %v1484, %v1486
  %v2014 = vcombine.low %v1488, %v1490
  %v2016 = vunpack.c.l.s4 1966171168
  %v2017 = vunpack.c.0.s8 %v2016
  %v2018 = vlaneseq
  %v2019 = vshrl.u32 %v2018, 7
  %v2020 = vsub.s32 %v2017, %v2019
  %v2021 = vrot.slane %v2013, %v2020
  %v2023 = vunpack.c.l.s4 1966171168
  %v2024 = vunpack.c.0.s8 %v2023
  %v2025 = vlaneseq
  %v2026 = vshrl.u32 %v2025, 7
  %v2027 = vsub.s32 %v2024, %v2026
  %v2028 = vrot.slane %v2014, %v2027
  %v2030 = vunpack.c.l.s4 1966171168
  %v2031 = vunpack.c.0.s8 %v2030
  %v2032 = vlaneseq
  %v2033 = vshrl.u32 %v2032, 7
  %v2034 = vsub.s32 %v2031, %v2033
  %v2035 = vrot.slane %v1492, %v2034
  %v2036 = vcombine.low %v2021, %v2028
  %v2038 = vunpack.c.l.s4 1966171168
  %v2039 = vunpack.c.0.s8 %v2038
  %v2040 = vlaneseq
  %v2041 = vshrl.u32 %v2040, 7
  %v2042 = vsub.s32 %v2039, %v2041
  %v2043 = vrot.slane %v2036, %v2042
  %v2045 = vunpack.c.l.s4 1966171168
  %v2046 = vunpack.c.0.s8 %v2045
  %v2047 = vlaneseq
  %v2048 = vshrl.u32 %v2047, 7
  %v2049 = vsub.s32 %v2046, %v2048
  %v2050 = vrot.slane %v2035, %v2049
  %v2051 = vcombine.low %v2043, %v2050
  %v2053 = vsel %vm166, %v1367, 0
  %v2056 = vsel %vm166, %v2051, 0
  %2058 = vmatprep.subr.bf16.mxu0 0
  %2059 = vmatpush1.bf16.xpose.msra.mxu0 0
  %2060 = vmatprep.subr.bf16.mxu0 0
  %2061 = vmatpush1.bf16.xpose.msra.mxu0 0
  %2062 = vmatprep.subr.bf16.mxu0 0
  %2063 = vmatpush1.bf16.xpose.msra.mxu0 0
  %2064 = vmatprep.subr.bf16.mxu0 0
  %2065 = vmatpush1.bf16.xpose.msra.mxu0 0
  %2066 = vmatprep.subr.bf16.mxu0 0
  %2067 = vmatpush1.bf16.xpose.msra.mxu0 0
  %2068 = vmatprep.subr.bf16.mxu0 0
  %2069 = vmatpush1.bf16.xpose.msra.mxu0 0
  %2070 = vmatprep.subr.bf16.mxu0 0
  %2071 = vmatpush1.bf16.xpose.msra.mxu0 0
  %2072 = vmatprep.subr.bf16.mxu0 0
  %2073 = vmatpush1.bf16.xpose.msra.mxu0 %v2056
  %2074 = vmatprep.subr.bf16.mxu0 0
  %2075 = vmatpush2.bf16.xpose.msra.mxu0 0
  %2076 = vmatprep.subr.bf16.mxu0 0
  %2077 = vmatpush2.bf16.xpose.msra.mxu0 0
  %2078 = vmatprep.subr.bf16.mxu0 0
  %2079 = vmatpush2.bf16.xpose.msra.mxu0 0
  %2080 = vmatprep.subr.bf16.mxu0 0
  %2081 = vmatpush2.bf16.xpose.msra.mxu0 0
  %2082 = vmatprep.subr.bf16.mxu0 0
  %2083 = vmatpush2.bf16.xpose.msra.mxu0 0
  %2084 = vmatprep.subr.bf16.mxu0 0
  %2085 = vmatpush2.bf16.xpose.msra.mxu0 0
  %2086 = vmatprep.subr.bf16.mxu0 0
  %2087 = vmatpush2.bf16.xpose.msra.mxu0 0
  %2088 = vmatprep.subr.bf16.mxu0 0
  %2089 = vmatpush2.bf16.xpose.msra.mxu0 0
  %2090 = vmatprep.mubr.bf16.mxu0 0
  %2091 = vmatmul.mubr.bf16.gmra.mxu0 %v2053
  %v2092 = vpop.f32.mrf.mxu0
  %v2093 = vadd.f32 0.0, %v2092
  %v2094 = vpop.f32.mrf.mxu0
  %v2095 = vpop.f32.mrf.mxu0
  %v2096 = vpop.f32.mrf.mxu0
  %2097 = vdwg.mxu0
  %v2098 = vcombine.low %v1494, %v1496
  %v2099 = vcombine.low %v1498, %v1500
  %v2101 = vunpack.c.l.s4 1966171168
  %v2102 = vunpack.c.0.s8 %v2101
  %v2103 = vlaneseq
  %v2104 = vshrl.u32 %v2103, 7
  %v2105 = vsub.s32 %v2102, %v2104
  %v2106 = vrot.slane %v2098, %v2105
  %v2108 = vunpack.c.l.s4 1966171168
  %v2109 = vunpack.c.0.s8 %v2108
  %v2110 = vlaneseq
  %v2111 = vshrl.u32 %v2110, 7
  %v2112 = vsub.s32 %v2109, %v2111
  %v2113 = vrot.slane %v2099, %v2112
  %v2115 = vunpack.c.l.s4 1966171168
  %v2116 = vunpack.c.0.s8 %v2115
  %v2117 = vlaneseq
  %v2118 = vshrl.u32 %v2117, 7
  %v2119 = vsub.s32 %v2116, %v2118
  %v2120 = vrot.slane %v1502, %v2119
  %v2121 = vcombine.low %v2106, %v2113
  %v2123 = vunpack.c.l.s4 1966171168
  %v2124 = vunpack.c.0.s8 %v2123
  %v2125 = vlaneseq
  %v2126 = vshrl.u32 %v2125, 7
  %v2127 = vsub.s32 %v2124, %v2126
  %v2128 = vrot.slane %v2121, %v2127
  %v2130 = vunpack.c.l.s4 1966171168
  %v2131 = vunpack.c.0.s8 %v2130
  %v2132 = vlaneseq
  %v2133 = vshrl.u32 %v2132, 7
  %v2134 = vsub.s32 %v2131, %v2133
  %v2135 = vrot.slane %v2120, %v2134
  %v2136 = vcombine.low %v2128, %v2135
  %v2138 = vsel %vm166, %v1369, 0
  %v2141 = vsel %vm166, %v2136, 0
  %2143 = vmatprep.subr.bf16.mxu0 0
  %2144 = vmatpush1.bf16.xpose.msra.mxu0 0
  %2145 = vmatprep.subr.bf16.mxu0 0
  %2146 = vmatpush1.bf16.xpose.msra.mxu0 0
  %2147 = vmatprep.subr.bf16.mxu0 0
  %2148 = vmatpush1.bf16.xpose.msra.mxu0 0
  %2149 = vmatprep.subr.bf16.mxu0 0
  %2150 = vmatpush1.bf16.xpose.msra.mxu0 0
  %2151 = vmatprep.subr.bf16.mxu0 0
  %2152 = vmatpush1.bf16.xpose.msra.mxu0 0
  %2153 = vmatprep.subr.bf16.mxu0 0
  %2154 = vmatpush1.bf16.xpose.msra.mxu0 0
  %2155 = vmatprep.subr.bf16.mxu0 0
  %2156 = vmatpush1.bf16.xpose.msra.mxu0 0
  %2157 = vmatprep.subr.bf16.mxu0 0
  %2158 = vmatpush1.bf16.xpose.msra.mxu0 %v2141
  %2159 = vmatprep.subr.bf16.mxu0 0
  %2160 = vmatpush2.bf16.xpose.msra.mxu0 0
  %2161 = vmatprep.subr.bf16.mxu0 0
  %2162 = vmatpush2.bf16.xpose.msra.mxu0 0
  %2163 = vmatprep.subr.bf16.mxu0 0
  %2164 = vmatpush2.bf16.xpose.msra.mxu0 0
  %2165 = vmatprep.subr.bf16.mxu0 0
  %2166 = vmatpush2.bf16.xpose.msra.mxu0 0
  %2167 = vmatprep.subr.bf16.mxu0 0
  %2168 = vmatpush2.bf16.xpose.msra.mxu0 0
  %2169 = vmatprep.subr.bf16.mxu0 0
  %2170 = vmatpush2.bf16.xpose.msra.mxu0 0
  %2171 = vmatprep.subr.bf16.mxu0 0
  %2172 = vmatpush2.bf16.xpose.msra.mxu0 0
  %2173 = vmatprep.subr.bf16.mxu0 0
  %2174 = vmatpush2.bf16.xpose.msra.mxu0 0
  %2175 = vmatprep.mubr.bf16.mxu0 0
  %2176 = vmatmul.mubr.bf16.gmra.mxu0 %v2138
  %v2177 = vpop.f32.mrf.mxu0
  %v2178 = vadd.f32 0.0, %v2177
  %v2179 = vpop.f32.mrf.mxu0
  %v2180 = vpop.f32.mrf.mxu0
  %v2181 = vpop.f32.mrf.mxu0
  %2182 = vdwg.mxu0
  %vm2183 = vcmask 80896
  %v2184 = vsel %vm2183, %v1583, -inf
  %2185 = vmax.xlane.f32.xlu0 %v2184
  %v2186 = vpop.xlane.xlu0 %2185
  %v2187 = vsel %vm2183, %v1668, -inf
  %2188 = vmax.xlane.f32.xlu0 %v2187
  %v2189 = vpop.xlane.xlu0 %2188
  %v2190 = vsel %vm2183, %v1753, -inf
  %2191 = vmax.xlane.f32.xlu0 %v2190
  %v2192 = vpop.xlane.xlu0 %2191
  %v2193 = vsel %vm2183, %v1838, -inf
  %2194 = vmax.xlane.f32.xlu0 %v2193
  %v2195 = vpop.xlane.xlu0 %2194
  %v2196 = vsel %vm2183, %v1923, -inf
  %2197 = vmax.xlane.f32.xlu0 %v2196
  %v2198 = vpop.xlane.xlu0 %2197
  %v2199 = vsel %vm2183, %v2008, -inf
  %2200 = vmax.xlane.f32.xlu0 %v2199
  %v2201 = vpop.xlane.xlu0 %2200
  %v2202 = vsel %vm2183, %v2093, -inf
  %2203 = vmax.xlane.f32.xlu0 %v2202
  %v2204 = vpop.xlane.xlu0 %2203
  %v2205 = vsel %vm2183, %v2178, -inf
  %2206 = vmax.xlane.f32.xlu0 %v2205
  %v2207 = vpop.xlane.xlu0 %2206
  %v2208 = vsub.f32 %v1583, %v2186
  %v2209 = vsub.f32 %v1668, %v2189
  %v2210 = vsub.f32 %v1753, %v2192
  %v2211 = vsub.f32 %v1838, %v2195
  %v2212 = vsub.f32 %v1923, %v2198
  %v2213 = vsub.f32 %v2008, %v2201
  %v2214 = vsub.f32 %v2093, %v2204
  %v2215 = vsub.f32 %v2178, %v2207
  %v2216 = vmul.f32 %v2208, 1.442695
  %v2217 = vpow.pop %v2216
  %v2218 = vmul.f32 %v2209, 1.442695
  %v2219 = vpow.pop %v2218
  %v2220 = vmul.f32 %v2210, 1.442695
  %v2221 = vpow.pop %v2220
  %v2222 = vmul.f32 %v2211, 1.442695
  %v2223 = vpow.pop %v2222
  %v2224 = vmul.f32 %v2212, 1.442695
  %v2225 = vpow.pop %v2224
  %v2226 = vmul.f32 %v2213, 1.442695
  %v2227 = vpow.pop %v2226
  %v2228 = vmul.f32 %v2214, 1.442695
  %v2229 = vpow.pop %v2228
  %v2230 = vmul.f32 %v2215, 1.442695
  %v2231 = vpow.pop %v2230
  %v2232 = vsel %vm2183, %v2217, 0.0
  %2233 = vadd.xlane.f32.xlu0 %v2232
  %v2234 = vpop.xlane.xlu0 %2233
  %v2235 = vsel %vm2183, %v2219, 0.0
  %2236 = vadd.xlane.f32.xlu0 %v2235
  %v2237 = vpop.xlane.xlu0 %2236
  %v2238 = vsel %vm2183, %v2221, 0.0
  %2239 = vadd.xlane.f32.xlu0 %v2238
  %v2240 = vpop.xlane.xlu0 %2239
  %v2241 = vsel %vm2183, %v2223, 0.0
  %2242 = vadd.xlane.f32.xlu0 %v2241
  %v2243 = vpop.xlane.xlu0 %2242
  %v2244 = vsel %vm2183, %v2225, 0.0
  %2245 = vadd.xlane.f32.xlu0 %v2244
  %v2246 = vpop.xlane.xlu0 %2245
  %v2247 = vsel %vm2183, %v2227, 0.0
  %2248 = vadd.xlane.f32.xlu0 %v2247
  %v2249 = vpop.xlane.xlu0 %2248
  %v2250 = vsel %vm2183, %v2229, 0.0
  %2251 = vadd.xlane.f32.xlu0 %v2250
  %v2252 = vpop.xlane.xlu0 %2251
  %v2253 = vsel %vm2183, %v2231, 0.0
  %2254 = vadd.xlane.f32.xlu0 %v2253
  %v2255 = vpop.xlane.xlu0 %2254
  %v2256 = vrcp.pop %v2234
  %v2257 = vrcp.pop %v2237
  %v2258 = vrcp.pop %v2240
  %v2259 = vrcp.pop %v2243
  %v2260 = vrcp.pop %v2246
  %v2261 = vrcp.pop %v2249
  %v2262 = vrcp.pop %v2252
  %v2263 = vrcp.pop %v2255
  %v2264 = vmul.f32 %v2217, %v2256
  %v2265 = vmul.f32 %v2219, %v2257
  %v2266 = vmul.f32 %v2221, %v2258
  %v2267 = vmul.f32 %v2223, %v2259
  %v2268 = vmul.f32 %v2225, %v2260
  %v2269 = vmul.f32 %v2227, %v2261
  %v2270 = vmul.f32 %v2229, %v2262
  %v2271 = vmul.f32 %v2231, %v2263
  %v2272 = vpack.c.bf16 %v2264, %v2264
  %v2273 = vpack.c.bf16 %v2265, %v2265
  %v2274 = vpack.c.bf16 %v2266, %v2266
  %v2275 = vpack.c.bf16 %v2267, %v2267
  %v2276 = vpack.c.bf16 %v2268, %v2268
  %v2277 = vpack.c.bf16 %v2269, %v2269
  %v2278 = vpack.c.bf16 %v2270, %v2270
  %v2279 = vpack.c.bf16 %v2271, %v2271
  %2280 = vrot.lane.b32.xlu0 %v1541, 96
  %v2281 = vpop.permute.xlu0 %2280
  %v2283 = vsel %vm2183, %v2272, 0
  %vm2285 = vcmask 1044480
  %v2287 = vsel %vm2285, %v2281, 0
  %2289 = vmatprep.subr.bf16.mxu0 0
  %2290 = vmatpush1.bf16.msra.mxu0 0
  %2291 = vmatprep.subr.bf16.mxu0 0
  %2292 = vmatpush1.bf16.msra.mxu0 0
  %2293 = vmatprep.subr.bf16.mxu0 0
  %2294 = vmatpush1.bf16.msra.mxu0 0
  %2295 = vmatprep.subr.bf16.mxu0 0
  %2296 = vmatpush1.bf16.msra.mxu0 0
  %2297 = vmatprep.subr.bf16.mxu0 0
  %2298 = vmatpush1.bf16.msra.mxu0 0
  %2299 = vmatprep.subr.bf16.mxu0 0
  %2300 = vmatpush1.bf16.msra.mxu0 0
  %2301 = vmatprep.subr.bf16.mxu0 0
  %2302 = vmatpush1.bf16.msra.mxu0 0
  %2303 = vmatprep.subr.bf16.mxu0 0
  %2304 = vmatpush1.bf16.msra.mxu0 %v2287
  %2305 = vmatprep.subr.bf16.mxu0 0
  %2306 = vmatpush2.bf16.msra.mxu0 0
  %2307 = vmatprep.subr.bf16.mxu0 0
  %2308 = vmatpush2.bf16.msra.mxu0 0
  %2309 = vmatprep.subr.bf16.mxu0 0
  %2310 = vmatpush2.bf16.msra.mxu0 0
  %2311 = vmatprep.subr.bf16.mxu0 0
  %2312 = vmatpush2.bf16.msra.mxu0 0
  %2313 = vmatprep.subr.bf16.mxu0 0
  %2314 = vmatpush2.bf16.msra.mxu0 0
  %2315 = vmatprep.subr.bf16.mxu0 0
  %2316 = vmatpush2.bf16.msra.mxu0 0
  %2317 = vmatprep.subr.bf16.mxu0 0
  %2318 = vmatpush2.bf16.msra.mxu0 0
  %2319 = vmatprep.subr.bf16.mxu0 0
  %2320 = vmatpush2.bf16.msra.mxu0 0
  %2321 = vmatprep.mubr.bf16.mxu0 0
  %2322 = vmatmul.mubr.bf16.gmra.mxu0 %v2283
  %v2323 = vpop.f32.mrf.mxu0
  %v2324 = vadd.f32 0.0, %v2323
  %v2325 = vpop.f32.mrf.mxu0
  %v2326 = vpop.f32.mrf.mxu0
  %v2327 = vpop.f32.mrf.mxu0
  %2328 = vdwg.mxu0
  %2329 = vrot.lane.b32.xlu0 %v1626, 96
  %v2330 = vpop.permute.xlu0 %2329
  %v2332 = vsel %vm2183, %v2273, 0
  %v2335 = vsel %vm2285, %v2330, 0
  %2337 = vmatprep.subr.bf16.mxu0 0
  %2338 = vmatpush1.bf16.msra.mxu0 0
  %2339 = vmatprep.subr.bf16.mxu0 0
  %2340 = vmatpush1.bf16.msra.mxu0 0
  %2341 = vmatprep.subr.bf16.mxu0 0
  %2342 = vmatpush1.bf16.msra.mxu0 0
  %2343 = vmatprep.subr.bf16.mxu0 0
  %2344 = vmatpush1.bf16.msra.mxu0 0
  %2345 = vmatprep.subr.bf16.mxu0 0
  %2346 = vmatpush1.bf16.msra.mxu0 0
  %2347 = vmatprep.subr.bf16.mxu0 0
  %2348 = vmatpush1.bf16.msra.mxu0 0
  %2349 = vmatprep.subr.bf16.mxu0 0
  %2350 = vmatpush1.bf16.msra.mxu0 0
  %2351 = vmatprep.subr.bf16.mxu0 0
  %2352 = vmatpush1.bf16.msra.mxu0 %v2335
  %2353 = vmatprep.subr.bf16.mxu0 0
  %2354 = vmatpush2.bf16.msra.mxu0 0
  %2355 = vmatprep.subr.bf16.mxu0 0
  %2356 = vmatpush2.bf16.msra.mxu0 0
  %2357 = vmatprep.subr.bf16.mxu0 0
  %2358 = vmatpush2.bf16.msra.mxu0 0
  %2359 = vmatprep.subr.bf16.mxu0 0
  %2360 = vmatpush2.bf16.msra.mxu0 0
  %2361 = vmatprep.subr.bf16.mxu0 0
  %2362 = vmatpush2.bf16.msra.mxu0 0
  %2363 = vmatprep.subr.bf16.mxu0 0
  %2364 = vmatpush2.bf16.msra.mxu0 0
  %2365 = vmatprep.subr.bf16.mxu0 0
  %2366 = vmatpush2.bf16.msra.mxu0 0
  %2367 = vmatprep.subr.bf16.mxu0 0
  %2368 = vmatpush2.bf16.msra.mxu0 0
  %2369 = vmatprep.mubr.bf16.mxu0 0
  %2370 = vmatmul.mubr.bf16.gmra.mxu0 %v2332
  %v2371 = vpop.f32.mrf.mxu0
  %v2372 = vadd.f32 0.0, %v2371
  %v2373 = vpop.f32.mrf.mxu0
  %v2374 = vpop.f32.mrf.mxu0
  %v2375 = vpop.f32.mrf.mxu0
  %2376 = vdwg.mxu0
  %2377 = vrot.lane.b32.xlu0 %v1711, 96
  %v2378 = vpop.permute.xlu0 %2377
  %v2380 = vsel %vm2183, %v2274, 0
  %v2383 = vsel %vm2285, %v2378, 0
  %2385 = vmatprep.subr.bf16.mxu0 0
  %2386 = vmatpush1.bf16.msra.mxu0 0
  %2387 = vmatprep.subr.bf16.mxu0 0
  %2388 = vmatpush1.bf16.msra.mxu0 0
  %2389 = vmatprep.subr.bf16.mxu0 0
  %2390 = vmatpush1.bf16.msra.mxu0 0
  %2391 = vmatprep.subr.bf16.mxu0 0
  %2392 = vmatpush1.bf16.msra.mxu0 0
  %2393 = vmatprep.subr.bf16.mxu0 0
  %2394 = vmatpush1.bf16.msra.mxu0 0
  %2395 = vmatprep.subr.bf16.mxu0 0
  %2396 = vmatpush1.bf16.msra.mxu0 0
  %2397 = vmatprep.subr.bf16.mxu0 0
  %2398 = vmatpush1.bf16.msra.mxu0 0
  %2399 = vmatprep.subr.bf16.mxu0 0
  %2400 = vmatpush1.bf16.msra.mxu0 %v2383
  %2401 = vmatprep.subr.bf16.mxu0 0
  %2402 = vmatpush2.bf16.msra.mxu0 0
  %2403 = vmatprep.subr.bf16.mxu0 0
  %2404 = vmatpush2.bf16.msra.mxu0 0
  %2405 = vmatprep.subr.bf16.mxu0 0
  %2406 = vmatpush2.bf16.msra.mxu0 0
  %2407 = vmatprep.subr.bf16.mxu0 0
  %2408 = vmatpush2.bf16.msra.mxu0 0
  %2409 = vmatprep.subr.bf16.mxu0 0
  %2410 = vmatpush2.bf16.msra.mxu0 0
  %2411 = vmatprep.subr.bf16.mxu0 0
  %2412 = vmatpush2.bf16.msra.mxu0 0
  %2413 = vmatprep.subr.bf16.mxu0 0
  %2414 = vmatpush2.bf16.msra.mxu0 0
  %2415 = vmatprep.subr.bf16.mxu0 0
  %2416 = vmatpush2.bf16.msra.mxu0 0
  %2417 = vmatprep.mubr.bf16.mxu0 0
  %2418 = vmatmul.mubr.bf16.gmra.mxu0 %v2380
  %v2419 = vpop.f32.mrf.mxu0
  %v2420 = vadd.f32 0.0, %v2419
  %v2421 = vpop.f32.mrf.mxu0
  %v2422 = vpop.f32.mrf.mxu0
  %v2423 = vpop.f32.mrf.mxu0
  %2424 = vdwg.mxu0
  %2425 = vrot.lane.b32.xlu0 %v1796, 96
  %v2426 = vpop.permute.xlu0 %2425
  %v2428 = vsel %vm2183, %v2275, 0
  %v2431 = vsel %vm2285, %v2426, 0
  %2433 = vmatprep.subr.bf16.mxu0 0
  %2434 = vmatpush1.bf16.msra.mxu0 0
  %2435 = vmatprep.subr.bf16.mxu0 0
  %2436 = vmatpush1.bf16.msra.mxu0 0
  %2437 = vmatprep.subr.bf16.mxu0 0
  %2438 = vmatpush1.bf16.msra.mxu0 0
  %2439 = vmatprep.subr.bf16.mxu0 0
  %2440 = vmatpush1.bf16.msra.mxu0 0
  %2441 = vmatprep.subr.bf16.mxu0 0
  %2442 = vmatpush1.bf16.msra.mxu0 0
  %2443 = vmatprep.subr.bf16.mxu0 0
  %2444 = vmatpush1.bf16.msra.mxu0 0
  %2445 = vmatprep.subr.bf16.mxu0 0
  %2446 = vmatpush1.bf16.msra.mxu0 0
  %2447 = vmatprep.subr.bf16.mxu0 0
  %2448 = vmatpush1.bf16.msra.mxu0 %v2431
  %2449 = vmatprep.subr.bf16.mxu0 0
  %2450 = vmatpush2.bf16.msra.mxu0 0
  %2451 = vmatprep.subr.bf16.mxu0 0
  %2452 = vmatpush2.bf16.msra.mxu0 0
  %2453 = vmatprep.subr.bf16.mxu0 0
  %2454 = vmatpush2.bf16.msra.mxu0 0
  %2455 = vmatprep.subr.bf16.mxu0 0
  %2456 = vmatpush2.bf16.msra.mxu0 0
  %2457 = vmatprep.subr.bf16.mxu0 0
  %2458 = vmatpush2.bf16.msra.mxu0 0
  %2459 = vmatprep.subr.bf16.mxu0 0
  %2460 = vmatpush2.bf16.msra.mxu0 0
  %2461 = vmatprep.subr.bf16.mxu0 0
  %2462 = vmatpush2.bf16.msra.mxu0 0
  %2463 = vmatprep.subr.bf16.mxu0 0
  %2464 = vmatpush2.bf16.msra.mxu0 0
  %2465 = vmatprep.mubr.bf16.mxu0 0
  %2466 = vmatmul.mubr.bf16.gmra.mxu0 %v2428
  %v2467 = vpop.f32.mrf.mxu0
  %v2468 = vadd.f32 0.0, %v2467
  %v2469 = vpop.f32.mrf.mxu0
  %v2470 = vpop.f32.mrf.mxu0
  %v2471 = vpop.f32.mrf.mxu0
  %2472 = vdwg.mxu0
  %2473 = vrot.lane.b32.xlu0 %v1881, 96
  %v2474 = vpop.permute.xlu0 %2473
  %v2476 = vsel %vm2183, %v2276, 0
  %v2479 = vsel %vm2285, %v2474, 0
  %2481 = vmatprep.subr.bf16.mxu0 0
  %2482 = vmatpush1.bf16.msra.mxu0 0
  %2483 = vmatprep.subr.bf16.mxu0 0
  %2484 = vmatpush1.bf16.msra.mxu0 0
  %2485 = vmatprep.subr.bf16.mxu0 0
  %2486 = vmatpush1.bf16.msra.mxu0 0
  %2487 = vmatprep.subr.bf16.mxu0 0
  %2488 = vmatpush1.bf16.msra.mxu0 0
  %2489 = vmatprep.subr.bf16.mxu0 0
  %2490 = vmatpush1.bf16.msra.mxu0 0
  %2491 = vmatprep.subr.bf16.mxu0 0
  %2492 = vmatpush1.bf16.msra.mxu0 0
  %2493 = vmatprep.subr.bf16.mxu0 0
  %2494 = vmatpush1.bf16.msra.mxu0 0
  %2495 = vmatprep.subr.bf16.mxu0 0
  %2496 = vmatpush1.bf16.msra.mxu0 %v2479
  %2497 = vmatprep.subr.bf16.mxu0 0
  %2498 = vmatpush2.bf16.msra.mxu0 0
  %2499 = vmatprep.subr.bf16.mxu0 0
  %2500 = vmatpush2.bf16.msra.mxu0 0
  %2501 = vmatprep.subr.bf16.mxu0 0
  %2502 = vmatpush2.bf16.msra.mxu0 0
  %2503 = vmatprep.subr.bf16.mxu0 0
  %2504 = vmatpush2.bf16.msra.mxu0 0
  %2505 = vmatprep.subr.bf16.mxu0 0
  %2506 = vmatpush2.bf16.msra.mxu0 0
  %2507 = vmatprep.subr.bf16.mxu0 0
  %2508 = vmatpush2.bf16.msra.mxu0 0
  %2509 = vmatprep.subr.bf16.mxu0 0
  %2510 = vmatpush2.bf16.msra.mxu0 0
  %2511 = vmatprep.subr.bf16.mxu0 0
  %2512 = vmatpush2.bf16.msra.mxu0 0
  %2513 = vmatprep.mubr.bf16.mxu0 0
  %2514 = vmatmul.mubr.bf16.gmra.mxu0 %v2476
  %v2515 = vpop.f32.mrf.mxu0
  %v2516 = vadd.f32 0.0, %v2515
  %v2517 = vpop.f32.mrf.mxu0
  %v2518 = vpop.f32.mrf.mxu0
  %v2519 = vpop.f32.mrf.mxu0
  %2520 = vdwg.mxu0
  %2521 = vrot.lane.b32.xlu0 %v1966, 96
  %v2522 = vpop.permute.xlu0 %2521
  %v2524 = vsel %vm2183, %v2277, 0
  %v2527 = vsel %vm2285, %v2522, 0
  %2529 = vmatprep.subr.bf16.mxu0 0
  %2530 = vmatpush1.bf16.msra.mxu0 0
  %2531 = vmatprep.subr.bf16.mxu0 0
  %2532 = vmatpush1.bf16.msra.mxu0 0
  %2533 = vmatprep.subr.bf16.mxu0 0
  %2534 = vmatpush1.bf16.msra.mxu0 0
  %2535 = vmatprep.subr.bf16.mxu0 0
  %2536 = vmatpush1.bf16.msra.mxu0 0
  %2537 = vmatprep.subr.bf16.mxu0 0
  %2538 = vmatpush1.bf16.msra.mxu0 0
  %2539 = vmatprep.subr.bf16.mxu0 0
  %2540 = vmatpush1.bf16.msra.mxu0 0
  %2541 = vmatprep.subr.bf16.mxu0 0
  %2542 = vmatpush1.bf16.msra.mxu0 0
  %2543 = vmatprep.subr.bf16.mxu0 0
  %2544 = vmatpush1.bf16.msra.mxu0 %v2527
  %2545 = vmatprep.subr.bf16.mxu0 0
  %2546 = vmatpush2.bf16.msra.mxu0 0
  %2547 = vmatprep.subr.bf16.mxu0 0
  %2548 = vmatpush2.bf16.msra.mxu0 0
  %2549 = vmatprep.subr.bf16.mxu0 0
  %2550 = vmatpush2.bf16.msra.mxu0 0
  %2551 = vmatprep.subr.bf16.mxu0 0
  %2552 = vmatpush2.bf16.msra.mxu0 0
  %2553 = vmatprep.subr.bf16.mxu0 0
  %2554 = vmatpush2.bf16.msra.mxu0 0
  %2555 = vmatprep.subr.bf16.mxu0 0
  %2556 = vmatpush2.bf16.msra.mxu0 0
  %2557 = vmatprep.subr.bf16.mxu0 0
  %2558 = vmatpush2.bf16.msra.mxu0 0
  %2559 = vmatprep.subr.bf16.mxu0 0
  %2560 = vmatpush2.bf16.msra.mxu0 0
  %2561 = vmatprep.mubr.bf16.mxu0 0
  %2562 = vmatmul.mubr.bf16.gmra.mxu0 %v2524
  %v2563 = vpop.f32.mrf.mxu0
  %v2564 = vadd.f32 0.0, %v2563
  %v2565 = vpop.f32.mrf.mxu0
  %v2566 = vpop.f32.mrf.mxu0
  %v2567 = vpop.f32.mrf.mxu0
  %2568 = vdwg.mxu0
  %2569 = vrot.lane.b32.xlu0 %v2051, 96
  %v2570 = vpop.permute.xlu0 %2569
  %v2572 = vsel %vm2183, %v2278, 0
  %v2575 = vsel %vm2285, %v2570, 0
  %2577 = vmatprep.subr.bf16.mxu0 0
  %2578 = vmatpush1.bf16.msra.mxu0 0
  %2579 = vmatprep.subr.bf16.mxu0 0
  %2580 = vmatpush1.bf16.msra.mxu0 0
  %2581 = vmatprep.subr.bf16.mxu0 0
  %2582 = vmatpush1.bf16.msra.mxu0 0
  %2583 = vmatprep.subr.bf16.mxu0 0
  %2584 = vmatpush1.bf16.msra.mxu0 0
  %2585 = vmatprep.subr.bf16.mxu0 0
  %2586 = vmatpush1.bf16.msra.mxu0 0
  %2587 = vmatprep.subr.bf16.mxu0 0
  %2588 = vmatpush1.bf16.msra.mxu0 0
  %2589 = vmatprep.subr.bf16.mxu0 0
  %2590 = vmatpush1.bf16.msra.mxu0 0
  %2591 = vmatprep.subr.bf16.mxu0 0
  %2592 = vmatpush1.bf16.msra.mxu0 %v2575
  %2593 = vmatprep.subr.bf16.mxu0 0
  %2594 = vmatpush2.bf16.msra.mxu0 0
  %2595 = vmatprep.subr.bf16.mxu0 0
  %2596 = vmatpush2.bf16.msra.mxu0 0
  %2597 = vmatprep.subr.bf16.mxu0 0
  %2598 = vmatpush2.bf16.msra.mxu0 0
  %2599 = vmatprep.subr.bf16.mxu0 0
  %2600 = vmatpush2.bf16.msra.mxu0 0
  %2601 = vmatprep.subr.bf16.mxu0 0
  %2602 = vmatpush2.bf16.msra.mxu0 0
  %2603 = vmatprep.subr.bf16.mxu0 0
  %2604 = vmatpush2.bf16.msra.mxu0 0
  %2605 = vmatprep.subr.bf16.mxu0 0
  %2606 = vmatpush2.bf16.msra.mxu0 0
  %2607 = vmatprep.subr.bf16.mxu0 0
  %2608 = vmatpush2.bf16.msra.mxu0 0
  %2609 = vmatprep.mubr.bf16.mxu0 0
  %2610 = vmatmul.mubr.bf16.gmra.mxu0 %v2572
  %v2611 = vpop.f32.mrf.mxu0
  %v2612 = vadd.f32 0.0, %v2611
  %v2613 = vpop.f32.mrf.mxu0
  %v2614 = vpop.f32.mrf.mxu0
  %v2615 = vpop.f32.mrf.mxu0
  %2616 = vdwg.mxu0
  %2617 = vrot.lane.b32.xlu0 %v2136, 96
  %v2618 = vpop.permute.xlu0 %2617
  %v2620 = vsel %vm2183, %v2279, 0
  %v2623 = vsel %vm2285, %v2618, 0
  %2625 = vmatprep.subr.bf16.mxu0 0
  %2626 = vmatpush1.bf16.msra.mxu0 0
  %2627 = vmatprep.subr.bf16.mxu0 0
  %2628 = vmatpush1.bf16.msra.mxu0 0
  %2629 = vmatprep.subr.bf16.mxu0 0
  %2630 = vmatpush1.bf16.msra.mxu0 0
  %2631 = vmatprep.subr.bf16.mxu0 0
  %2632 = vmatpush1.bf16.msra.mxu0 0
  %2633 = vmatprep.subr.bf16.mxu0 0
  %2634 = vmatpush1.bf16.msra.mxu0 0
  %2635 = vmatprep.subr.bf16.mxu0 0
  %2636 = vmatpush1.bf16.msra.mxu0 0
  %2637 = vmatprep.subr.bf16.mxu0 0
  %2638 = vmatpush1.bf16.msra.mxu0 0
  %2639 = vmatprep.subr.bf16.mxu0 0
  %2640 = vmatpush1.bf16.msra.mxu0 %v2623
  %2641 = vmatprep.subr.bf16.mxu0 0
  %2642 = vmatpush2.bf16.msra.mxu0 0
  %2643 = vmatprep.subr.bf16.mxu0 0
  %2644 = vmatpush2.bf16.msra.mxu0 0
  %2645 = vmatprep.subr.bf16.mxu0 0
  %2646 = vmatpush2.bf16.msra.mxu0 0
  %2647 = vmatprep.subr.bf16.mxu0 0
  %2648 = vmatpush2.bf16.msra.mxu0 0
  %2649 = vmatprep.subr.bf16.mxu0 0
  %2650 = vmatpush2.bf16.msra.mxu0 0
  %2651 = vmatprep.subr.bf16.mxu0 0
  %2652 = vmatpush2.bf16.msra.mxu0 0
  %2653 = vmatprep.subr.bf16.mxu0 0
  %2654 = vmatpush2.bf16.msra.mxu0 0
  %2655 = vmatprep.subr.bf16.mxu0 0
  %2656 = vmatpush2.bf16.msra.mxu0 0
  %2657 = vmatprep.mubr.bf16.mxu0 0
  %2658 = vmatmul.mubr.bf16.gmra.mxu0 %v2620
  %v2659 = vpop.f32.mrf.mxu0
  %v2660 = vadd.f32 0.0, %v2659
  %v2661 = vpop.f32.mrf.mxu0
  %v2662 = vpop.f32.mrf.mxu0
  %v2663 = vpop.f32.mrf.mxu0
  %2664 = vdwg.mxu0
  %v2665 = vpack.c.bf16 %v2324, %v2324
  %v2666 = vpack.c.bf16 %v2372, %v2372
  %v2667 = vpack.c.bf16 %v2420, %v2420
  %v2668 = vpack.c.bf16 %v2468, %v2468
  %v2669 = vpack.c.bf16 %v2516, %v2516
  %v2670 = vpack.c.bf16 %v2564, %v2564
  %v2671 = vpack.c.bf16 %v2612, %v2612
  %v2672 = vpack.c.bf16 %v2660, %v2660
  %2675 = vrot.lane.b32.xlu0 %v2667, 8
  %v2676 = vpop.permute.xlu0 %2675
  %2677 = vrot.lane.b32.xlu0 %v2668, 8
  %v2678 = vpop.permute.xlu0 %2677
  %2681 = vrot.lane.b32.xlu0 %v2669, 16
  %v2682 = vpop.permute.xlu0 %2681
  %2683 = vrot.lane.b32.xlu0 %v2670, 16
  %v2684 = vpop.permute.xlu0 %2683
  %2687 = vrot.lane.b32.xlu0 %v2671, 24
  %v2688 = vpop.permute.xlu0 %2687
  %2689 = vrot.lane.b32.xlu0 %v2672, 24
  %v2690 = vpop.permute.xlu0 %2689
  %v2693 = vsel %vm166, %v2665, %v2676
  %v2696 = vsel %vm166, %v2666, %v2678
  %v2698 = vsel %vm1074, %v2693, %v2682
  %v2700 = vsel %vm1074, %v2696, %v2684
  %v2702 = vsel %vm1079, %v2698, %v2688
  %v2704 = vsel %vm1079, %v2700, %v2690
  %v2705 = vld [vmem:[%s12] sm:$0xf]
  %v2706 = vld [vmem:[%s12 + $0x4] sm:$0xf]
  %v2707 = vld [vmem:[%s12 + $0x8] sm:$0xf]
  %v2708 = vld [vmem:[%s12 + $0xc] sm:$0xf]
  %v2709 = vld [vmem:[%s13] sm:$0x1]
  %v2711 = vlaneseq
  %v2712 = vshrl.u32 %v2711, 7
  %v2713 = vsub.s32 0, %v2712
  %v2714 = vrot.slane %v2709, %v2713
  %v2718 = vunpack.c.l.b16 %v2702
  %v2719 = vunpack.c.l.b16 %v2704
  %v2720 = vpack.c.b16 %v2719, %v2718
  %v2725 = vunpack.c.l.b16 %v2705
  %v2726 = vunpack.c.l.b16 %v2706
  %v2727 = vunpack.c.l.b16 %v2707
  %v2728 = vunpack.c.l.b16 %v2708
  %v2729 = vpack.c.b16 %v2726, %v2725
  %v2730 = vpack.c.b16 %v2728, %v2727
  %v2734 = vsel %vm101, %v2720, 0
  %2736 = vmatprep.subr.bf16.mxu0 0
  %2737 = vmatpush1.bf16.msra.mxu0 0
  %2738 = vmatprep.subr.bf16.mxu0 0
  %2739 = vmatpush1.bf16.msra.mxu0 0
  %2740 = vmatprep.subr.bf16.mxu0 0
  %2741 = vmatpush1.bf16.msra.mxu0 0
  %2742 = vmatprep.subr.bf16.mxu0 0
  %2743 = vmatpush1.bf16.msra.mxu0 0
  %2744 = vmatprep.subr.bf16.mxu0 0
  %2745 = vmatpush1.bf16.msra.mxu0 0
  %2746 = vmatprep.subr.bf16.mxu0 0
  %2747 = vmatpush1.bf16.msra.mxu0 0
  %2748 = vmatprep.subr.bf16.mxu0 0
  %2749 = vmatpush1.bf16.msra.mxu0 %v2730
  %2750 = vmatprep.subr.bf16.mxu0 0
  %2751 = vmatpush1.bf16.msra.mxu0 %v2729
  %2752 = vmatprep.subr.bf16.mxu0 0
  %2753 = vmatpush2.bf16.msra.mxu0 0
  %2754 = vmatprep.subr.bf16.mxu0 0
  %2755 = vmatpush2.bf16.msra.mxu0 0
  %2756 = vmatprep.subr.bf16.mxu0 0
  %2757 = vmatpush2.bf16.msra.mxu0 0
  %2758 = vmatprep.subr.bf16.mxu0 0
  %2759 = vmatpush2.bf16.msra.mxu0 0
  %2760 = vmatprep.subr.bf16.mxu0 0
  %2761 = vmatpush2.bf16.msra.mxu0 0
  %2762 = vmatprep.subr.bf16.mxu0 0
  %2763 = vmatpush2.bf16.msra.mxu0 0
  %2764 = vmatprep.subr.bf16.mxu0 0
  %2765 = vmatpush2.bf16.msra.mxu0 0
  %2766 = vmatprep.subr.bf16.mxu0 0
  %2767 = vmatpush2.bf16.msra.mxu0 0
  %2768 = vmatprep.mubr.bf16.mxu0 0
  %2769 = vmatmul.mubr.bf16.gmra.mxu0 %v2734
  %v2770 = vpop.f32.mrf.mxu0
  %v2771 = vadd.f32 %v2714, %v2770
  %v2772 = vpop.f32.mrf.mxu0
  %v2773 = vpop.f32.mrf.mxu0
  %v2774 = vadd.f32 %v2714, %v2773
  %v2775 = vpop.f32.mrf.mxu0
  %2776 = vdwg.mxu0
  %v2777 = vadd.f32 %v1201, %v2771
  %v2778 = vadd.f32 %v1202, %v2774
  %v2779 = vsel %vm101, %v2777, 0.0
  %2780 = vadd.xlane.f32.xlu0 %v2779
  %v2781 = vpop.xlane.xlu0 %2780
  %v2782 = vsel %vm101, %v2778, 0.0
  %2783 = vadd.xlane.f32.xlu0 %v2782
  %v2784 = vpop.xlane.xlu0 %2783
  %v2785 = vmul.f32 %v2781, %v1164
  %v2786 = vmul.f32 %v2784, %v1164
  %v2787 = vsub.f32 %v2777, %v2785
  %v2788 = vsub.f32 %v2778, %v2786
  %v2789 = vmul.f32 %v2787, %v2787
  %v2790 = vmul.f32 %v2788, %v2788
  %v2791 = vsel %vm101, %v2789, 0.0
  %2792 = vadd.xlane.f32.xlu0 %v2791
  %v2793 = vpop.xlane.xlu0 %2792
  %v2794 = vsel %vm101, %v2790, 0.0
  %2795 = vadd.xlane.f32.xlu0 %v2794
  %v2796 = vpop.xlane.xlu0 %2795
  %v2797 = vmul.f32 %v2793, %v1164
  %v2798 = vmul.f32 %v2796, %v1164
  %v2799 = vadd.f32 %v2797, 1e-05
  %v2800 = vadd.f32 %v2798, 1e-05
  %v2801 = vrsqrt.pop %v2799
  %v2802 = vrsqrt.pop %v2800
  %v2803 = vmul.f32 %v2787, %v2801
  %v2804 = vmul.f32 %v2788, %v2802
  %v2805 = vld [vmem:[%s14] sm:$0x1]
  %v2807 = vlaneseq
  %v2808 = vshrl.u32 %v2807, 7
  %v2809 = vsub.s32 0, %v2808
  %v2810 = vrot.slane %v2805, %v2809
  %v2812 = vmul.f32 %v2803, %v2810
  %v2813 = vmul.f32 %v2804, %v2810
  %v2814 = vld [vmem:[%s15] sm:$0x1]
  %v2816 = vlaneseq
  %v2817 = vshrl.u32 %v2816, 7
  %v2818 = vsub.s32 0, %v2817
  %v2819 = vrot.slane %v2814, %v2818
  %v2821 = vadd.f32 %v2812, %v2819
  %v2822 = vadd.f32 %v2813, %v2819
  %v2823 = vpack.c.bf16 %v2822, %v2821
  %v2824 = vld [vmem:[%s16] sm:$0xf]
  %v2825 = vld [vmem:[%s16 + $0x4] sm:$0xf]
  %v2826 = vld [vmem:[%s16 + $0x8] sm:$0xf]
  %v2827 = vld [vmem:[%s16 + $0xc] sm:$0xf]
  %v2828 = vld [vmem:[%s17] sm:$0x1]
  %v2830 = vlaneseq
  %v2831 = vshrl.u32 %v2830, 7
  %v2832 = vsub.s32 0, %v2831
  %v2833 = vrot.slane %v2828, %v2832
  %v2839 = vunpack.c.l.b16 %v2824
  %v2840 = vunpack.c.l.b16 %v2825
  %v2841 = vunpack.c.l.b16 %v2826
  %v2842 = vunpack.c.l.b16 %v2827
  %v2843 = vpack.c.b16 %v2840, %v2839
  %v2844 = vpack.c.b16 %v2842, %v2841
  %v2848 = vsel %vm101, %v2823, 0
  %2850 = vmatprep.subr.bf16.mxu0 0
  %2851 = vmatpush1.bf16.msra.mxu0 0
  %2852 = vmatprep.subr.bf16.mxu0 0
  %2853 = vmatpush1.bf16.msra.mxu0 0
  %2854 = vmatprep.subr.bf16.mxu0 0
  %2855 = vmatpush1.bf16.msra.mxu0 0
  %2856 = vmatprep.subr.bf16.mxu0 0
  %2857 = vmatpush1.bf16.msra.mxu0 0
  %2858 = vmatprep.subr.bf16.mxu0 0
  %2859 = vmatpush1.bf16.msra.mxu0 0
  %2860 = vmatprep.subr.bf16.mxu0 0
  %2861 = vmatpush1.bf16.msra.mxu0 0
  %2862 = vmatprep.subr.bf16.mxu0 0
  %2863 = vmatpush1.bf16.msra.mxu0 %v2844
  %2864 = vmatprep.subr.bf16.mxu0 0
  %2865 = vmatpush1.bf16.msra.mxu0 %v2843
  %2866 = vmatprep.subr.bf16.mxu0 0
  %2867 = vmatpush2.bf16.msra.mxu0 0
  %2868 = vmatprep.subr.bf16.mxu0 0
  %2869 = vmatpush2.bf16.msra.mxu0 0
  %2870 = vmatprep.subr.bf16.mxu0 0
  %2871 = vmatpush2.bf16.msra.mxu0 0
  %2872 = vmatprep.subr.bf16.mxu0 0
  %2873 = vmatpush2.bf16.msra.mxu0 0
  %2874 = vmatprep.subr.bf16.mxu0 0
  %2875 = vmatpush2.bf16.msra.mxu0 0
  %2876 = vmatprep.subr.bf16.mxu0 0
  %2877 = vmatpush2.bf16.msra.mxu0 0
  %2878 = vmatprep.subr.bf16.mxu0 0
  %2879 = vmatpush2.bf16.msra.mxu0 0
  %2880 = vmatprep.subr.bf16.mxu0 0
  %2881 = vmatpush2.bf16.msra.mxu0 0
  %2882 = vmatprep.mubr.bf16.mxu0 0
  %2883 = vmatmul.mubr.bf16.gmra.mxu0 %v2848
  %v2884 = vpop.f32.mrf.mxu0
  %v2885 = vadd.f32 %v2833, %v2884
  %v2886 = vpop.f32.mrf.mxu0
  %v2887 = vpop.f32.mrf.mxu0
  %v2888 = vadd.f32 %v2833, %v2887
  %v2889 = vpop.f32.mrf.mxu0
  %2890 = vdwg.mxu0
  %v2891 = vmax.f32 %v2885, 0.0
  %v2892 = vmax.f32 %v2888, 0.0
  %v2893 = vpack.c.bf16 %v2892, %v2891
  %v2894 = vld [vmem:[%s18] sm:$0xf]
  %v2895 = vld [vmem:[%s18 + $0x4] sm:$0xf]
  %v2896 = vld [vmem:[%s18 + $0x8] sm:$0xf]
  %v2897 = vld [vmem:[%s18 + $0xc] sm:$0xf]
  %v2898 = vld [vmem:[%s18 + $0x10] sm:$0xf]
  %v2899 = vld [vmem:[%s18 + $0x14] sm:$0xf]
  %v2900 = vld [vmem:[%s18 + $0x18] sm:$0xf]
  %v2901 = vld [vmem:[%s18 + $0x1c] sm:$0xf]
  %v2902 = vld [vmem:[%s19] sm:$0x1]
  %v2904 = vlaneseq
  %v2905 = vshrl.u32 %v2904, 7
  %v2906 = vsub.s32 0, %v2905
  %v2907 = vrot.slane %v2902, %v2906
  %v2917 = vunpack.c.l.b16 %v2894
  %v2918 = vunpack.c.l.b16 %v2895
  %v2919 = vunpack.c.l.b16 %v2896
  %v2920 = vunpack.c.l.b16 %v2897
  %v2921 = vunpack.c.l.b16 %v2898
  %v2922 = vunpack.c.l.b16 %v2899
  %v2923 = vunpack.c.l.b16 %v2900
  %v2924 = vunpack.c.l.b16 %v2901
  %v2925 = vpack.c.b16 %v2918, %v2917
  %v2926 = vpack.c.b16 %v2920, %v2919
  %v2927 = vpack.c.b16 %v2922, %v2921
  %v2928 = vpack.c.b16 %v2924, %v2923
  %vm2933 = vcmask 523264
  %v2935 = vsel %vm2933, %v2893, 0
  %2937 = vmatprep.subr.bf16.mxu0 0
  %2938 = vmatpush1.bf16.msra.mxu0 0
  %2939 = vmatprep.subr.bf16.mxu0 0
  %2940 = vmatpush1.bf16.msra.mxu0 0
  %2941 = vmatprep.subr.bf16.mxu0 0
  %2942 = vmatpush1.bf16.msra.mxu0 0
  %2943 = vmatprep.subr.bf16.mxu0 0
  %2944 = vmatpush1.bf16.msra.mxu0 0
  %2945 = vmatprep.subr.bf16.mxu0 0
  %2946 = vmatpush1.bf16.msra.mxu0 %v2928
  %2947 = vmatprep.subr.bf16.mxu0 0
  %2948 = vmatpush1.bf16.msra.mxu0 %v2927
  %2949 = vmatprep.subr.bf16.mxu0 0
  %2950 = vmatpush1.bf16.msra.mxu0 %v2926
  %2951 = vmatprep.subr.bf16.mxu0 0
  %2952 = vmatpush1.bf16.msra.mxu0 %v2925
  %2953 = vmatprep.subr.bf16.mxu0 0
  %2954 = vmatpush2.bf16.msra.mxu0 0
  %2955 = vmatprep.subr.bf16.mxu0 0
  %2956 = vmatpush2.bf16.msra.mxu0 0
  %2957 = vmatprep.subr.bf16.mxu0 0
  %2958 = vmatpush2.bf16.msra.mxu0 0
  %2959 = vmatprep.subr.bf16.mxu0 0
  %2960 = vmatpush2.bf16.msra.mxu0 0
  %2961 = vmatprep.subr.bf16.mxu0 0
  %2962 = vmatpush2.bf16.msra.mxu0 0
  %2963 = vmatprep.subr.bf16.mxu0 0
  %2964 = vmatpush2.bf16.msra.mxu0 0
  %2965 = vmatprep.subr.bf16.mxu0 0
  %2966 = vmatpush2.bf16.msra.mxu0 0
  %2967 = vmatprep.subr.bf16.mxu0 0
  %2968 = vmatpush2.bf16.msra.mxu0 0
  %2969 = vmatprep.mubr.bf16.mxu0 0
  %2970 = vmatmul.mubr.bf16.gmra.mxu0 %v2935
  %v2971 = vpop.f32.mrf.mxu0
  %v2972 = vadd.f32 %v2907, %v2971
  %v2973 = vpop.f32.mrf.mxu0
  %v2974 = vpop.f32.mrf.mxu0
  %v2975 = vadd.f32 %v2907, %v2974
  %v2976 = vpop.f32.mrf.mxu0
  %2977 = vdwg.mxu0
  %v2978 = vadd.f32 %v2821, %v2972
  %v2979 = vadd.f32 %v2822, %v2975
  %v2980 = vsel %vm101, %v2978, 0.0
  %2981 = vadd.xlane.f32.xlu0 %v2980
  %v2982 = vpop.xlane.xlu0 %2981
  %v2983 = vsel %vm101, %v2979, 0.0
  %2984 = vadd.xlane.f32.xlu0 %v2983
  %v2985 = vpop.xlane.xlu0 %2984
  %v2986 = vmul.f32 %v2982, %v1164
  %v2987 = vmul.f32 %v2985, %v1164
  %v2988 = vsub.f32 %v2978, %v2986
  %v2989 = vsub.f32 %v2979, %v2987
  %v2990 = vmul.f32 %v2988, %v2988
  %v2991 = vmul.f32 %v2989, %v2989
  %v2992 = vsel %vm101, %v2990, 0.0
  %2993 = vadd.xlane.f32.xlu0 %v2992
  %v2994 = vpop.xlane.xlu0 %2993
  %v2995 = vsel %vm101, %v2991, 0.0
  %2996 = vadd.xlane.f32.xlu0 %v2995
  %v2997 = vpop.xlane.xlu0 %2996
  %v2998 = vmul.f32 %v2994, %v1164
  %v2999 = vmul.f32 %v2997, %v1164
  %v3000 = vadd.f32 %v2998, 1e-05
  %v3001 = vadd.f32 %v2999, 1e-05
  %v3002 = vrsqrt.pop %v3000
  %v3003 = vrsqrt.pop %v3001
  %v3004 = vmul.f32 %v2988, %v3002
  %v3005 = vmul.f32 %v2989, %v3003
  %v3006 = vld [vmem:[%s20] sm:$0x1]
  %v3008 = vlaneseq
  %v3009 = vshrl.u32 %v3008, 7
  %v3010 = vsub.s32 0, %v3009
  %v3011 = vrot.slane %v3006, %v3010
  %v3013 = vmul.f32 %v3004, %v3011
  %v3014 = vmul.f32 %v3005, %v3011
  %v3015 = vld [vmem:[%s21] sm:$0x1]
  %v3017 = vlaneseq
  %v3018 = vshrl.u32 %v3017, 7
  %v3019 = vsub.s32 0, %v3018
  %v3020 = vrot.slane %v3015, %v3019
  %v3022 = vadd.f32 %v3013, %v3020
  %v3023 = vadd.f32 %v3014, %v3020
  %3024 = vst.msk [vmem:[%s22] sm:$0xff] %vm101, %v3022
  %3025 = vst.msk [vmem:[%s22 + $0x8] sm:$0xff] %vm101, %v3023
  // Predicated region
  $region90: #{decoder_layer_forward.1} parent=0 // pred_check
    _
  $region91: #{decoder_layer_forward.1} parent=0 // pred_check_branch
    %3027 = sbr.rel (0) target = $region93
  $region92: #{decoder_layer_forward.1} parent=0 // pred_region
    _
  $region93: #{decoder_layer_forward.1} parent=0 // pred_fallthru
    _
  // Predicated region
  $region94: #{decoder_layer_forward.1} parent=0 // pred_check
    _
  $region95: #{decoder_layer_forward.1} parent=0 // pred_check_branch
    %3029 = sbr.rel (0) target = $region97
  $region96: #{decoder_layer_forward.1} parent=0 // pred_region
    _
  $region97: #{decoder_layer_forward.1} parent=0 // pred_fallthru
    _

</llo_original>
